<compile_context>
chip_gen: v6e
topology: v6e:2x2x1
jax: 0.10.0
libtpu: 0.0.40
codegen_flags: <defaults>
</compile_context>

<pallas_src>
import math

import jax
import jax.numpy as jnp
from jax import lax
from jax.experimental import pallas as pl
from jax.experimental.pallas import tpu as pltpu

EPS = 1e-5


def _layernorm(v, gamma, beta):
    # PyTorch nn.LayerNorm: biased variance, eps inside the sqrt.
    mean = jnp.mean(v, axis=-1, keepdims=True)
    centered = v - mean
    var = jnp.mean(centered * centered, axis=-1, keepdims=True)
    inv = lax.rsqrt(var + EPS)
    return centered * inv * gamma + beta


def _lnlstm_seq_kernel(
    xp_ref,     # (Tt, Bt, 4H)   precomputed x-projection (+ bias), streamed
    h0_ref,     # (Bt, H)        initial hidden state for this batch tile
    c0_ref,     # (Bt, H)        initial cell state for this batch tile
    whh_ref,    # (H, 4H)        W_hh^T, resident in VMEM
    gamma_ref,  # (5, H)         LN gammas [i, f, cx, o, cy], resident
    beta_ref,   # (5, H)         LN betas  [i, f, cx, o, cy], resident
    ys_ref,     # (Tt, Bt, H)    h_t outputs for this (batch tile, time chunk)
    hT_ref,     # (Bt, H)        final hidden state output
    cT_ref,     # (Bt, H)        final cell state output
    h_scr,      # (Bt, H) f32    recurrent hidden state (carried across chunks)
    c_scr,      # (Bt, H) f32    recurrent cell state   (carried across chunks)
):
    tc = pl.program_id(1)          # time-chunk index (innermost grid axis)
    n_tc = pl.num_programs(1)

    @pl.when(tc == 0)
    def _init():
        h_scr[...] = h0_ref[...].astype(jnp.float32)
        c_scr[...] = c0_ref[...].astype(jnp.float32)

    # Hoisted constants (loaded/cast once per chunk, not once per step).
    w_hh = whh_ref[...]
    gamma = gamma_ref[...].astype(jnp.float32)
    beta = beta_ref[...].astype(jnp.float32)
    H = h_scr.shape[1]
    Tt = ys_ref.shape[0]

    def step(s, carry):
        h, c = carry
        xp = xp_ref[s].astype(jnp.float32)                       # (Bt, 4H), bias included
        gates = xp + jnp.dot(h.astype(w_hh.dtype), w_hh,
                             preferred_element_type=jnp.float32)  # (Bt, 4H)

        in_gate = jax.nn.sigmoid(
            _layernorm(gates[:, 0 * H:1 * H], gamma[0:1], beta[0:1]))
        forget_gate = jax.nn.sigmoid(
            _layernorm(gates[:, 1 * H:2 * H], gamma[1:2], beta[1:2]))
        cell_gate = jnp.tanh(
            _layernorm(gates[:, 2 * H:3 * H], gamma[2:3], beta[2:3]))
        out_gate = jax.nn.sigmoid(
            _layernorm(gates[:, 3 * H:4 * H], gamma[3:4], beta[3:4]))

        cy = forget_gate * c + in_gate * cell_gate
        cy = _layernorm(cy, gamma[4:5], beta[4:5])
        hy = out_gate * jnp.tanh(cy)

        ys_ref[s] = hy.astype(ys_ref.dtype)
        return hy, cy

    h, c = lax.fori_loop(0, Tt, step, (h_scr[...], c_scr[...]), unroll=True)

    # Carry state to the next time chunk.
    h_scr[...] = h
    c_scr[...] = c

    @pl.when(tc == n_tc - 1)
    def _finalize():
        hT_ref[...] = h.astype(hT_ref.dtype)
        cT_ref[...] = c.astype(cT_ref.dtype)


def prepare_lnlstm_params(weight_ih, weight_hh, bias_ih=None, bias_hh=None,
                          param_dtype=None):
    """One-time weight preparation (hoisted out of the recurrent loop).

    weight_ih: (4H, I)  PyTorch layout
    weight_hh: (4H, H)  PyTorch layout
    Returns (w_ih_t, w_hh_t, bias):
      w_ih_t (I, 4H) used for the hoisted x-projection,
      w_hh_t (H, 4H) resident in VMEM inside the recurrent kernel,
      bias   (1, 4H) f32 = bias_ih + bias_hh (zeros if bias=False).
    Pass param_dtype=jnp.bfloat16 to halve the resident VMEM footprint and use
    the bf16 MXU path on v6e/v7x (accumulation stays f32).
    """
    four_h = weight_ih.shape[0]
    w_ih_t = jnp.transpose(weight_ih)
    w_hh_t = jnp.transpose(weight_hh)
    if param_dtype is not None:
        w_ih_t = w_ih_t.astype(param_dtype)
        w_hh_t = w_hh_t.astype(param_dtype)
    if bias_ih is None:
        bias = jnp.zeros((1, four_h), jnp.float32)
    else:
        bias = (bias_ih.astype(jnp.float32)
                + bias_hh.astype(jnp.float32)).reshape(1, four_h)
    return w_ih_t, w_hh_t, bias


def _pick_block_t(T, cap=8):
    """Largest divisor of T that is <= cap (time steps per grid iteration)."""
    for tt in range(min(T, cap), 0, -1):
        if T % tt == 0:
            return tt
    return 1


def layer_norm_lstm_seq(x_seq, h0, c0, w_ih_t, w_hh_t, bias, ln_gamma, ln_beta,
                        *, block_b=None, block_t=None):
    """Run the LayerNormLSTM cell over a whole sequence in ONE pallas_call.

    x_seq:    (T, B, input_size)
    h0, c0:   (B, hidden_size)
    w_ih_t:   (input_size, 4*hidden_size)   from prepare_lnlstm_params
    w_hh_t:   (hidden_size, 4*hidden_size)
    bias:     (1, 4*hidden_size) f32
    ln_gamma: (5, hidden_size)  gammas for [i, f, cx, o, cy] LayerNorms
    ln_beta:  (5, hidden_size)
    Returns (ys, hT, cT): ys is (T, B, hidden_size) of per-step hidden states,
    hT/cT are the final (B, hidden_size) states.

    block_b: batch rows per tile; on v7x with B >= 16, set B // 2 so the
             "parallel" batch axis actually spans both TensorCores.
    block_t: time steps per grid iteration (amortizes per-step grid overhead).
    """
    T, B, I = x_seq.shape
    H = h0.shape[1]
    assert w_ih_t.shape == (I, 4 * H), w_ih_t.shape
    assert w_hh_t.shape == (H, 4 * H), w_hh_t.shape
    assert bias.shape == (1, 4 * H)
    assert ln_gamma.shape == (5, H) and ln_beta.shape == (5, H)

    if block_b is None:
        block_b = B
    assert B % block_b == 0, (B, block_b)
    # (8,128) sublane rule: batch tile must be a multiple of 8 rows (f32) or full B.
    assert block_b == B or block_b % 8 == 0, block_b
    nb = B // block_b

    if block_t is None:
        block_t = _pick_block_t(T)
    assert T % block_t == 0, (T, block_t)
    nt = T // block_t

    # Hoisted input projection + bias: one large MXU-efficient matmul (M = T*B),
    # done outside the recurrent kernel.  Kept in f32 (it is the gate accumulator).
    x2 = x_seq.reshape(T * B, I).astype(w_ih_t.dtype)
    x_proj = (jnp.dot(x2, w_ih_t, preferred_element_type=jnp.float32)
              + bias).reshape(T, B, 4 * H)

    const_map = lambda b, t: (0, 0)
    in_specs = (
        pl.BlockSpec((block_t, block_b, 4 * H), lambda b, t: (t, b, 0)),  # x_proj streamed
        pl.BlockSpec((block_b, H), lambda b, t: (b, 0)),                  # h0
        pl.BlockSpec((block_b, H), lambda b, t: (b, 0)),                  # c0
        pl.BlockSpec((H, 4 * H), const_map),                              # W_hh^T resident
        pl.BlockSpec((5, H), const_map),                                  # gamma resident
        pl.BlockSpec((5, H), const_map),                                  # beta resident
    )
    out_specs = (
        pl.BlockSpec((block_t, block_b, H), lambda b, t: (t, b, 0)),      # h_t streamed out
        pl.BlockSpec((block_b, H), lambda b, t: (b, 0)),                  # final h
        pl.BlockSpec((block_b, H), lambda b, t: (b, 0)),                  # final c
    )
    out_shape = (
        jax.ShapeDtypeStruct((T, B, H), x_seq.dtype),
        jax.ShapeDtypeStruct((B, H), x_seq.dtype),
        jax.ShapeDtypeStruct((B, H), x_seq.dtype),
    )

    # Explicit scoped-VMEM budget: resident params + double-buffered streamed
    # x_proj/ys tiles + state blocks + scratch + slack, capped below the v7x
    # 64 MiB physical VMEM.
    isz = lambda a: jnp.dtype(a.dtype).itemsize
    resident = (w_hh_t.size * isz(w_hh_t)
                + (ln_gamma.size + ln_beta.size) * 4)
    xp_tile = block_t * block_b * 4 * H * 4
    ys_tile = block_t * block_b * H * isz(x_seq)
    state_blocks = 4 * block_b * H * isz(x_seq)            # h0, c0, hT, cT tiles
    scratch = 2 * block_b * H * 4
    needed = 2 * (resident + xp_tile + ys_tile + state_blocks) + scratch + (4 << 20)
    vmem_limit = int(min(max(needed, 32 << 20), 56 << 20))  # leave v7x headroom

    ys, hT, cT = pl.pallas_call(
        _lnlstm_seq_kernel,
        out_shape=out_shape,
        grid=(nb, nt),
        in_specs=in_specs,
        out_specs=out_specs,
        scratch_shapes=[
            pltpu.VMEM((block_b, H), jnp.float32),   # h carry
            pltpu.VMEM((block_b, H), jnp.float32),   # c carry
        ],
        compiler_params=pltpu.CompilerParams(
            # Batch axis parallel (megacore), time axis MUST stay "arbitrary"
            # (innermost, sequential) because h/c are carried in scratch.
            dimension_semantics=("parallel", "arbitrary"),
            vmem_limit_bytes=vmem_limit,
        ),
    )(x_proj, h0, c0, w_hh_t, ln_gamma, ln_beta)
    return ys, hT, cT


def layer_norm_lstm_cell(x, state, weight_ih, weight_hh, bias_ih, bias_hh,
                         ln_gamma, ln_beta):
    """Single-step cell (matches the PyTorch module's forward): T == 1 path."""
    if state is None:
        zeros = jnp.zeros((x.shape[0], weight_hh.shape[1]), x.dtype)
        state = (zeros, zeros)
    h, c = state
    w_ih_t, w_hh_t, bias = prepare_lnlstm_params(weight_ih, weight_hh,
                                                 bias_ih, bias_hh)
    _, hT, cT = layer_norm_lstm_seq(x[None], h, c, w_ih_t, w_hh_t, bias,
                                    ln_gamma, ln_beta)
    return hT, cT


# ------------------------- pure-JAX references -------------------------------

def _reference_cell(x, h, c, weight_ih, weight_hh, bias_ih, bias_hh,
                    ln_gamma, ln_beta):
    gates = x @ weight_ih.T + bias_ih + h @ weight_hh.T + bias_hh
    i, f, g, o = jnp.split(gates, 4, axis=1)
    i = _layernorm(i, ln_gamma[0:1], ln_beta[0:1])
    f = _layernorm(f, ln_gamma[1:2], ln_beta[1:2])
    g = _layernorm(g, ln_gamma[2:3], ln_beta[2:3])
    o = _layernorm(o, ln_gamma[3:4], ln_beta[3:4])
    i, f, g, o = jax.nn.sigmoid(i), jax.nn.sigmoid(f), jnp.tanh(g), jax.nn.sigmoid(o)
    cy = f * c + i * g
    cy = _layernorm(cy, ln_gamma[4:5], ln_beta[4:5])
    hy = o * jnp.tanh(cy)
    return hy, cy


def _reference_seq(x_seq, h0, c0, weight_ih, weight_hh, bias_ih, bias_hh,
                   ln_gamma, ln_beta):
    def step(carry, x_t):
        h, c = carry
        hy, cy = _reference_cell(x_t, h, c, weight_ih, weight_hh,
                                 bias_ih, bias_hh, ln_gamma, ln_beta)
        return (hy, cy), hy

    (hT, cT), ys = lax.scan(step, (h0, c0), x_seq)
    return ys, hT, cT


# ---------------------------------- demo -------------------------------------

if __name__ == "__main__":
    T = 12
    batch = 8
    input_size = 128     # lane-aligned (multiple of 128)
    hidden_size = 128
    dtype = jnp.float32

    key = jax.random.PRNGKey(0)
    keys = jax.random.split(key, 10)

    stdv = 1.0 / math.sqrt(hidden_size)
    weight_ih = jax.random.uniform(keys[0], (4 * hidden_size, input_size),
                                   dtype, minval=-stdv, maxval=stdv)
    weight_hh = jax.random.uniform(keys[1], (4 * hidden_size, hidden_size),
                                   dtype, minval=-stdv, maxval=stdv)
    bias_ih = jax.random.uniform(keys[2], (4 * hidden_size,),
                                 dtype, minval=-stdv, maxval=stdv)
    bias_hh = jax.random.uniform(keys[3], (4 * hidden_size,),
                                 dtype, minval=-stdv, maxval=stdv)
    # Slightly perturbed LN affine params to exercise the gamma/beta path
    # (PyTorch default is gamma=1, beta=0; both work).
    ln_gamma = (1.0 + 0.1 * jax.random.normal(keys[4], (5, hidden_size))).astype(dtype)
    ln_beta = (0.1 * jax.random.normal(keys[5], (5, hidden_size))).astype(dtype)

    x_seq = jax.random.uniform(keys[6], (T, batch, input_size), dtype)
    h0 = jax.random.uniform(keys[7], (batch, hidden_size), dtype)
    c0 = jax.random.uniform(keys[8], (batch, hidden_size), dtype)

    # One-time weight prep (x-projection weights, resident W_hh^T, summed bias).
    w_ih_t, w_hh_t, bias = prepare_lnlstm_params(weight_ih, weight_hh,
                                                 bias_ih, bias_hh)

    # Fused full-sequence kernel (time-chunked, h@W_hh only on the critical path).
    ys, hT, cT = jax.block_until_ready(
        layer_norm_lstm_seq(x_seq, h0, c0, w_ih_t, w_hh_t, bias,
                            ln_gamma, ln_beta)
    )
    ys_ref, hT_ref, cT_ref = _reference_seq(x_seq, h0, c0, weight_ih, weight_hh,
                                            bias_ih, bias_hh, ln_gamma, ln_beta)
    assert ys.shape == (T, batch, hidden_size)
    assert hT.shape == (batch, hidden_size) and cT.shape == (batch, hidden_size)
    assert jnp.allclose(ys, ys_ref, atol=1e-4, rtol=1e-4)
    assert jnp.allclose(hT, hT_ref, atol=1e-4, rtol=1e-4)
    assert jnp.allclose(cT, cT_ref, atol=1e-4, rtol=1e-4)

    # Single-step cell (module semantics: one forward call).
    h1, c1 = jax.block_until_ready(
        layer_norm_lstm_cell(x_seq[0], (h0, c0), weight_ih, weight_hh,
                             bias_ih, bias_hh, ln_gamma, ln_beta)
    )
    h1_ref, c1_ref = _reference_cell(x_seq[0], h0, c0, weight_ih, weight_hh,
                                     bias_ih, bias_hh, ln_gamma, ln_beta)
    assert h1.shape == (batch, hidden_size) and c1.shape == (batch, hidden_size)
    assert jnp.allclose(h1, h1_ref, atol=1e-4, rtol=1e-4)
    assert jnp.allclose(c1, c1_ref, atol=1e-4, rtol=1e-4)

    print("KERNEL_OK")
</pallas_src>

<mosaic_0001>
module attributes {stable_mosaic.version = 11 : i64} {
  func.func @_lnlstm_seq_kernel(%arg0: i32, %arg1: i32, %arg2: memref<6x8x512xf32, #tpu.memory_space<vmem>>, %arg3: memref<8x128xf32, #tpu.memory_space<vmem>>, %arg4: memref<8x128xf32, #tpu.memory_space<vmem>>, %arg5: memref<128x512xf32, #tpu.memory_space<vmem>>, %arg6: memref<5x128xf32, #tpu.memory_space<vmem>>, %arg7: memref<5x128xf32, #tpu.memory_space<vmem>>, %arg8: memref<6x8x128xf32, #tpu.memory_space<vmem>>, %arg9: memref<8x128xf32, #tpu.memory_space<vmem>>, %arg10: memref<8x128xf32, #tpu.memory_space<vmem>>, %arg11: memref<8x128xf32, #tpu.memory_space<vmem>>, %arg12: memref<8x128xf32, #tpu.memory_space<vmem>>) attributes {dimension_semantics = [#tpu.dimension_semantics<parallel>, #tpu.dimension_semantics<arbitrary>], iteration_bounds = array<i64: 1, 2>, scalar_prefetch = 0 : i64, scratch_operands = 2 : i64, tpu.core_type = #tpu.core_type<tc>, window_params = [{transform_indices = @transform_0, window_bounds = array<i64: 6, 8, 512>}, {transform_indices = @transform_1, window_bounds = array<i64: 8, 128>}, {transform_indices = @transform_2, window_bounds = array<i64: 8, 128>}, {pipeline_mode = #tpu.pipeline_mode<synchronous>, transform_indices = @transform_3, window_bounds = array<i64: 128, 512>}, {pipeline_mode = #tpu.pipeline_mode<synchronous>, transform_indices = @transform_4, window_bounds = array<i64: 5, 128>}, {pipeline_mode = #tpu.pipeline_mode<synchronous>, transform_indices = @transform_5, window_bounds = array<i64: 5, 128>}, {transform_indices = @transform_6, window_bounds = array<i64: 6, 8, 128>}, {transform_indices = @transform_7, window_bounds = array<i64: 8, 128>}, {transform_indices = @transform_8, window_bounds = array<i64: 8, 128>}]} {
    %c0_i32 = arith.constant 0 : i32
    %0 = arith.cmpi eq, %arg1, %c0_i32 : i32
    %1 = arith.extui %0 : i1 to i32
    %c0_i32_0 = arith.constant 0 : i32
    %2 = arith.cmpi ne, %1, %c0_i32_0 : i32
    scf.if %2 {
      %c0_214 = arith.constant 0 : index
      %c0_215 = arith.constant 0 : index
      %877 = vector.load %arg3[%c0_214, %c0_215] : memref<8x128xf32, #tpu.memory_space<vmem>>, vector<8x128xf32>
      %c0_216 = arith.constant 0 : index
      %c0_217 = arith.constant 0 : index
      %878 = vector.load %arg11[%c0_216, %c0_217] : memref<8x128xf32, #tpu.memory_space<vmem>>, vector<8x128xf32>
      tpu.vector_store %arg11[%c0_216, %c0_217], %877 {strides = array<i32>} : memref<8x128xf32, #tpu.memory_space<vmem>>, vector<8x128xf32>,
      %c0_218 = arith.constant 0 : index
      %c0_219 = arith.constant 0 : index
      %879 = vector.load %arg4[%c0_218, %c0_219] : memref<8x128xf32, #tpu.memory_space<vmem>>, vector<8x128xf32>
      %c0_220 = arith.constant 0 : index
      %c0_221 = arith.constant 0 : index
      %880 = vector.load %arg12[%c0_220, %c0_221] : memref<8x128xf32, #tpu.memory_space<vmem>>, vector<8x128xf32>
      tpu.vector_store %arg12[%c0_220, %c0_221], %879 {strides = array<i32>} : memref<8x128xf32, #tpu.memory_space<vmem>>, vector<8x128xf32>,
    } else {
    }
    %c0 = arith.constant 0 : index
    %c0_1 = arith.constant 0 : index
    %3 = vector.load %arg5[%c0, %c0_1] : memref<128x512xf32, #tpu.memory_space<vmem>>, vector<128x512xf32>
    %c0_2 = arith.constant 0 : index
    %c0_3 = arith.constant 0 : index
    %4 = vector.load %arg6[%c0_2, %c0_3] : memref<5x128xf32, #tpu.memory_space<vmem>>, vector<5x128xf32>
    %c0_4 = arith.constant 0 : index
    %c0_5 = arith.constant 0 : index
    %5 = vector.load %arg7[%c0_4, %c0_5] : memref<5x128xf32, #tpu.memory_space<vmem>>, vector<5x128xf32>
    %c0_6 = arith.constant 0 : index
    %c0_7 = arith.constant 0 : index
    %6 = vector.load %arg11[%c0_6, %c0_7] : memref<8x128xf32, #tpu.memory_space<vmem>>, vector<8x128xf32>
    %c0_8 = arith.constant 0 : index
    %c0_9 = arith.constant 0 : index
    %7 = vector.load %arg12[%c0_8, %c0_9] : memref<8x128xf32, #tpu.memory_space<vmem>>, vector<8x128xf32>
    %c0_i32_10 = arith.constant 0 : i32
    %8 = arith.index_cast %c0_i32_10 : i32 to index
    %c0_11 = arith.constant 0 : index
    %c0_12 = arith.constant 0 : index
    %9 = vector.load %arg2[%8, %c0_11, %c0_12] : memref<6x8x512xf32, #tpu.memory_space<vmem>>, vector<1x8x512xf32>
    %10 = vector.shape_cast %9 : vector<1x8x512xf32> to vector<8x512xf32>
    %cst = arith.constant dense<0.000000e+00> : vector<8x512xf32>
    %11 = tpu.matmul %6, %3, %cst {dimension_numbers = #tpu.dot_dimension_numbers<[1], [0], [0], [1], [0, 0, 1, 1], [], []>} : vector<8x128xf32>, vector<128x512xf32>, vector<8x512xf32> -> vector<8x512xf32>
    %12 = arith.addf %10, %11 : vector<8x512xf32>
    %13 = vector.extract_strided_slice %12 {offsets = [0, 0], sizes = [8, 128], strides = [1, 1]} : vector<8x512xf32> to vector<8x128xf32>
    %14 = vector.extract_strided_slice %4 {offsets = [0, 0], sizes = [1, 128], strides = [1, 1]} : vector<5x128xf32> to vector<1x128xf32>
    %15 = vector.extract_strided_slice %5 {offsets = [0, 0], sizes = [1, 128], strides = [1, 1]} : vector<5x128xf32> to vector<1x128xf32>
    %cst_13 = arith.constant dense<0.000000e+00> : vector<8xf32>
    %16 = vector.multi_reduction <add>, %13, %cst_13 [1] : vector<8x128xf32> to vector<8xf32>
    %17 = vector.shape_cast %16 : vector<8xf32> to vector<8x1xf32>
    %cst_14 = arith.constant 1.280000e+02 : f32
    %18 = vector.broadcast %cst_14 : f32 to vector<8x1xf32>
    %19 = arith.divf %17, %18 : vector<8x1xf32>
    %20 = vector.broadcast %19 : vector<8x1xf32> to vector<8x128xf32>
    %21 = arith.subf %13, %20 : vector<8x128xf32>
    %22 = arith.mulf %21, %21 : vector<8x128xf32>
    %cst_15 = arith.constant dense<0.000000e+00> : vector<8xf32>
    %23 = vector.multi_reduction <add>, %22, %cst_15 [1] : vector<8x128xf32> to vector<8xf32>
    %24 = vector.shape_cast %23 : vector<8xf32> to vector<8x1xf32>
    %cst_16 = arith.constant 1.280000e+02 : f32
    %25 = vector.broadcast %cst_16 : f32 to vector<8x1xf32>
    %26 = arith.divf %24, %25 : vector<8x1xf32>
    %cst_17 = arith.constant 9.99999974E-6 : f32
    %27 = vector.broadcast %cst_17 : f32 to vector<8x1xf32>
    %28 = arith.addf %26, %27 : vector<8x1xf32>
    %29 = math.rsqrt %28 : vector<8x1xf32>
    %30 = vector.broadcast %29 : vector<8x1xf32> to vector<8x128xf32>
    %31 = arith.mulf %21, %30 : vector<8x128xf32>
    %32 = vector.broadcast %14 : vector<1x128xf32> to vector<8x128xf32>
    %33 = arith.mulf %31, %32 : vector<8x128xf32>
    %34 = vector.broadcast %15 : vector<1x128xf32> to vector<8x128xf32>
    %35 = arith.addf %33, %34 : vector<8x128xf32>
    %36 = arith.negf %35 : vector<8x128xf32>
    %37 = math.exp %36 : vector<8x128xf32>
    %cst_18 = arith.constant 1.000000e+00 : f32
    %38 = vector.broadcast %cst_18 : f32 to vector<8x128xf32>
    %39 = arith.addf %38, %37 : vector<8x128xf32>
    %40 = arith.divf %38, %39 : vector<8x128xf32>
    %41 = vector.extract_strided_slice %12 {offsets = [0, 128], sizes = [8, 128], strides = [1, 1]} : vector<8x512xf32> to vector<8x128xf32>
    %42 = vector.extract_strided_slice %4 {offsets = [1, 0], sizes = [1, 128], strides = [1, 1]} : vector<5x128xf32> to vector<1x128xf32>
    %43 = vector.extract_strided_slice %5 {offsets = [1, 0], sizes = [1, 128], strides = [1, 1]} : vector<5x128xf32> to vector<1x128xf32>
    %cst_19 = arith.constant dense<0.000000e+00> : vector<8xf32>
    %44 = vector.multi_reduction <add>, %41, %cst_19 [1] : vector<8x128xf32> to vector<8xf32>
    %45 = vector.shape_cast %44 : vector<8xf32> to vector<8x1xf32>
    %cst_20 = arith.constant 1.280000e+02 : f32
    %46 = vector.broadcast %cst_20 : f32 to vector<8x1xf32>
    %47 = arith.divf %45, %46 : vector<8x1xf32>
    %48 = vector.broadcast %47 : vector<8x1xf32> to vector<8x128xf32>
    %49 = arith.subf %41, %48 : vector<8x128xf32>
    %50 = arith.mulf %49, %49 : vector<8x128xf32>
    %cst_21 = arith.constant dense<0.000000e+00> : vector<8xf32>
    %51 = vector.multi_reduction <add>, %50, %cst_21 [1] : vector<8x128xf32> to vector<8xf32>
    %52 = vector.shape_cast %51 : vector<8xf32> to vector<8x1xf32>
    %cst_22 = arith.constant 1.280000e+02 : f32
    %53 = vector.broadcast %cst_22 : f32 to vector<8x1xf32>
    %54 = arith.divf %52, %53 : vector<8x1xf32>
    %cst_23 = arith.constant 9.99999974E-6 : f32
    %55 = vector.broadcast %cst_23 : f32 to vector<8x1xf32>
    %56 = arith.addf %54, %55 : vector<8x1xf32>
    %57 = math.rsqrt %56 : vector<8x1xf32>
    %58 = vector.broadcast %57 : vector<8x1xf32> to vector<8x128xf32>
    %59 = arith.mulf %49, %58 : vector<8x128xf32>
    %60 = vector.broadcast %42 : vector<1x128xf32> to vector<8x128xf32>
    %61 = arith.mulf %59, %60 : vector<8x128xf32>
    %62 = vector.broadcast %43 : vector<1x128xf32> to vector<8x128xf32>
    %63 = arith.addf %61, %62 : vector<8x128xf32>
    %64 = arith.negf %63 : vector<8x128xf32>
    %65 = math.exp %64 : vector<8x128xf32>
    %cst_24 = arith.constant 1.000000e+00 : f32
    %66 = vector.broadcast %cst_24 : f32 to vector<8x128xf32>
    %67 = arith.addf %66, %65 : vector<8x128xf32>
    %68 = arith.divf %66, %67 : vector<8x128xf32>
    %69 = vector.extract_strided_slice %12 {offsets = [0, 256], sizes = [8, 128], strides = [1, 1]} : vector<8x512xf32> to vector<8x128xf32>
    %70 = vector.extract_strided_slice %4 {offsets = [2, 0], sizes = [1, 128], strides = [1, 1]} : vector<5x128xf32> to vector<1x128xf32>
    %71 = vector.extract_strided_slice %5 {offsets = [2, 0], sizes = [1, 128], strides = [1, 1]} : vector<5x128xf32> to vector<1x128xf32>
    %cst_25 = arith.constant dense<0.000000e+00> : vector<8xf32>
    %72 = vector.multi_reduction <add>, %69, %cst_25 [1] : vector<8x128xf32> to vector<8xf32>
    %73 = vector.shape_cast %72 : vector<8xf32> to vector<8x1xf32>
    %cst_26 = arith.constant 1.280000e+02 : f32
    %74 = vector.broadcast %cst_26 : f32 to vector<8x1xf32>
    %75 = arith.divf %73, %74 : vector<8x1xf32>
    %76 = vector.broadcast %75 : vector<8x1xf32> to vector<8x128xf32>
    %77 = arith.subf %69, %76 : vector<8x128xf32>
    %78 = arith.mulf %77, %77 : vector<8x128xf32>
    %cst_27 = arith.constant dense<0.000000e+00> : vector<8xf32>
    %79 = vector.multi_reduction <add>, %78, %cst_27 [1] : vector<8x128xf32> to vector<8xf32>
    %80 = vector.shape_cast %79 : vector<8xf32> to vector<8x1xf32>
    %cst_28 = arith.constant 1.280000e+02 : f32
    %81 = vector.broadcast %cst_28 : f32 to vector<8x1xf32>
    %82 = arith.divf %80, %81 : vector<8x1xf32>
    %cst_29 = arith.constant 9.99999974E-6 : f32
    %83 = vector.broadcast %cst_29 : f32 to vector<8x1xf32>
    %84 = arith.addf %82, %83 : vector<8x1xf32>
    %85 = math.rsqrt %84 : vector<8x1xf32>
    %86 = vector.broadcast %85 : vector<8x1xf32> to vector<8x128xf32>
    %87 = arith.mulf %77, %86 : vector<8x128xf32>
    %88 = vector.broadcast %70 : vector<1x128xf32> to vector<8x128xf32>
    %89 = arith.mulf %87, %88 : vector<8x128xf32>
    %90 = vector.broadcast %71 : vector<1x128xf32> to vector<8x128xf32>
    %91 = arith.addf %89, %90 : vector<8x128xf32>
    %92 = math.tanh %91 : vector<8x128xf32>
    %93 = vector.extract_strided_slice %12 {offsets = [0, 384], sizes = [8, 128], strides = [1, 1]} : vector<8x512xf32> to vector<8x128xf32>
    %94 = vector.extract_strided_slice %4 {offsets = [3, 0], sizes = [1, 128], strides = [1, 1]} : vector<5x128xf32> to vector<1x128xf32>
    %95 = vector.extract_strided_slice %5 {offsets = [3, 0], sizes = [1, 128], strides = [1, 1]} : vector<5x128xf32> to vector<1x128xf32>
    %cst_30 = arith.constant dense<0.000000e+00> : vector<8xf32>
    %96 = vector.multi_reduction <add>, %93, %cst_30 [1] : vector<8x128xf32> to vector<8xf32>
    %97 = vector.shape_cast %96 : vector<8xf32> to vector<8x1xf32>
    %cst_31 = arith.constant 1.280000e+02 : f32
    %98 = vector.broadcast %cst_31 : f32 to vector<8x1xf32>
    %99 = arith.divf %97, %98 : vector<8x1xf32>
    %100 = vector.broadcast %99 : vector<8x1xf32> to vector<8x128xf32>
    %101 = arith.subf %93, %100 : vector<8x128xf32>
    %102 = arith.mulf %101, %101 : vector<8x128xf32>
    %cst_32 = arith.constant dense<0.000000e+00> : vector<8xf32>
    %103 = vector.multi_reduction <add>, %102, %cst_32 [1] : vector<8x128xf32> to vector<8xf32>
    %104 = vector.shape_cast %103 : vector<8xf32> to vector<8x1xf32>
    %cst_33 = arith.constant 1.280000e+02 : f32
    %105 = vector.broadcast %cst_33 : f32 to vector<8x1xf32>
    %106 = arith.divf %104, %105 : vector<8x1xf32>
    %cst_34 = arith.constant 9.99999974E-6 : f32
    %107 = vector.broadcast %cst_34 : f32 to vector<8x1xf32>
    %108 = arith.addf %106, %107 : vector<8x1xf32>
    %109 = math.rsqrt %108 : vector<8x1xf32>
    %110 = vector.broadcast %109 : vector<8x1xf32> to vector<8x128xf32>
    %111 = arith.mulf %101, %110 : vector<8x128xf32>
    %112 = vector.broadcast %94 : vector<1x128xf32> to vector<8x128xf32>
    %113 = arith.mulf %111, %112 : vector<8x128xf32>
    %114 = vector.broadcast %95 : vector<1x128xf32> to vector<8x128xf32>
    %115 = arith.addf %113, %114 : vector<8x128xf32>
    %116 = arith.negf %115 : vector<8x128xf32>
    %117 = math.exp %116 : vector<8x128xf32>
    %cst_35 = arith.constant 1.000000e+00 : f32
    %118 = vector.broadcast %cst_35 : f32 to vector<8x128xf32>
    %119 = arith.addf %118, %117 : vector<8x128xf32>
    %120 = arith.divf %118, %119 : vector<8x128xf32>
    %121 = arith.mulf %68, %7 : vector<8x128xf32>
    %122 = arith.mulf %40, %92 : vector<8x128xf32>
    %123 = arith.addf %121, %122 : vector<8x128xf32>
    %124 = vector.extract_strided_slice %4 {offsets = [4, 0], sizes = [1, 128], strides = [1, 1]} : vector<5x128xf32> to vector<1x128xf32>
    %125 = vector.extract_strided_slice %5 {offsets = [4, 0], sizes = [1, 128], strides = [1, 1]} : vector<5x128xf32> to vector<1x128xf32>
    %cst_36 = arith.constant dense<0.000000e+00> : vector<8xf32>
    %126 = vector.multi_reduction <add>, %123, %cst_36 [1] : vector<8x128xf32> to vector<8xf32>
    %127 = vector.shape_cast %126 : vector<8xf32> to vector<8x1xf32>
    %cst_37 = arith.constant 1.280000e+02 : f32
    %128 = vector.broadcast %cst_37 : f32 to vector<8x1xf32>
    %129 = arith.divf %127, %128 : vector<8x1xf32>
    %130 = vector.broadcast %129 : vector<8x1xf32> to vector<8x128xf32>
    %131 = arith.subf %123, %130 : vector<8x128xf32>
    %132 = arith.mulf %131, %131 : vector<8x128xf32>
    %cst_38 = arith.constant dense<0.000000e+00> : vector<8xf32>
    %133 = vector.multi_reduction <add>, %132, %cst_38 [1] : vector<8x128xf32> to vector<8xf32>
    %134 = vector.shape_cast %133 : vector<8xf32> to vector<8x1xf32>
    %cst_39 = arith.constant 1.280000e+02 : f32
    %135 = vector.broadcast %cst_39 : f32 to vector<8x1xf32>
    %136 = arith.divf %134, %135 : vector<8x1xf32>
    %cst_40 = arith.constant 9.99999974E-6 : f32
    %137 = vector.broadcast %cst_40 : f32 to vector<8x1xf32>
    %138 = arith.addf %136, %137 : vector<8x1xf32>
    %139 = math.rsqrt %138 : vector<8x1xf32>
    %140 = vector.broadcast %139 : vector<8x1xf32> to vector<8x128xf32>
    %141 = arith.mulf %131, %140 : vector<8x128xf32>
    %142 = vector.broadcast %124 : vector<1x128xf32> to vector<8x128xf32>
    %143 = arith.mulf %141, %142 : vector<8x128xf32>
    %144 = vector.broadcast %125 : vector<1x128xf32> to vector<8x128xf32>
    %145 = arith.addf %143, %144 : vector<8x128xf32>
    %146 = math.tanh %145 : vector<8x128xf32>
    %147 = arith.mulf %120, %146 : vector<8x128xf32>
    %148 = arith.index_cast %c0_i32_10 : i32 to index
    %c0_41 = arith.constant 0 : index
    %c0_42 = arith.constant 0 : index
    %149 = vector.load %arg8[%148, %c0_41, %c0_42] : memref<6x8x128xf32, #tpu.memory_space<vmem>>, vector<1x8x128xf32>
    %150 = vector.shape_cast %149 : vector<1x8x128xf32> to vector<8x128xf32>
    %151 = vector.shape_cast %147 : vector<8x128xf32> to vector<1x8x128xf32>
    tpu.vector_store %arg8[%148, %c0_41, %c0_42], %151 {strides = array<i32>} : memref<6x8x128xf32, #tpu.memory_space<vmem>>, vector<1x8x128xf32>,
    %c1_i32 = arith.constant 1 : i32
    %152 = arith.index_cast %c1_i32 : i32 to index
    %c0_43 = arith.constant 0 : index
    %c0_44 = arith.constant 0 : index
    %153 = vector.load %arg2[%152, %c0_43, %c0_44] : memref<6x8x512xf32, #tpu.memory_space<vmem>>, vector<1x8x512xf32>
    %154 = vector.shape_cast %153 : vector<1x8x512xf32> to vector<8x512xf32>
    %cst_45 = arith.constant dense<0.000000e+00> : vector<8x512xf32>
    %155 = tpu.matmul %147, %3, %cst_45 {dimension_numbers = #tpu.dot_dimension_numbers<[1], [0], [0], [1], [0, 0, 1, 1], [], []>} : vector<8x128xf32>, vector<128x512xf32>, vector<8x512xf32> -> vector<8x512xf32>
    %156 = arith.addf %154, %155 : vector<8x512xf32>
    %157 = vector.extract_strided_slice %156 {offsets = [0, 0], sizes = [8, 128], strides = [1, 1]} : vector<8x512xf32> to vector<8x128xf32>
    %158 = vector.extract_strided_slice %4 {offsets = [0, 0], sizes = [1, 128], strides = [1, 1]} : vector<5x128xf32> to vector<1x128xf32>
    %159 = vector.extract_strided_slice %5 {offsets = [0, 0], sizes = [1, 128], strides = [1, 1]} : vector<5x128xf32> to vector<1x128xf32>
    %cst_46 = arith.constant dense<0.000000e+00> : vector<8xf32>
    %160 = vector.multi_reduction <add>, %157, %cst_46 [1] : vector<8x128xf32> to vector<8xf32>
    %161 = vector.shape_cast %160 : vector<8xf32> to vector<8x1xf32>
    %cst_47 = arith.constant 1.280000e+02 : f32
    %162 = vector.broadcast %cst_47 : f32 to vector<8x1xf32>
    %163 = arith.divf %161, %162 : vector<8x1xf32>
    %164 = vector.broadcast %163 : vector<8x1xf32> to vector<8x128xf32>
    %165 = arith.subf %157, %164 : vector<8x128xf32>
    %166 = arith.mulf %165, %165 : vector<8x128xf32>
    %cst_48 = arith.constant dense<0.000000e+00> : vector<8xf32>
    %167 = vector.multi_reduction <add>, %166, %cst_48 [1] : vector<8x128xf32> to vector<8xf32>
    %168 = vector.shape_cast %167 : vector<8xf32> to vector<8x1xf32>
    %cst_49 = arith.constant 1.280000e+02 : f32
    %169 = vector.broadcast %cst_49 : f32 to vector<8x1xf32>
    %170 = arith.divf %168, %169 : vector<8x1xf32>
    %cst_50 = arith.constant 9.99999974E-6 : f32
    %171 = vector.broadcast %cst_50 : f32 to vector<8x1xf32>
    %172 = arith.addf %170, %171 : vector<8x1xf32>
    %173 = math.rsqrt %172 : vector<8x1xf32>
    %174 = vector.broadcast %173 : vector<8x1xf32> to vector<8x128xf32>
    %175 = arith.mulf %165, %174 : vector<8x128xf32>
    %176 = vector.broadcast %158 : vector<1x128xf32> to vector<8x128xf32>
    %177 = arith.mulf %175, %176 : vector<8x128xf32>
    %178 = vector.broadcast %159 : vector<1x128xf32> to vector<8x128xf32>
    %179 = arith.addf %177, %178 : vector<8x128xf32>
    %180 = arith.negf %179 : vector<8x128xf32>
    %181 = math.exp %180 : vector<8x128xf32>
    %cst_51 = arith.constant 1.000000e+00 : f32
    %182 = vector.broadcast %cst_51 : f32 to vector<8x128xf32>
    %183 = arith.addf %182, %181 : vector<8x128xf32>
    %184 = arith.divf %182, %183 : vector<8x128xf32>
    %185 = vector.extract_strided_slice %156 {offsets = [0, 128], sizes = [8, 128], strides = [1, 1]} : vector<8x512xf32> to vector<8x128xf32>
    %186 = vector.extract_strided_slice %4 {offsets = [1, 0], sizes = [1, 128], strides = [1, 1]} : vector<5x128xf32> to vector<1x128xf32>
    %187 = vector.extract_strided_slice %5 {offsets = [1, 0], sizes = [1, 128], strides = [1, 1]} : vector<5x128xf32> to vector<1x128xf32>
    %cst_52 = arith.constant dense<0.000000e+00> : vector<8xf32>
    %188 = vector.multi_reduction <add>, %185, %cst_52 [1] : vector<8x128xf32> to vector<8xf32>
    %189 = vector.shape_cast %188 : vector<8xf32> to vector<8x1xf32>
    %cst_53 = arith.constant 1.280000e+02 : f32
    %190 = vector.broadcast %cst_53 : f32 to vector<8x1xf32>
    %191 = arith.divf %189, %190 : vector<8x1xf32>
    %192 = vector.broadcast %191 : vector<8x1xf32> to vector<8x128xf32>
    %193 = arith.subf %185, %192 : vector<8x128xf32>
    %194 = arith.mulf %193, %193 : vector<8x128xf32>
    %cst_54 = arith.constant dense<0.000000e+00> : vector<8xf32>
    %195 = vector.multi_reduction <add>, %194, %cst_54 [1] : vector<8x128xf32> to vector<8xf32>
    %196 = vector.shape_cast %195 : vector<8xf32> to vector<8x1xf32>
    %cst_55 = arith.constant 1.280000e+02 : f32
    %197 = vector.broadcast %cst_55 : f32 to vector<8x1xf32>
    %198 = arith.divf %196, %197 : vector<8x1xf32>
    %cst_56 = arith.constant 9.99999974E-6 : f32
    %199 = vector.broadcast %cst_56 : f32 to vector<8x1xf32>
    %200 = arith.addf %198, %199 : vector<8x1xf32>
    %201 = math.rsqrt %200 : vector<8x1xf32>
    %202 = vector.broadcast %201 : vector<8x1xf32> to vector<8x128xf32>
    %203 = arith.mulf %193, %202 : vector<8x128xf32>
    %204 = vector.broadcast %186 : vector<1x128xf32> to vector<8x128xf32>
    %205 = arith.mulf %203, %204 : vector<8x128xf32>
    %206 = vector.broadcast %187 : vector<1x128xf32> to vector<8x128xf32>
    %207 = arith.addf %205, %206 : vector<8x128xf32>
    %208 = arith.negf %207 : vector<8x128xf32>
    %209 = math.exp %208 : vector<8x128xf32>
    %cst_57 = arith.constant 1.000000e+00 : f32
    %210 = vector.broadcast %cst_57 : f32 to vector<8x128xf32>
    %211 = arith.addf %210, %209 : vector<8x128xf32>
    %212 = arith.divf %210, %211 : vector<8x128xf32>
    %213 = vector.extract_strided_slice %156 {offsets = [0, 256], sizes = [8, 128], strides = [1, 1]} : vector<8x512xf32> to vector<8x128xf32>
    %214 = vector.extract_strided_slice %4 {offsets = [2, 0], sizes = [1, 128], strides = [1, 1]} : vector<5x128xf32> to vector<1x128xf32>
    %215 = vector.extract_strided_slice %5 {offsets = [2, 0], sizes = [1, 128], strides = [1, 1]} : vector<5x128xf32> to vector<1x128xf32>
    %cst_58 = arith.constant dense<0.000000e+00> : vector<8xf32>
    %216 = vector.multi_reduction <add>, %213, %cst_58 [1] : vector<8x128xf32> to vector<8xf32>
    %217 = vector.shape_cast %216 : vector<8xf32> to vector<8x1xf32>
    %cst_59 = arith.constant 1.280000e+02 : f32
    %218 = vector.broadcast %cst_59 : f32 to vector<8x1xf32>
    %219 = arith.divf %217, %218 : vector<8x1xf32>
    %220 = vector.broadcast %219 : vector<8x1xf32> to vector<8x128xf32>
    %221 = arith.subf %213, %220 : vector<8x128xf32>
    %222 = arith.mulf %221, %221 : vector<8x128xf32>
    %cst_60 = arith.constant dense<0.000000e+00> : vector<8xf32>
    %223 = vector.multi_reduction <add>, %222, %cst_60 [1] : vector<8x128xf32> to vector<8xf32>
    %224 = vector.shape_cast %223 : vector<8xf32> to vector<8x1xf32>
    %cst_61 = arith.constant 1.280000e+02 : f32
    %225 = vector.broadcast %cst_61 : f32 to vector<8x1xf32>
    %226 = arith.divf %224, %225 : vector<8x1xf32>
    %cst_62 = arith.constant 9.99999974E-6 : f32
    %227 = vector.broadcast %cst_62 : f32 to vector<8x1xf32>
    %228 = arith.addf %226, %227 : vector<8x1xf32>
    %229 = math.rsqrt %228 : vector<8x1xf32>
    %230 = vector.broadcast %229 : vector<8x1xf32> to vector<8x128xf32>
    %231 = arith.mulf %221, %230 : vector<8x128xf32>
    %232 = vector.broadcast %214 : vector<1x128xf32> to vector<8x128xf32>
    %233 = arith.mulf %231, %232 : vector<8x128xf32>
    %234 = vector.broadcast %215 : vector<1x128xf32> to vector<8x128xf32>
    %235 = arith.addf %233, %234 : vector<8x128xf32>
    %236 = math.tanh %235 : vector<8x128xf32>
    %237 = vector.extract_strided_slice %156 {offsets = [0, 384], sizes = [8, 128], strides = [1, 1]} : vector<8x512xf32> to vector<8x128xf32>
    %238 = vector.extract_strided_slice %4 {offsets = [3, 0], sizes = [1, 128], strides = [1, 1]} : vector<5x128xf32> to vector<1x128xf32>
    %239 = vector.extract_strided_slice %5 {offsets = [3, 0], sizes = [1, 128], strides = [1, 1]} : vector<5x128xf32> to vector<1x128xf32>
    %cst_63 = arith.constant dense<0.000000e+00> : vector<8xf32>
    %240 = vector.multi_reduction <add>, %237, %cst_63 [1] : vector<8x128xf32> to vector<8xf32>
    %241 = vector.shape_cast %240 : vector<8xf32> to vector<8x1xf32>
    %cst_64 = arith.constant 1.280000e+02 : f32
    %242 = vector.broadcast %cst_64 : f32 to vector<8x1xf32>
    %243 = arith.divf %241, %242 : vector<8x1xf32>
    %244 = vector.broadcast %243 : vector<8x1xf32> to vector<8x128xf32>
    %245 = arith.subf %237, %244 : vector<8x128xf32>
    %246 = arith.mulf %245, %245 : vector<8x128xf32>
    %cst_65 = arith.constant dense<0.000000e+00> : vector<8xf32>
    %247 = vector.multi_reduction <add>, %246, %cst_65 [1] : vector<8x128xf32> to vector<8xf32>
    %248 = vector.shape_cast %247 : vector<8xf32> to vector<8x1xf32>
    %cst_66 = arith.constant 1.280000e+02 : f32
    %249 = vector.broadcast %cst_66 : f32 to vector<8x1xf32>
    %250 = arith.divf %248, %249 : vector<8x1xf32>
    %cst_67 = arith.constant 9.99999974E-6 : f32
    %251 = vector.broadcast %cst_67 : f32 to vector<8x1xf32>
    %252 = arith.addf %250, %251 : vector<8x1xf32>
    %253 = math.rsqrt %252 : vector<8x1xf32>
    %254 = vector.broadcast %253 : vector<8x1xf32> to vector<8x128xf32>
    %255 = arith.mulf %245, %254 : vector<8x128xf32>
    %256 = vector.broadcast %238 : vector<1x128xf32> to vector<8x128xf32>
    %257 = arith.mulf %255, %256 : vector<8x128xf32>
    %258 = vector.broadcast %239 : vector<1x128xf32> to vector<8x128xf32>
    %259 = arith.addf %257, %258 : vector<8x128xf32>
    %260 = arith.negf %259 : vector<8x128xf32>
    %261 = math.exp %260 : vector<8x128xf32>
    %cst_68 = arith.constant 1.000000e+00 : f32
    %262 = vector.broadcast %cst_68 : f32 to vector<8x128xf32>
    %263 = arith.addf %262, %261 : vector<8x128xf32>
    %264 = arith.divf %262, %263 : vector<8x128xf32>
    %265 = arith.mulf %212, %145 : vector<8x128xf32>
    %266 = arith.mulf %184, %236 : vector<8x128xf32>
    %267 = arith.addf %265, %266 : vector<8x128xf32>
    %268 = vector.extract_strided_slice %4 {offsets = [4, 0], sizes = [1, 128], strides = [1, 1]} : vector<5x128xf32> to vector<1x128xf32>
    %269 = vector.extract_strided_slice %5 {offsets = [4, 0], sizes = [1, 128], strides = [1, 1]} : vector<5x128xf32> to vector<1x128xf32>
    %cst_69 = arith.constant dense<0.000000e+00> : vector<8xf32>
    %270 = vector.multi_reduction <add>, %267, %cst_69 [1] : vector<8x128xf32> to vector<8xf32>
    %271 = vector.shape_cast %270 : vector<8xf32> to vector<8x1xf32>
    %cst_70 = arith.constant 1.280000e+02 : f32
    %272 = vector.broadcast %cst_70 : f32 to vector<8x1xf32>
    %273 = arith.divf %271, %272 : vector<8x1xf32>
    %274 = vector.broadcast %273 : vector<8x1xf32> to vector<8x128xf32>
    %275 = arith.subf %267, %274 : vector<8x128xf32>
    %276 = arith.mulf %275, %275 : vector<8x128xf32>
    %cst_71 = arith.constant dense<0.000000e+00> : vector<8xf32>
    %277 = vector.multi_reduction <add>, %276, %cst_71 [1] : vector<8x128xf32> to vector<8xf32>
    %278 = vector.shape_cast %277 : vector<8xf32> to vector<8x1xf32>
    %cst_72 = arith.constant 1.280000e+02 : f32
    %279 = vector.broadcast %cst_72 : f32 to vector<8x1xf32>
    %280 = arith.divf %278, %279 : vector<8x1xf32>
    %cst_73 = arith.constant 9.99999974E-6 : f32
    %281 = vector.broadcast %cst_73 : f32 to vector<8x1xf32>
    %282 = arith.addf %280, %281 : vector<8x1xf32>
    %283 = math.rsqrt %282 : vector<8x1xf32>
    %284 = vector.broadcast %283 : vector<8x1xf32> to vector<8x128xf32>
    %285 = arith.mulf %275, %284 : vector<8x128xf32>
    %286 = vector.broadcast %268 : vector<1x128xf32> to vector<8x128xf32>
    %287 = arith.mulf %285, %286 : vector<8x128xf32>
    %288 = vector.broadcast %269 : vector<1x128xf32> to vector<8x128xf32>
    %289 = arith.addf %287, %288 : vector<8x128xf32>
    %290 = math.tanh %289 : vector<8x128xf32>
    %291 = arith.mulf %264, %290 : vector<8x128xf32>
    %292 = arith.index_cast %c1_i32 : i32 to index
    %c0_74 = arith.constant 0 : index
    %c0_75 = arith.constant 0 : index
    %293 = vector.load %arg8[%292, %c0_74, %c0_75] : memref<6x8x128xf32, #tpu.memory_space<vmem>>, vector<1x8x128xf32>
    %294 = vector.shape_cast %293 : vector<1x8x128xf32> to vector<8x128xf32>
    %295 = vector.shape_cast %291 : vector<8x128xf32> to vector<1x8x128xf32>
    tpu.vector_store %arg8[%292, %c0_74, %c0_75], %295 {strides = array<i32>} : memref<6x8x128xf32, #tpu.memory_space<vmem>>, vector<1x8x128xf32>,
    %c2_i32 = arith.constant 2 : i32
    %296 = arith.index_cast %c2_i32 : i32 to index
    %c0_76 = arith.constant 0 : index
    %c0_77 = arith.constant 0 : index
    %297 = vector.load %arg2[%296, %c0_76, %c0_77] : memref<6x8x512xf32, #tpu.memory_space<vmem>>, vector<1x8x512xf32>
    %298 = vector.shape_cast %297 : vector<1x8x512xf32> to vector<8x512xf32>
    %cst_78 = arith.constant dense<0.000000e+00> : vector<8x512xf32>
    %299 = tpu.matmul %291, %3, %cst_78 {dimension_numbers = #tpu.dot_dimension_numbers<[1], [0], [0], [1], [0, 0, 1, 1], [], []>} : vector<8x128xf32>, vector<128x512xf32>, vector<8x512xf32> -> vector<8x512xf32>
    %300 = arith.addf %298, %299 : vector<8x512xf32>
    %301 = vector.extract_strided_slice %300 {offsets = [0, 0], sizes = [8, 128], strides = [1, 1]} : vector<8x512xf32> to vector<8x128xf32>
    %302 = vector.extract_strided_slice %4 {offsets = [0, 0], sizes = [1, 128], strides = [1, 1]} : vector<5x128xf32> to vector<1x128xf32>
    %303 = vector.extract_strided_slice %5 {offsets = [0, 0], sizes = [1, 128], strides = [1, 1]} : vector<5x128xf32> to vector<1x128xf32>
    %cst_79 = arith.constant dense<0.000000e+00> : vector<8xf32>
    %304 = vector.multi_reduction <add>, %301, %cst_79 [1] : vector<8x128xf32> to vector<8xf32>
    %305 = vector.shape_cast %304 : vector<8xf32> to vector<8x1xf32>
    %cst_80 = arith.constant 1.280000e+02 : f32
    %306 = vector.broadcast %cst_80 : f32 to vector<8x1xf32>
    %307 = arith.divf %305, %306 : vector<8x1xf32>
    %308 = vector.broadcast %307 : vector<8x1xf32> to vector<8x128xf32>
    %309 = arith.subf %301, %308 : vector<8x128xf32>
    %310 = arith.mulf %309, %309 : vector<8x128xf32>
    %cst_81 = arith.constant dense<0.000000e+00> : vector<8xf32>
    %311 = vector.multi_reduction <add>, %310, %cst_81 [1] : vector<8x128xf32> to vector<8xf32>
    %312 = vector.shape_cast %311 : vector<8xf32> to vector<8x1xf32>
    %cst_82 = arith.constant 1.280000e+02 : f32
    %313 = vector.broadcast %cst_82 : f32 to vector<8x1xf32>
    %314 = arith.divf %312, %313 : vector<8x1xf32>
    %cst_83 = arith.constant 9.99999974E-6 : f32
    %315 = vector.broadcast %cst_83 : f32 to vector<8x1xf32>
    %316 = arith.addf %314, %315 : vector<8x1xf32>
    %317 = math.rsqrt %316 : vector<8x1xf32>
    %318 = vector.broadcast %317 : vector<8x1xf32> to vector<8x128xf32>
    %319 = arith.mulf %309, %318 : vector<8x128xf32>
    %320 = vector.broadcast %302 : vector<1x128xf32> to vector<8x128xf32>
    %321 = arith.mulf %319, %320 : vector<8x128xf32>
    %322 = vector.broadcast %303 : vector<1x128xf32> to vector<8x128xf32>
    %323 = arith.addf %321, %322 : vector<8x128xf32>
    %324 = arith.negf %323 : vector<8x128xf32>
    %325 = math.exp %324 : vector<8x128xf32>
    %cst_84 = arith.constant 1.000000e+00 : f32
    %326 = vector.broadcast %cst_84 : f32 to vector<8x128xf32>
    %327 = arith.addf %326, %325 : vector<8x128xf32>
    %328 = arith.divf %326, %327 : vector<8x128xf32>
    %329 = vector.extract_strided_slice %300 {offsets = [0, 128], sizes = [8, 128], strides = [1, 1]} : vector<8x512xf32> to vector<8x128xf32>
    %330 = vector.extract_strided_slice %4 {offsets = [1, 0], sizes = [1, 128], strides = [1, 1]} : vector<5x128xf32> to vector<1x128xf32>
    %331 = vector.extract_strided_slice %5 {offsets = [1, 0], sizes = [1, 128], strides = [1, 1]} : vector<5x128xf32> to vector<1x128xf32>
    %cst_85 = arith.constant dense<0.000000e+00> : vector<8xf32>
    %332 = vector.multi_reduction <add>, %329, %cst_85 [1] : vector<8x128xf32> to vector<8xf32>
    %333 = vector.shape_cast %332 : vector<8xf32> to vector<8x1xf32>
    %cst_86 = arith.constant 1.280000e+02 : f32
    %334 = vector.broadcast %cst_86 : f32 to vector<8x1xf32>
    %335 = arith.divf %333, %334 : vector<8x1xf32>
    %336 = vector.broadcast %335 : vector<8x1xf32> to vector<8x128xf32>
    %337 = arith.subf %329, %336 : vector<8x128xf32>
    %338 = arith.mulf %337, %337 : vector<8x128xf32>
    %cst_87 = arith.constant dense<0.000000e+00> : vector<8xf32>
    %339 = vector.multi_reduction <add>, %338, %cst_87 [1] : vector<8x128xf32> to vector<8xf32>
    %340 = vector.shape_cast %339 : vector<8xf32> to vector<8x1xf32>
    %cst_88 = arith.constant 1.280000e+02 : f32
    %341 = vector.broadcast %cst_88 : f32 to vector<8x1xf32>
    %342 = arith.divf %340, %341 : vector<8x1xf32>
    %cst_89 = arith.constant 9.99999974E-6 : f32
    %343 = vector.broadcast %cst_89 : f32 to vector<8x1xf32>
    %344 = arith.addf %342, %343 : vector<8x1xf32>
    %345 = math.rsqrt %344 : vector<8x1xf32>
    %346 = vector.broadcast %345 : vector<8x1xf32> to vector<8x128xf32>
    %347 = arith.mulf %337, %346 : vector<8x128xf32>
    %348 = vector.broadcast %330 : vector<1x128xf32> to vector<8x128xf32>
    %349 = arith.mulf %347, %348 : vector<8x128xf32>
    %350 = vector.broadcast %331 : vector<1x128xf32> to vector<8x128xf32>
    %351 = arith.addf %349, %350 : vector<8x128xf32>
    %352 = arith.negf %351 : vector<8x128xf32>
    %353 = math.exp %352 : vector<8x128xf32>
    %cst_90 = arith.constant 1.000000e+00 : f32
    %354 = vector.broadcast %cst_90 : f32 to vector<8x128xf32>
    %355 = arith.addf %354, %353 : vector<8x128xf32>
    %356 = arith.divf %354, %355 : vector<8x128xf32>
    %357 = vector.extract_strided_slice %300 {offsets = [0, 256], sizes = [8, 128], strides = [1, 1]} : vector<8x512xf32> to vector<8x128xf32>
    %358 = vector.extract_strided_slice %4 {offsets = [2, 0], sizes = [1, 128], strides = [1, 1]} : vector<5x128xf32> to vector<1x128xf32>
    %359 = vector.extract_strided_slice %5 {offsets = [2, 0], sizes = [1, 128], strides = [1, 1]} : vector<5x128xf32> to vector<1x128xf32>
    %cst_91 = arith.constant dense<0.000000e+00> : vector<8xf32>
    %360 = vector.multi_reduction <add>, %357, %cst_91 [1] : vector<8x128xf32> to vector<8xf32>
    %361 = vector.shape_cast %360 : vector<8xf32> to vector<8x1xf32>
    %cst_92 = arith.constant 1.280000e+02 : f32
    %362 = vector.broadcast %cst_92 : f32 to vector<8x1xf32>
    %363 = arith.divf %361, %362 : vector<8x1xf32>
    %364 = vector.broadcast %363 : vector<8x1xf32> to vector<8x128xf32>
    %365 = arith.subf %357, %364 : vector<8x128xf32>
    %366 = arith.mulf %365, %365 : vector<8x128xf32>
    %cst_93 = arith.constant dense<0.000000e+00> : vector<8xf32>
    %367 = vector.multi_reduction <add>, %366, %cst_93 [1] : vector<8x128xf32> to vector<8xf32>
    %368 = vector.shape_cast %367 : vector<8xf32> to vector<8x1xf32>
    %cst_94 = arith.constant 1.280000e+02 : f32
    %369 = vector.broadcast %cst_94 : f32 to vector<8x1xf32>
    %370 = arith.divf %368, %369 : vector<8x1xf32>
    %cst_95 = arith.constant 9.99999974E-6 : f32
    %371 = vector.broadcast %cst_95 : f32 to vector<8x1xf32>
    %372 = arith.addf %370, %371 : vector<8x1xf32>
    %373 = math.rsqrt %372 : vector<8x1xf32>
    %374 = vector.broadcast %373 : vector<8x1xf32> to vector<8x128xf32>
    %375 = arith.mulf %365, %374 : vector<8x128xf32>
    %376 = vector.broadcast %358 : vector<1x128xf32> to vector<8x128xf32>
    %377 = arith.mulf %375, %376 : vector<8x128xf32>
    %378 = vector.broadcast %359 : vector<1x128xf32> to vector<8x128xf32>
    %379 = arith.addf %377, %378 : vector<8x128xf32>
    %380 = math.tanh %379 : vector<8x128xf32>
    %381 = vector.extract_strided_slice %300 {offsets = [0, 384], sizes = [8, 128], strides = [1, 1]} : vector<8x512xf32> to vector<8x128xf32>
    %382 = vector.extract_strided_slice %4 {offsets = [3, 0], sizes = [1, 128], strides = [1, 1]} : vector<5x128xf32> to vector<1x128xf32>
    %383 = vector.extract_strided_slice %5 {offsets = [3, 0], sizes = [1, 128], strides = [1, 1]} : vector<5x128xf32> to vector<1x128xf32>
    %cst_96 = arith.constant dense<0.000000e+00> : vector<8xf32>
    %384 = vector.multi_reduction <add>, %381, %cst_96 [1] : vector<8x128xf32> to vector<8xf32>
    %385 = vector.shape_cast %384 : vector<8xf32> to vector<8x1xf32>
    %cst_97 = arith.constant 1.280000e+02 : f32
    %386 = vector.broadcast %cst_97 : f32 to vector<8x1xf32>
    %387 = arith.divf %385, %386 : vector<8x1xf32>
    %388 = vector.broadcast %387 : vector<8x1xf32> to vector<8x128xf32>
    %389 = arith.subf %381, %388 : vector<8x128xf32>
    %390 = arith.mulf %389, %389 : vector<8x128xf32>
    %cst_98 = arith.constant dense<0.000000e+00> : vector<8xf32>
    %391 = vector.multi_reduction <add>, %390, %cst_98 [1] : vector<8x128xf32> to vector<8xf32>
    %392 = vector.shape_cast %391 : vector<8xf32> to vector<8x1xf32>
    %cst_99 = arith.constant 1.280000e+02 : f32
    %393 = vector.broadcast %cst_99 : f32 to vector<8x1xf32>
    %394 = arith.divf %392, %393 : vector<8x1xf32>
    %cst_100 = arith.constant 9.99999974E-6 : f32
    %395 = vector.broadcast %cst_100 : f32 to vector<8x1xf32>
    %396 = arith.addf %394, %395 : vector<8x1xf32>
    %397 = math.rsqrt %396 : vector<8x1xf32>
    %398 = vector.broadcast %397 : vector<8x1xf32> to vector<8x128xf32>
    %399 = arith.mulf %389, %398 : vector<8x128xf32>
    %400 = vector.broadcast %382 : vector<1x128xf32> to vector<8x128xf32>
    %401 = arith.mulf %399, %400 : vector<8x128xf32>
    %402 = vector.broadcast %383 : vector<1x128xf32> to vector<8x128xf32>
    %403 = arith.addf %401, %402 : vector<8x128xf32>
    %404 = arith.negf %403 : vector<8x128xf32>
    %405 = math.exp %404 : vector<8x128xf32>
    %cst_101 = arith.constant 1.000000e+00 : f32
    %406 = vector.broadcast %cst_101 : f32 to vector<8x128xf32>
    %407 = arith.addf %406, %405 : vector<8x128xf32>
    %408 = arith.divf %406, %407 : vector<8x128xf32>
    %409 = arith.mulf %356, %289 : vector<8x128xf32>
    %410 = arith.mulf %328, %380 : vector<8x128xf32>
    %411 = arith.addf %409, %410 : vector<8x128xf32>
    %412 = vector.extract_strided_slice %4 {offsets = [4, 0], sizes = [1, 128], strides = [1, 1]} : vector<5x128xf32> to vector<1x128xf32>
    %413 = vector.extract_strided_slice %5 {offsets = [4, 0], sizes = [1, 128], strides = [1, 1]} : vector<5x128xf32> to vector<1x128xf32>
    %cst_102 = arith.constant dense<0.000000e+00> : vector<8xf32>
    %414 = vector.multi_reduction <add>, %411, %cst_102 [1] : vector<8x128xf32> to vector<8xf32>
    %415 = vector.shape_cast %414 : vector<8xf32> to vector<8x1xf32>
    %cst_103 = arith.constant 1.280000e+02 : f32
    %416 = vector.broadcast %cst_103 : f32 to vector<8x1xf32>
    %417 = arith.divf %415, %416 : vector<8x1xf32>
    %418 = vector.broadcast %417 : vector<8x1xf32> to vector<8x128xf32>
    %419 = arith.subf %411, %418 : vector<8x128xf32>
    %420 = arith.mulf %419, %419 : vector<8x128xf32>
    %cst_104 = arith.constant dense<0.000000e+00> : vector<8xf32>
    %421 = vector.multi_reduction <add>, %420, %cst_104 [1] : vector<8x128xf32> to vector<8xf32>
    %422 = vector.shape_cast %421 : vector<8xf32> to vector<8x1xf32>
    %cst_105 = arith.constant 1.280000e+02 : f32
    %423 = vector.broadcast %cst_105 : f32 to vector<8x1xf32>
    %424 = arith.divf %422, %423 : vector<8x1xf32>
    %cst_106 = arith.constant 9.99999974E-6 : f32
    %425 = vector.broadcast %cst_106 : f32 to vector<8x1xf32>
    %426 = arith.addf %424, %425 : vector<8x1xf32>
    %427 = math.rsqrt %426 : vector<8x1xf32>
    %428 = vector.broadcast %427 : vector<8x1xf32> to vector<8x128xf32>
    %429 = arith.mulf %419, %428 : vector<8x128xf32>
    %430 = vector.broadcast %412 : vector<1x128xf32> to vector<8x128xf32>
    %431 = arith.mulf %429, %430 : vector<8x128xf32>
    %432 = vector.broadcast %413 : vector<1x128xf32> to vector<8x128xf32>
    %433 = arith.addf %431, %432 : vector<8x128xf32>
    %434 = math.tanh %433 : vector<8x128xf32>
    %435 = arith.mulf %408, %434 : vector<8x128xf32>
    %436 = arith.index_cast %c2_i32 : i32 to index
    %c0_107 = arith.constant 0 : index
    %c0_108 = arith.constant 0 : index
    %437 = vector.load %arg8[%436, %c0_107, %c0_108] : memref<6x8x128xf32, #tpu.memory_space<vmem>>, vector<1x8x128xf32>
    %438 = vector.shape_cast %437 : vector<1x8x128xf32> to vector<8x128xf32>
    %439 = vector.shape_cast %435 : vector<8x128xf32> to vector<1x8x128xf32>
    tpu.vector_store %arg8[%436, %c0_107, %c0_108], %439 {strides = array<i32>} : memref<6x8x128xf32, #tpu.memory_space<vmem>>, vector<1x8x128xf32>,
    %c3_i32 = arith.constant 3 : i32
    %440 = arith.index_cast %c3_i32 : i32 to index
    %c0_109 = arith.constant 0 : index
    %c0_110 = arith.constant 0 : index
    %441 = vector.load %arg2[%440, %c0_109, %c0_110] : memref<6x8x512xf32, #tpu.memory_space<vmem>>, vector<1x8x512xf32>
    %442 = vector.shape_cast %441 : vector<1x8x512xf32> to vector<8x512xf32>
    %cst_111 = arith.constant dense<0.000000e+00> : vector<8x512xf32>
    %443 = tpu.matmul %435, %3, %cst_111 {dimension_numbers = #tpu.dot_dimension_numbers<[1], [0], [0], [1], [0, 0, 1, 1], [], []>} : vector<8x128xf32>, vector<128x512xf32>, vector<8x512xf32> -> vector<8x512xf32>
    %444 = arith.addf %442, %443 : vector<8x512xf32>
    %445 = vector.extract_strided_slice %444 {offsets = [0, 0], sizes = [8, 128], strides = [1, 1]} : vector<8x512xf32> to vector<8x128xf32>
    %446 = vector.extract_strided_slice %4 {offsets = [0, 0], sizes = [1, 128], strides = [1, 1]} : vector<5x128xf32> to vector<1x128xf32>
    %447 = vector.extract_strided_slice %5 {offsets = [0, 0], sizes = [1, 128], strides = [1, 1]} : vector<5x128xf32> to vector<1x128xf32>
    %cst_112 = arith.constant dense<0.000000e+00> : vector<8xf32>
    %448 = vector.multi_reduction <add>, %445, %cst_112 [1] : vector<8x128xf32> to vector<8xf32>
    %449 = vector.shape_cast %448 : vector<8xf32> to vector<8x1xf32>
    %cst_113 = arith.constant 1.280000e+02 : f32
    %450 = vector.broadcast %cst_113 : f32 to vector<8x1xf32>
    %451 = arith.divf %449, %450 : vector<8x1xf32>
    %452 = vector.broadcast %451 : vector<8x1xf32> to vector<8x128xf32>
    %453 = arith.subf %445, %452 : vector<8x128xf32>
    %454 = arith.mulf %453, %453 : vector<8x128xf32>
    %cst_114 = arith.constant dense<0.000000e+00> : vector<8xf32>
    %455 = vector.multi_reduction <add>, %454, %cst_114 [1] : vector<8x128xf32> to vector<8xf32>
    %456 = vector.shape_cast %455 : vector<8xf32> to vector<8x1xf32>
    %cst_115 = arith.constant 1.280000e+02 : f32
    %457 = vector.broadcast %cst_115 : f32 to vector<8x1xf32>
    %458 = arith.divf %456, %457 : vector<8x1xf32>
    %cst_116 = arith.constant 9.99999974E-6 : f32
    %459 = vector.broadcast %cst_116 : f32 to vector<8x1xf32>
    %460 = arith.addf %458, %459 : vector<8x1xf32>
    %461 = math.rsqrt %460 : vector<8x1xf32>
    %462 = vector.broadcast %461 : vector<8x1xf32> to vector<8x128xf32>
    %463 = arith.mulf %453, %462 : vector<8x128xf32>
    %464 = vector.broadcast %446 : vector<1x128xf32> to vector<8x128xf32>
    %465 = arith.mulf %463, %464 : vector<8x128xf32>
    %466 = vector.broadcast %447 : vector<1x128xf32> to vector<8x128xf32>
    %467 = arith.addf %465, %466 : vector<8x128xf32>
    %468 = arith.negf %467 : vector<8x128xf32>
    %469 = math.exp %468 : vector<8x128xf32>
    %cst_117 = arith.constant 1.000000e+00 : f32
    %470 = vector.broadcast %cst_117 : f32 to vector<8x128xf32>
    %471 = arith.addf %470, %469 : vector<8x128xf32>
    %472 = arith.divf %470, %471 : vector<8x128xf32>
    %473 = vector.extract_strided_slice %444 {offsets = [0, 128], sizes = [8, 128], strides = [1, 1]} : vector<8x512xf32> to vector<8x128xf32>
    %474 = vector.extract_strided_slice %4 {offsets = [1, 0], sizes = [1, 128], strides = [1, 1]} : vector<5x128xf32> to vector<1x128xf32>
    %475 = vector.extract_strided_slice %5 {offsets = [1, 0], sizes = [1, 128], strides = [1, 1]} : vector<5x128xf32> to vector<1x128xf32>
    %cst_118 = arith.constant dense<0.000000e+00> : vector<8xf32>
    %476 = vector.multi_reduction <add>, %473, %cst_118 [1] : vector<8x128xf32> to vector<8xf32>
    %477 = vector.shape_cast %476 : vector<8xf32> to vector<8x1xf32>
    %cst_119 = arith.constant 1.280000e+02 : f32
    %478 = vector.broadcast %cst_119 : f32 to vector<8x1xf32>
    %479 = arith.divf %477, %478 : vector<8x1xf32>
    %480 = vector.broadcast %479 : vector<8x1xf32> to vector<8x128xf32>
    %481 = arith.subf %473, %480 : vector<8x128xf32>
    %482 = arith.mulf %481, %481 : vector<8x128xf32>
    %cst_120 = arith.constant dense<0.000000e+00> : vector<8xf32>
    %483 = vector.multi_reduction <add>, %482, %cst_120 [1] : vector<8x128xf32> to vector<8xf32>
    %484 = vector.shape_cast %483 : vector<8xf32> to vector<8x1xf32>
    %cst_121 = arith.constant 1.280000e+02 : f32
    %485 = vector.broadcast %cst_121 : f32 to vector<8x1xf32>
    %486 = arith.divf %484, %485 : vector<8x1xf32>
    %cst_122 = arith.constant 9.99999974E-6 : f32
    %487 = vector.broadcast %cst_122 : f32 to vector<8x1xf32>
    %488 = arith.addf %486, %487 : vector<8x1xf32>
    %489 = math.rsqrt %488 : vector<8x1xf32>
    %490 = vector.broadcast %489 : vector<8x1xf32> to vector<8x128xf32>
    %491 = arith.mulf %481, %490 : vector<8x128xf32>
    %492 = vector.broadcast %474 : vector<1x128xf32> to vector<8x128xf32>
    %493 = arith.mulf %491, %492 : vector<8x128xf32>
    %494 = vector.broadcast %475 : vector<1x128xf32> to vector<8x128xf32>
    %495 = arith.addf %493, %494 : vector<8x128xf32>
    %496 = arith.negf %495 : vector<8x128xf32>
    %497 = math.exp %496 : vector<8x128xf32>
    %cst_123 = arith.constant 1.000000e+00 : f32
    %498 = vector.broadcast %cst_123 : f32 to vector<8x128xf32>
    %499 = arith.addf %498, %497 : vector<8x128xf32>
    %500 = arith.divf %498, %499 : vector<8x128xf32>
    %501 = vector.extract_strided_slice %444 {offsets = [0, 256], sizes = [8, 128], strides = [1, 1]} : vector<8x512xf32> to vector<8x128xf32>
    %502 = vector.extract_strided_slice %4 {offsets = [2, 0], sizes = [1, 128], strides = [1, 1]} : vector<5x128xf32> to vector<1x128xf32>
    %503 = vector.extract_strided_slice %5 {offsets = [2, 0], sizes = [1, 128], strides = [1, 1]} : vector<5x128xf32> to vector<1x128xf32>
    %cst_124 = arith.constant dense<0.000000e+00> : vector<8xf32>
    %504 = vector.multi_reduction <add>, %501, %cst_124 [1] : vector<8x128xf32> to vector<8xf32>
    %505 = vector.shape_cast %504 : vector<8xf32> to vector<8x1xf32>
    %cst_125 = arith.constant 1.280000e+02 : f32
    %506 = vector.broadcast %cst_125 : f32 to vector<8x1xf32>
    %507 = arith.divf %505, %506 : vector<8x1xf32>
    %508 = vector.broadcast %507 : vector<8x1xf32> to vector<8x128xf32>
    %509 = arith.subf %501, %508 : vector<8x128xf32>
    %510 = arith.mulf %509, %509 : vector<8x128xf32>
    %cst_126 = arith.constant dense<0.000000e+00> : vector<8xf32>
    %511 = vector.multi_reduction <add>, %510, %cst_126 [1] : vector<8x128xf32> to vector<8xf32>
    %512 = vector.shape_cast %511 : vector<8xf32> to vector<8x1xf32>
    %cst_127 = arith.constant 1.280000e+02 : f32
    %513 = vector.broadcast %cst_127 : f32 to vector<8x1xf32>
    %514 = arith.divf %512, %513 : vector<8x1xf32>
    %cst_128 = arith.constant 9.99999974E-6 : f32
    %515 = vector.broadcast %cst_128 : f32 to vector<8x1xf32>
    %516 = arith.addf %514, %515 : vector<8x1xf32>
    %517 = math.rsqrt %516 : vector<8x1xf32>
    %518 = vector.broadcast %517 : vector<8x1xf32> to vector<8x128xf32>
    %519 = arith.mulf %509, %518 : vector<8x128xf32>
    %520 = vector.broadcast %502 : vector<1x128xf32> to vector<8x128xf32>
    %521 = arith.mulf %519, %520 : vector<8x128xf32>
    %522 = vector.broadcast %503 : vector<1x128xf32> to vector<8x128xf32>
    %523 = arith.addf %521, %522 : vector<8x128xf32>
    %524 = math.tanh %523 : vector<8x128xf32>
    %525 = vector.extract_strided_slice %444 {offsets = [0, 384], sizes = [8, 128], strides = [1, 1]} : vector<8x512xf32> to vector<8x128xf32>
    %526 = vector.extract_strided_slice %4 {offsets = [3, 0], sizes = [1, 128], strides = [1, 1]} : vector<5x128xf32> to vector<1x128xf32>
    %527 = vector.extract_strided_slice %5 {offsets = [3, 0], sizes = [1, 128], strides = [1, 1]} : vector<5x128xf32> to vector<1x128xf32>
    %cst_129 = arith.constant dense<0.000000e+00> : vector<8xf32>
    %528 = vector.multi_reduction <add>, %525, %cst_129 [1] : vector<8x128xf32> to vector<8xf32>
    %529 = vector.shape_cast %528 : vector<8xf32> to vector<8x1xf32>
    %cst_130 = arith.constant 1.280000e+02 : f32
    %530 = vector.broadcast %cst_130 : f32 to vector<8x1xf32>
    %531 = arith.divf %529, %530 : vector<8x1xf32>
    %532 = vector.broadcast %531 : vector<8x1xf32> to vector<8x128xf32>
    %533 = arith.subf %525, %532 : vector<8x128xf32>
    %534 = arith.mulf %533, %533 : vector<8x128xf32>
    %cst_131 = arith.constant dense<0.000000e+00> : vector<8xf32>
    %535 = vector.multi_reduction <add>, %534, %cst_131 [1] : vector<8x128xf32> to vector<8xf32>
    %536 = vector.shape_cast %535 : vector<8xf32> to vector<8x1xf32>
    %cst_132 = arith.constant 1.280000e+02 : f32
    %537 = vector.broadcast %cst_132 : f32 to vector<8x1xf32>
    %538 = arith.divf %536, %537 : vector<8x1xf32>
    %cst_133 = arith.constant 9.99999974E-6 : f32
    %539 = vector.broadcast %cst_133 : f32 to vector<8x1xf32>
    %540 = arith.addf %538, %539 : vector<8x1xf32>
    %541 = math.rsqrt %540 : vector<8x1xf32>
    %542 = vector.broadcast %541 : vector<8x1xf32> to vector<8x128xf32>
    %543 = arith.mulf %533, %542 : vector<8x128xf32>
    %544 = vector.broadcast %526 : vector<1x128xf32> to vector<8x128xf32>
    %545 = arith.mulf %543, %544 : vector<8x128xf32>
    %546 = vector.broadcast %527 : vector<1x128xf32> to vector<8x128xf32>
    %547 = arith.addf %545, %546 : vector<8x128xf32>
    %548 = arith.negf %547 : vector<8x128xf32>
    %549 = math.exp %548 : vector<8x128xf32>
    %cst_134 = arith.constant 1.000000e+00 : f32
    %550 = vector.broadcast %cst_134 : f32 to vector<8x128xf32>
    %551 = arith.addf %550, %549 : vector<8x128xf32>
    %552 = arith.divf %550, %551 : vector<8x128xf32>
    %553 = arith.mulf %500, %433 : vector<8x128xf32>
    %554 = arith.mulf %472, %524 : vector<8x128xf32>
    %555 = arith.addf %553, %554 : vector<8x128xf32>
    %556 = vector.extract_strided_slice %4 {offsets = [4, 0], sizes = [1, 128], strides = [1, 1]} : vector<5x128xf32> to vector<1x128xf32>
    %557 = vector.extract_strided_slice %5 {offsets = [4, 0], sizes = [1, 128], strides = [1, 1]} : vector<5x128xf32> to vector<1x128xf32>
    %cst_135 = arith.constant dense<0.000000e+00> : vector<8xf32>
    %558 = vector.multi_reduction <add>, %555, %cst_135 [1] : vector<8x128xf32> to vector<8xf32>
    %559 = vector.shape_cast %558 : vector<8xf32> to vector<8x1xf32>
    %cst_136 = arith.constant 1.280000e+02 : f32
    %560 = vector.broadcast %cst_136 : f32 to vector<8x1xf32>
    %561 = arith.divf %559, %560 : vector<8x1xf32>
    %562 = vector.broadcast %561 : vector<8x1xf32> to vector<8x128xf32>
    %563 = arith.subf %555, %562 : vector<8x128xf32>
    %564 = arith.mulf %563, %563 : vector<8x128xf32>
    %cst_137 = arith.constant dense<0.000000e+00> : vector<8xf32>
    %565 = vector.multi_reduction <add>, %564, %cst_137 [1] : vector<8x128xf32> to vector<8xf32>
    %566 = vector.shape_cast %565 : vector<8xf32> to vector<8x1xf32>
    %cst_138 = arith.constant 1.280000e+02 : f32
    %567 = vector.broadcast %cst_138 : f32 to vector<8x1xf32>
    %568 = arith.divf %566, %567 : vector<8x1xf32>
    %cst_139 = arith.constant 9.99999974E-6 : f32
    %569 = vector.broadcast %cst_139 : f32 to vector<8x1xf32>
    %570 = arith.addf %568, %569 : vector<8x1xf32>
    %571 = math.rsqrt %570 : vector<8x1xf32>
    %572 = vector.broadcast %571 : vector<8x1xf32> to vector<8x128xf32>
    %573 = arith.mulf %563, %572 : vector<8x128xf32>
    %574 = vector.broadcast %556 : vector<1x128xf32> to vector<8x128xf32>
    %575 = arith.mulf %573, %574 : vector<8x128xf32>
    %576 = vector.broadcast %557 : vector<1x128xf32> to vector<8x128xf32>
    %577 = arith.addf %575, %576 : vector<8x128xf32>
    %578 = math.tanh %577 : vector<8x128xf32>
    %579 = arith.mulf %552, %578 : vector<8x128xf32>
    %580 = arith.index_cast %c3_i32 : i32 to index
    %c0_140 = arith.constant 0 : index
    %c0_141 = arith.constant 0 : index
    %581 = vector.load %arg8[%580, %c0_140, %c0_141] : memref<6x8x128xf32, #tpu.memory_space<vmem>>, vector<1x8x128xf32>
    %582 = vector.shape_cast %581 : vector<1x8x128xf32> to vector<8x128xf32>
    %583 = vector.shape_cast %579 : vector<8x128xf32> to vector<1x8x128xf32>
    tpu.vector_store %arg8[%580, %c0_140, %c0_141], %583 {strides = array<i32>} : memref<6x8x128xf32, #tpu.memory_space<vmem>>, vector<1x8x128xf32>,
    %c4_i32 = arith.constant 4 : i32
    %584 = arith.index_cast %c4_i32 : i32 to index
    %c0_142 = arith.constant 0 : index
    %c0_143 = arith.constant 0 : index
    %585 = vector.load %arg2[%584, %c0_142, %c0_143] : memref<6x8x512xf32, #tpu.memory_space<vmem>>, vector<1x8x512xf32>
    %586 = vector.shape_cast %585 : vector<1x8x512xf32> to vector<8x512xf32>
    %cst_144 = arith.constant dense<0.000000e+00> : vector<8x512xf32>
    %587 = tpu.matmul %579, %3, %cst_144 {dimension_numbers = #tpu.dot_dimension_numbers<[1], [0], [0], [1], [0, 0, 1, 1], [], []>} : vector<8x128xf32>, vector<128x512xf32>, vector<8x512xf32> -> vector<8x512xf32>
    %588 = arith.addf %586, %587 : vector<8x512xf32>
    %589 = vector.extract_strided_slice %588 {offsets = [0, 0], sizes = [8, 128], strides = [1, 1]} : vector<8x512xf32> to vector<8x128xf32>
    %590 = vector.extract_strided_slice %4 {offsets = [0, 0], sizes = [1, 128], strides = [1, 1]} : vector<5x128xf32> to vector<1x128xf32>
    %591 = vector.extract_strided_slice %5 {offsets = [0, 0], sizes = [1, 128], strides = [1, 1]} : vector<5x128xf32> to vector<1x128xf32>
    %cst_145 = arith.constant dense<0.000000e+00> : vector<8xf32>
    %592 = vector.multi_reduction <add>, %589, %cst_145 [1] : vector<8x128xf32> to vector<8xf32>
    %593 = vector.shape_cast %592 : vector<8xf32> to vector<8x1xf32>
    %cst_146 = arith.constant 1.280000e+02 : f32
    %594 = vector.broadcast %cst_146 : f32 to vector<8x1xf32>
    %595 = arith.divf %593, %594 : vector<8x1xf32>
    %596 = vector.broadcast %595 : vector<8x1xf32> to vector<8x128xf32>
    %597 = arith.subf %589, %596 : vector<8x128xf32>
    %598 = arith.mulf %597, %597 : vector<8x128xf32>
    %cst_147 = arith.constant dense<0.000000e+00> : vector<8xf32>
    %599 = vector.multi_reduction <add>, %598, %cst_147 [1] : vector<8x128xf32> to vector<8xf32>
    %600 = vector.shape_cast %599 : vector<8xf32> to vector<8x1xf32>
    %cst_148 = arith.constant 1.280000e+02 : f32
    %601 = vector.broadcast %cst_148 : f32 to vector<8x1xf32>
    %602 = arith.divf %600, %601 : vector<8x1xf32>
    %cst_149 = arith.constant 9.99999974E-6 : f32
    %603 = vector.broadcast %cst_149 : f32 to vector<8x1xf32>
    %604 = arith.addf %602, %603 : vector<8x1xf32>
    %605 = math.rsqrt %604 : vector<8x1xf32>
    %606 = vector.broadcast %605 : vector<8x1xf32> to vector<8x128xf32>
    %607 = arith.mulf %597, %606 : vector<8x128xf32>
    %608 = vector.broadcast %590 : vector<1x128xf32> to vector<8x128xf32>
    %609 = arith.mulf %607, %608 : vector<8x128xf32>
    %610 = vector.broadcast %591 : vector<1x128xf32> to vector<8x128xf32>
    %611 = arith.addf %609, %610 : vector<8x128xf32>
    %612 = arith.negf %611 : vector<8x128xf32>
    %613 = math.exp %612 : vector<8x128xf32>
    %cst_150 = arith.constant 1.000000e+00 : f32
    %614 = vector.broadcast %cst_150 : f32 to vector<8x128xf32>
    %615 = arith.addf %614, %613 : vector<8x128xf32>
    %616 = arith.divf %614, %615 : vector<8x128xf32>
    %617 = vector.extract_strided_slice %588 {offsets = [0, 128], sizes = [8, 128], strides = [1, 1]} : vector<8x512xf32> to vector<8x128xf32>
    %618 = vector.extract_strided_slice %4 {offsets = [1, 0], sizes = [1, 128], strides = [1, 1]} : vector<5x128xf32> to vector<1x128xf32>
    %619 = vector.extract_strided_slice %5 {offsets = [1, 0], sizes = [1, 128], strides = [1, 1]} : vector<5x128xf32> to vector<1x128xf32>
    %cst_151 = arith.constant dense<0.000000e+00> : vector<8xf32>
    %620 = vector.multi_reduction <add>, %617, %cst_151 [1] : vector<8x128xf32> to vector<8xf32>
    %621 = vector.shape_cast %620 : vector<8xf32> to vector<8x1xf32>
    %cst_152 = arith.constant 1.280000e+02 : f32
    %622 = vector.broadcast %cst_152 : f32 to vector<8x1xf32>
    %623 = arith.divf %621, %622 : vector<8x1xf32>
    %624 = vector.broadcast %623 : vector<8x1xf32> to vector<8x128xf32>
    %625 = arith.subf %617, %624 : vector<8x128xf32>
    %626 = arith.mulf %625, %625 : vector<8x128xf32>
    %cst_153 = arith.constant dense<0.000000e+00> : vector<8xf32>
    %627 = vector.multi_reduction <add>, %626, %cst_153 [1] : vector<8x128xf32> to vector<8xf32>
    %628 = vector.shape_cast %627 : vector<8xf32> to vector<8x1xf32>
    %cst_154 = arith.constant 1.280000e+02 : f32
    %629 = vector.broadcast %cst_154 : f32 to vector<8x1xf32>
    %630 = arith.divf %628, %629 : vector<8x1xf32>
    %cst_155 = arith.constant 9.99999974E-6 : f32
    %631 = vector.broadcast %cst_155 : f32 to vector<8x1xf32>
    %632 = arith.addf %630, %631 : vector<8x1xf32>
    %633 = math.rsqrt %632 : vector<8x1xf32>
    %634 = vector.broadcast %633 : vector<8x1xf32> to vector<8x128xf32>
    %635 = arith.mulf %625, %634 : vector<8x128xf32>
    %636 = vector.broadcast %618 : vector<1x128xf32> to vector<8x128xf32>
    %637 = arith.mulf %635, %636 : vector<8x128xf32>
    %638 = vector.broadcast %619 : vector<1x128xf32> to vector<8x128xf32>
    %639 = arith.addf %637, %638 : vector<8x128xf32>
    %640 = arith.negf %639 : vector<8x128xf32>
    %641 = math.exp %640 : vector<8x128xf32>
    %cst_156 = arith.constant 1.000000e+00 : f32
    %642 = vector.broadcast %cst_156 : f32 to vector<8x128xf32>
    %643 = arith.addf %642, %641 : vector<8x128xf32>
    %644 = arith.divf %642, %643 : vector<8x128xf32>
    %645 = vector.extract_strided_slice %588 {offsets = [0, 256], sizes = [8, 128], strides = [1, 1]} : vector<8x512xf32> to vector<8x128xf32>
    %646 = vector.extract_strided_slice %4 {offsets = [2, 0], sizes = [1, 128], strides = [1, 1]} : vector<5x128xf32> to vector<1x128xf32>
    %647 = vector.extract_strided_slice %5 {offsets = [2, 0], sizes = [1, 128], strides = [1, 1]} : vector<5x128xf32> to vector<1x128xf32>
    %cst_157 = arith.constant dense<0.000000e+00> : vector<8xf32>
    %648 = vector.multi_reduction <add>, %645, %cst_157 [1] : vector<8x128xf32> to vector<8xf32>
    %649 = vector.shape_cast %648 : vector<8xf32> to vector<8x1xf32>
    %cst_158 = arith.constant 1.280000e+02 : f32
    %650 = vector.broadcast %cst_158 : f32 to vector<8x1xf32>
    %651 = arith.divf %649, %650 : vector<8x1xf32>
    %652 = vector.broadcast %651 : vector<8x1xf32> to vector<8x128xf32>
    %653 = arith.subf %645, %652 : vector<8x128xf32>
    %654 = arith.mulf %653, %653 : vector<8x128xf32>
    %cst_159 = arith.constant dense<0.000000e+00> : vector<8xf32>
    %655 = vector.multi_reduction <add>, %654, %cst_159 [1] : vector<8x128xf32> to vector<8xf32>
    %656 = vector.shape_cast %655 : vector<8xf32> to vector<8x1xf32>
    %cst_160 = arith.constant 1.280000e+02 : f32
    %657 = vector.broadcast %cst_160 : f32 to vector<8x1xf32>
    %658 = arith.divf %656, %657 : vector<8x1xf32>
    %cst_161 = arith.constant 9.99999974E-6 : f32
    %659 = vector.broadcast %cst_161 : f32 to vector<8x1xf32>
    %660 = arith.addf %658, %659 : vector<8x1xf32>
    %661 = math.rsqrt %660 : vector<8x1xf32>
    %662 = vector.broadcast %661 : vector<8x1xf32> to vector<8x128xf32>
    %663 = arith.mulf %653, %662 : vector<8x128xf32>
    %664 = vector.broadcast %646 : vector<1x128xf32> to vector<8x128xf32>
    %665 = arith.mulf %663, %664 : vector<8x128xf32>
    %666 = vector.broadcast %647 : vector<1x128xf32> to vector<8x128xf32>
    %667 = arith.addf %665, %666 : vector<8x128xf32>
    %668 = math.tanh %667 : vector<8x128xf32>
    %669 = vector.extract_strided_slice %588 {offsets = [0, 384], sizes = [8, 128], strides = [1, 1]} : vector<8x512xf32> to vector<8x128xf32>
    %670 = vector.extract_strided_slice %4 {offsets = [3, 0], sizes = [1, 128], strides = [1, 1]} : vector<5x128xf32> to vector<1x128xf32>
    %671 = vector.extract_strided_slice %5 {offsets = [3, 0], sizes = [1, 128], strides = [1, 1]} : vector<5x128xf32> to vector<1x128xf32>
    %cst_162 = arith.constant dense<0.000000e+00> : vector<8xf32>
    %672 = vector.multi_reduction <add>, %669, %cst_162 [1] : vector<8x128xf32> to vector<8xf32>
    %673 = vector.shape_cast %672 : vector<8xf32> to vector<8x1xf32>
    %cst_163 = arith.constant 1.280000e+02 : f32
    %674 = vector.broadcast %cst_163 : f32 to vector<8x1xf32>
    %675 = arith.divf %673, %674 : vector<8x1xf32>
    %676 = vector.broadcast %675 : vector<8x1xf32> to vector<8x128xf32>
    %677 = arith.subf %669, %676 : vector<8x128xf32>
    %678 = arith.mulf %677, %677 : vector<8x128xf32>
    %cst_164 = arith.constant dense<0.000000e+00> : vector<8xf32>
    %679 = vector.multi_reduction <add>, %678, %cst_164 [1] : vector<8x128xf32> to vector<8xf32>
    %680 = vector.shape_cast %679 : vector<8xf32> to vector<8x1xf32>
    %cst_165 = arith.constant 1.280000e+02 : f32
    %681 = vector.broadcast %cst_165 : f32 to vector<8x1xf32>
    %682 = arith.divf %680, %681 : vector<8x1xf32>
    %cst_166 = arith.constant 9.99999974E-6 : f32
    %683 = vector.broadcast %cst_166 : f32 to vector<8x1xf32>
    %684 = arith.addf %682, %683 : vector<8x1xf32>
    %685 = math.rsqrt %684 : vector<8x1xf32>
    %686 = vector.broadcast %685 : vector<8x1xf32> to vector<8x128xf32>
    %687 = arith.mulf %677, %686 : vector<8x128xf32>
    %688 = vector.broadcast %670 : vector<1x128xf32> to vector<8x128xf32>
    %689 = arith.mulf %687, %688 : vector<8x128xf32>
    %690 = vector.broadcast %671 : vector<1x128xf32> to vector<8x128xf32>
    %691 = arith.addf %689, %690 : vector<8x128xf32>
    %692 = arith.negf %691 : vector<8x128xf32>
    %693 = math.exp %692 : vector<8x128xf32>
    %cst_167 = arith.constant 1.000000e+00 : f32
    %694 = vector.broadcast %cst_167 : f32 to vector<8x128xf32>
    %695 = arith.addf %694, %693 : vector<8x128xf32>
    %696 = arith.divf %694, %695 : vector<8x128xf32>
    %697 = arith.mulf %644, %577 : vector<8x128xf32>
    %698 = arith.mulf %616, %668 : vector<8x128xf32>
    %699 = arith.addf %697, %698 : vector<8x128xf32>
    %700 = vector.extract_strided_slice %4 {offsets = [4, 0], sizes = [1, 128], strides = [1, 1]} : vector<5x128xf32> to vector<1x128xf32>
    %701 = vector.extract_strided_slice %5 {offsets = [4, 0], sizes = [1, 128], strides = [1, 1]} : vector<5x128xf32> to vector<1x128xf32>
    %cst_168 = arith.constant dense<0.000000e+00> : vector<8xf32>
    %702 = vector.multi_reduction <add>, %699, %cst_168 [1] : vector<8x128xf32> to vector<8xf32>
    %703 = vector.shape_cast %702 : vector<8xf32> to vector<8x1xf32>
    %cst_169 = arith.constant 1.280000e+02 : f32
    %704 = vector.broadcast %cst_169 : f32 to vector<8x1xf32>
    %705 = arith.divf %703, %704 : vector<8x1xf32>
    %706 = vector.broadcast %705 : vector<8x1xf32> to vector<8x128xf32>
    %707 = arith.subf %699, %706 : vector<8x128xf32>
    %708 = arith.mulf %707, %707 : vector<8x128xf32>
    %cst_170 = arith.constant dense<0.000000e+00> : vector<8xf32>
    %709 = vector.multi_reduction <add>, %708, %cst_170 [1] : vector<8x128xf32> to vector<8xf32>
    %710 = vector.shape_cast %709 : vector<8xf32> to vector<8x1xf32>
    %cst_171 = arith.constant 1.280000e+02 : f32
    %711 = vector.broadcast %cst_171 : f32 to vector<8x1xf32>
    %712 = arith.divf %710, %711 : vector<8x1xf32>
    %cst_172 = arith.constant 9.99999974E-6 : f32
    %713 = vector.broadcast %cst_172 : f32 to vector<8x1xf32>
    %714 = arith.addf %712, %713 : vector<8x1xf32>
    %715 = math.rsqrt %714 : vector<8x1xf32>
    %716 = vector.broadcast %715 : vector<8x1xf32> to vector<8x128xf32>
    %717 = arith.mulf %707, %716 : vector<8x128xf32>
    %718 = vector.broadcast %700 : vector<1x128xf32> to vector<8x128xf32>
    %719 = arith.mulf %717, %718 : vector<8x128xf32>
    %720 = vector.broadcast %701 : vector<1x128xf32> to vector<8x128xf32>
    %721 = arith.addf %719, %720 : vector<8x128xf32>
    %722 = math.tanh %721 : vector<8x128xf32>
    %723 = arith.mulf %696, %722 : vector<8x128xf32>
    %724 = arith.index_cast %c4_i32 : i32 to index
    %c0_173 = arith.constant 0 : index
    %c0_174 = arith.constant 0 : index
    %725 = vector.load %arg8[%724, %c0_173, %c0_174] : memref<6x8x128xf32, #tpu.memory_space<vmem>>, vector<1x8x128xf32>
    %726 = vector.shape_cast %725 : vector<1x8x128xf32> to vector<8x128xf32>
    %727 = vector.shape_cast %723 : vector<8x128xf32> to vector<1x8x128xf32>
    tpu.vector_store %arg8[%724, %c0_173, %c0_174], %727 {strides = array<i32>} : memref<6x8x128xf32, #tpu.memory_space<vmem>>, vector<1x8x128xf32>,
    %c5_i32 = arith.constant 5 : i32
    %728 = arith.index_cast %c5_i32 : i32 to index
    %c0_175 = arith.constant 0 : index
    %c0_176 = arith.constant 0 : index
    %729 = vector.load %arg2[%728, %c0_175, %c0_176] : memref<6x8x512xf32, #tpu.memory_space<vmem>>, vector<1x8x512xf32>
    %730 = vector.shape_cast %729 : vector<1x8x512xf32> to vector<8x512xf32>
    %cst_177 = arith.constant dense<0.000000e+00> : vector<8x512xf32>
    %731 = tpu.matmul %723, %3, %cst_177 {dimension_numbers = #tpu.dot_dimension_numbers<[1], [0], [0], [1], [0, 0, 1, 1], [], []>} : vector<8x128xf32>, vector<128x512xf32>, vector<8x512xf32> -> vector<8x512xf32>
    %732 = arith.addf %730, %731 : vector<8x512xf32>
    %733 = vector.extract_strided_slice %732 {offsets = [0, 0], sizes = [8, 128], strides = [1, 1]} : vector<8x512xf32> to vector<8x128xf32>
    %734 = vector.extract_strided_slice %4 {offsets = [0, 0], sizes = [1, 128], strides = [1, 1]} : vector<5x128xf32> to vector<1x128xf32>
    %735 = vector.extract_strided_slice %5 {offsets = [0, 0], sizes = [1, 128], strides = [1, 1]} : vector<5x128xf32> to vector<1x128xf32>
    %cst_178 = arith.constant dense<0.000000e+00> : vector<8xf32>
    %736 = vector.multi_reduction <add>, %733, %cst_178 [1] : vector<8x128xf32> to vector<8xf32>
    %737 = vector.shape_cast %736 : vector<8xf32> to vector<8x1xf32>
    %cst_179 = arith.constant 1.280000e+02 : f32
    %738 = vector.broadcast %cst_179 : f32 to vector<8x1xf32>
    %739 = arith.divf %737, %738 : vector<8x1xf32>
    %740 = vector.broadcast %739 : vector<8x1xf32> to vector<8x128xf32>
    %741 = arith.subf %733, %740 : vector<8x128xf32>
    %742 = arith.mulf %741, %741 : vector<8x128xf32>
    %cst_180 = arith.constant dense<0.000000e+00> : vector<8xf32>
    %743 = vector.multi_reduction <add>, %742, %cst_180 [1] : vector<8x128xf32> to vector<8xf32>
    %744 = vector.shape_cast %743 : vector<8xf32> to vector<8x1xf32>
    %cst_181 = arith.constant 1.280000e+02 : f32
    %745 = vector.broadcast %cst_181 : f32 to vector<8x1xf32>
    %746 = arith.divf %744, %745 : vector<8x1xf32>
    %cst_182 = arith.constant 9.99999974E-6 : f32
    %747 = vector.broadcast %cst_182 : f32 to vector<8x1xf32>
    %748 = arith.addf %746, %747 : vector<8x1xf32>
    %749 = math.rsqrt %748 : vector<8x1xf32>
    %750 = vector.broadcast %749 : vector<8x1xf32> to vector<8x128xf32>
    %751 = arith.mulf %741, %750 : vector<8x128xf32>
    %752 = vector.broadcast %734 : vector<1x128xf32> to vector<8x128xf32>
    %753 = arith.mulf %751, %752 : vector<8x128xf32>
    %754 = vector.broadcast %735 : vector<1x128xf32> to vector<8x128xf32>
    %755 = arith.addf %753, %754 : vector<8x128xf32>
    %756 = arith.negf %755 : vector<8x128xf32>
    %757 = math.exp %756 : vector<8x128xf32>
    %cst_183 = arith.constant 1.000000e+00 : f32
    %758 = vector.broadcast %cst_183 : f32 to vector<8x128xf32>
    %759 = arith.addf %758, %757 : vector<8x128xf32>
    %760 = arith.divf %758, %759 : vector<8x128xf32>
    %761 = vector.extract_strided_slice %732 {offsets = [0, 128], sizes = [8, 128], strides = [1, 1]} : vector<8x512xf32> to vector<8x128xf32>
    %762 = vector.extract_strided_slice %4 {offsets = [1, 0], sizes = [1, 128], strides = [1, 1]} : vector<5x128xf32> to vector<1x128xf32>
    %763 = vector.extract_strided_slice %5 {offsets = [1, 0], sizes = [1, 128], strides = [1, 1]} : vector<5x128xf32> to vector<1x128xf32>
    %cst_184 = arith.constant dense<0.000000e+00> : vector<8xf32>
    %764 = vector.multi_reduction <add>, %761, %cst_184 [1] : vector<8x128xf32> to vector<8xf32>
    %765 = vector.shape_cast %764 : vector<8xf32> to vector<8x1xf32>
    %cst_185 = arith.constant 1.280000e+02 : f32
    %766 = vector.broadcast %cst_185 : f32 to vector<8x1xf32>
    %767 = arith.divf %765, %766 : vector<8x1xf32>
    %768 = vector.broadcast %767 : vector<8x1xf32> to vector<8x128xf32>
    %769 = arith.subf %761, %768 : vector<8x128xf32>
    %770 = arith.mulf %769, %769 : vector<8x128xf32>
    %cst_186 = arith.constant dense<0.000000e+00> : vector<8xf32>
    %771 = vector.multi_reduction <add>, %770, %cst_186 [1] : vector<8x128xf32> to vector<8xf32>
    %772 = vector.shape_cast %771 : vector<8xf32> to vector<8x1xf32>
    %cst_187 = arith.constant 1.280000e+02 : f32
    %773 = vector.broadcast %cst_187 : f32 to vector<8x1xf32>
    %774 = arith.divf %772, %773 : vector<8x1xf32>
    %cst_188 = arith.constant 9.99999974E-6 : f32
    %775 = vector.broadcast %cst_188 : f32 to vector<8x1xf32>
    %776 = arith.addf %774, %775 : vector<8x1xf32>
    %777 = math.rsqrt %776 : vector<8x1xf32>
    %778 = vector.broadcast %777 : vector<8x1xf32> to vector<8x128xf32>
    %779 = arith.mulf %769, %778 : vector<8x128xf32>
    %780 = vector.broadcast %762 : vector<1x128xf32> to vector<8x128xf32>
    %781 = arith.mulf %779, %780 : vector<8x128xf32>
    %782 = vector.broadcast %763 : vector<1x128xf32> to vector<8x128xf32>
    %783 = arith.addf %781, %782 : vector<8x128xf32>
    %784 = arith.negf %783 : vector<8x128xf32>
    %785 = math.exp %784 : vector<8x128xf32>
    %cst_189 = arith.constant 1.000000e+00 : f32
    %786 = vector.broadcast %cst_189 : f32 to vector<8x128xf32>
    %787 = arith.addf %786, %785 : vector<8x128xf32>
    %788 = arith.divf %786, %787 : vector<8x128xf32>
    %789 = vector.extract_strided_slice %732 {offsets = [0, 256], sizes = [8, 128], strides = [1, 1]} : vector<8x512xf32> to vector<8x128xf32>
    %790 = vector.extract_strided_slice %4 {offsets = [2, 0], sizes = [1, 128], strides = [1, 1]} : vector<5x128xf32> to vector<1x128xf32>
    %791 = vector.extract_strided_slice %5 {offsets = [2, 0], sizes = [1, 128], strides = [1, 1]} : vector<5x128xf32> to vector<1x128xf32>
    %cst_190 = arith.constant dense<0.000000e+00> : vector<8xf32>
    %792 = vector.multi_reduction <add>, %789, %cst_190 [1] : vector<8x128xf32> to vector<8xf32>
    %793 = vector.shape_cast %792 : vector<8xf32> to vector<8x1xf32>
    %cst_191 = arith.constant 1.280000e+02 : f32
    %794 = vector.broadcast %cst_191 : f32 to vector<8x1xf32>
    %795 = arith.divf %793, %794 : vector<8x1xf32>
    %796 = vector.broadcast %795 : vector<8x1xf32> to vector<8x128xf32>
    %797 = arith.subf %789, %796 : vector<8x128xf32>
    %798 = arith.mulf %797, %797 : vector<8x128xf32>
    %cst_192 = arith.constant dense<0.000000e+00> : vector<8xf32>
    %799 = vector.multi_reduction <add>, %798, %cst_192 [1] : vector<8x128xf32> to vector<8xf32>
    %800 = vector.shape_cast %799 : vector<8xf32> to vector<8x1xf32>
    %cst_193 = arith.constant 1.280000e+02 : f32
    %801 = vector.broadcast %cst_193 : f32 to vector<8x1xf32>
    %802 = arith.divf %800, %801 : vector<8x1xf32>
    %cst_194 = arith.constant 9.99999974E-6 : f32
    %803 = vector.broadcast %cst_194 : f32 to vector<8x1xf32>
    %804 = arith.addf %802, %803 : vector<8x1xf32>
    %805 = math.rsqrt %804 : vector<8x1xf32>
    %806 = vector.broadcast %805 : vector<8x1xf32> to vector<8x128xf32>
    %807 = arith.mulf %797, %806 : vector<8x128xf32>
    %808 = vector.broadcast %790 : vector<1x128xf32> to vector<8x128xf32>
    %809 = arith.mulf %807, %808 : vector<8x128xf32>
    %810 = vector.broadcast %791 : vector<1x128xf32> to vector<8x128xf32>
    %811 = arith.addf %809, %810 : vector<8x128xf32>
    %812 = math.tanh %811 : vector<8x128xf32>
    %813 = vector.extract_strided_slice %732 {offsets = [0, 384], sizes = [8, 128], strides = [1, 1]} : vector<8x512xf32> to vector<8x128xf32>
    %814 = vector.extract_strided_slice %4 {offsets = [3, 0], sizes = [1, 128], strides = [1, 1]} : vector<5x128xf32> to vector<1x128xf32>
    %815 = vector.extract_strided_slice %5 {offsets = [3, 0], sizes = [1, 128], strides = [1, 1]} : vector<5x128xf32> to vector<1x128xf32>
    %cst_195 = arith.constant dense<0.000000e+00> : vector<8xf32>
    %816 = vector.multi_reduction <add>, %813, %cst_195 [1] : vector<8x128xf32> to vector<8xf32>
    %817 = vector.shape_cast %816 : vector<8xf32> to vector<8x1xf32>
    %cst_196 = arith.constant 1.280000e+02 : f32
    %818 = vector.broadcast %cst_196 : f32 to vector<8x1xf32>
    %819 = arith.divf %817, %818 : vector<8x1xf32>
    %820 = vector.broadcast %819 : vector<8x1xf32> to vector<8x128xf32>
    %821 = arith.subf %813, %820 : vector<8x128xf32>
    %822 = arith.mulf %821, %821 : vector<8x128xf32>
    %cst_197 = arith.constant dense<0.000000e+00> : vector<8xf32>
    %823 = vector.multi_reduction <add>, %822, %cst_197 [1] : vector<8x128xf32> to vector<8xf32>
    %824 = vector.shape_cast %823 : vector<8xf32> to vector<8x1xf32>
    %cst_198 = arith.constant 1.280000e+02 : f32
    %825 = vector.broadcast %cst_198 : f32 to vector<8x1xf32>
    %826 = arith.divf %824, %825 : vector<8x1xf32>
    %cst_199 = arith.constant 9.99999974E-6 : f32
    %827 = vector.broadcast %cst_199 : f32 to vector<8x1xf32>
    %828 = arith.addf %826, %827 : vector<8x1xf32>
    %829 = math.rsqrt %828 : vector<8x1xf32>
    %830 = vector.broadcast %829 : vector<8x1xf32> to vector<8x128xf32>
    %831 = arith.mulf %821, %830 : vector<8x128xf32>
    %832 = vector.broadcast %814 : vector<1x128xf32> to vector<8x128xf32>
    %833 = arith.mulf %831, %832 : vector<8x128xf32>
    %834 = vector.broadcast %815 : vector<1x128xf32> to vector<8x128xf32>
    %835 = arith.addf %833, %834 : vector<8x128xf32>
    %836 = arith.negf %835 : vector<8x128xf32>
    %837 = math.exp %836 : vector<8x128xf32>
    %cst_200 = arith.constant 1.000000e+00 : f32
    %838 = vector.broadcast %cst_200 : f32 to vector<8x128xf32>
    %839 = arith.addf %838, %837 : vector<8x128xf32>
    %840 = arith.divf %838, %839 : vector<8x128xf32>
    %841 = arith.mulf %788, %721 : vector<8x128xf32>
    %842 = arith.mulf %760, %812 : vector<8x128xf32>
    %843 = arith.addf %841, %842 : vector<8x128xf32>
    %844 = vector.extract_strided_slice %4 {offsets = [4, 0], sizes = [1, 128], strides = [1, 1]} : vector<5x128xf32> to vector<1x128xf32>
    %845 = vector.extract_strided_slice %5 {offsets = [4, 0], sizes = [1, 128], strides = [1, 1]} : vector<5x128xf32> to vector<1x128xf32>
    %cst_201 = arith.constant dense<0.000000e+00> : vector<8xf32>
    %846 = vector.multi_reduction <add>, %843, %cst_201 [1] : vector<8x128xf32> to vector<8xf32>
    %847 = vector.shape_cast %846 : vector<8xf32> to vector<8x1xf32>
    %cst_202 = arith.constant 1.280000e+02 : f32
    %848 = vector.broadcast %cst_202 : f32 to vector<8x1xf32>
    %849 = arith.divf %847, %848 : vector<8x1xf32>
    %850 = vector.broadcast %849 : vector<8x1xf32> to vector<8x128xf32>
    %851 = arith.subf %843, %850 : vector<8x128xf32>
    %852 = arith.mulf %851, %851 : vector<8x128xf32>
    %cst_203 = arith.constant dense<0.000000e+00> : vector<8xf32>
    %853 = vector.multi_reduction <add>, %852, %cst_203 [1] : vector<8x128xf32> to vector<8xf32>
    %854 = vector.shape_cast %853 : vector<8xf32> to vector<8x1xf32>
    %cst_204 = arith.constant 1.280000e+02 : f32
    %855 = vector.broadcast %cst_204 : f32 to vector<8x1xf32>
    %856 = arith.divf %854, %855 : vector<8x1xf32>
    %cst_205 = arith.constant 9.99999974E-6 : f32
    %857 = vector.broadcast %cst_205 : f32 to vector<8x1xf32>
    %858 = arith.addf %856, %857 : vector<8x1xf32>
    %859 = math.rsqrt %858 : vector<8x1xf32>
    %860 = vector.broadcast %859 : vector<8x1xf32> to vector<8x128xf32>
    %861 = arith.mulf %851, %860 : vector<8x128xf32>
    %862 = vector.broadcast %844 : vector<1x128xf32> to vector<8x128xf32>
    %863 = arith.mulf %861, %862 : vector<8x128xf32>
    %864 = vector.broadcast %845 : vector<1x128xf32> to vector<8x128xf32>
    %865 = arith.addf %863, %864 : vector<8x128xf32>
    %866 = math.tanh %865 : vector<8x128xf32>
    %867 = arith.mulf %840, %866 : vector<8x128xf32>
    %868 = arith.index_cast %c5_i32 : i32 to index
    %c0_206 = arith.constant 0 : index
    %c0_207 = arith.constant 0 : index
    %869 = vector.load %arg8[%868, %c0_206, %c0_207] : memref<6x8x128xf32, #tpu.memory_space<vmem>>, vector<1x8x128xf32>
    %870 = vector.shape_cast %869 : vector<1x8x128xf32> to vector<8x128xf32>
    %871 = vector.shape_cast %867 : vector<8x128xf32> to vector<1x8x128xf32>
    tpu.vector_store %arg8[%868, %c0_206, %c0_207], %871 {strides = array<i32>} : memref<6x8x128xf32, #tpu.memory_space<vmem>>, vector<1x8x128xf32>,
    %c6_i32 = arith.constant 6 : i32
    %c0_208 = arith.constant 0 : index
    %c0_209 = arith.constant 0 : index
    %872 = vector.load %arg11[%c0_208, %c0_209] : memref<8x128xf32, #tpu.memory_space<vmem>>, vector<8x128xf32>
    tpu.vector_store %arg11[%c0_208, %c0_209], %867 {strides = array<i32>} : memref<8x128xf32, #tpu.memory_space<vmem>>, vector<8x128xf32>,
    %c0_210 = arith.constant 0 : index
    %c0_211 = arith.constant 0 : index
    %873 = vector.load %arg12[%c0_210, %c0_211] : memref<8x128xf32, #tpu.memory_space<vmem>>, vector<8x128xf32>
    tpu.vector_store %arg12[%c0_210, %c0_211], %865 {strides = array<i32>} : memref<8x128xf32, #tpu.memory_space<vmem>>, vector<8x128xf32>,
    %c1_i32_212 = arith.constant 1 : i32
    %874 = arith.cmpi eq, %arg1, %c1_i32_212 : i32
    %875 = arith.extui %874 : i1 to i32
    %c0_i32_213 = arith.constant 0 : i32
    %876 = arith.cmpi ne, %875, %c0_i32_213 : i32
    scf.if %876 {
      %c0_214 = arith.constant 0 : index
      %c0_215 = arith.constant 0 : index
      %877 = vector.load %arg9[%c0_214, %c0_215] : memref<8x128xf32, #tpu.memory_space<vmem>>, vector<8x128xf32>
      tpu.vector_store %arg9[%c0_214, %c0_215], %867 {strides = array<i32>} : memref<8x128xf32, #tpu.memory_space<vmem>>, vector<8x128xf32>,
      %c0_216 = arith.constant 0 : index
      %c0_217 = arith.constant 0 : index
      %878 = vector.load %arg10[%c0_216, %c0_217] : memref<8x128xf32, #tpu.memory_space<vmem>>, vector<8x128xf32>
      tpu.vector_store %arg10[%c0_216, %c0_217], %865 {strides = array<i32>} : memref<8x128xf32, #tpu.memory_space<vmem>>, vector<8x128xf32>,
    } else {
    }
    return
  }
  func.func @transform_0(%arg0: i32, %arg1: i32) -> (i32, i32, i32) {
    %c0_i32 = arith.constant 0 : i32
    %c0_i32_0 = arith.constant 0 : i32
    return %arg1, %arg0, %c0_i32 : i32, i32, i32
  }
  func.func @transform_1(%arg0: i32, %arg1: i32) -> (i32, i32) {
    %c0_i32 = arith.constant 0 : i32
    %c0_i32_0 = arith.constant 0 : i32
    return %arg0, %c0_i32 : i32, i32
  }
  func.func @transform_2(%arg0: i32, %arg1: i32) -> (i32, i32) {
    %c0_i32 = arith.constant 0 : i32
    %c0_i32_0 = arith.constant 0 : i32
    return %arg0, %c0_i32 : i32, i32
  }
  func.func @transform_3(%arg0: i32, %arg1: i32) -> (i32, i32) {
    %c0_i32 = arith.constant 0 : i32
    %c0_i32_0 = arith.constant 0 : i32
    %c0_i32_1 = arith.constant 0 : i32
    return %c0_i32, %c0_i32_0 : i32, i32
  }
  func.func @transform_4(%arg0: i32, %arg1: i32) -> (i32, i32) {
    %c0_i32 = arith.constant 0 : i32
    %c0_i32_0 = arith.constant 0 : i32
    %c0_i32_1 = arith.constant 0 : i32
    return %c0_i32, %c0_i32_0 : i32, i32
  }
  func.func @transform_5(%arg0: i32, %arg1: i32) -> (i32, i32) {
    %c0_i32 = arith.constant 0 : i32
    %c0_i32_0 = arith.constant 0 : i32
    %c0_i32_1 = arith.constant 0 : i32
    return %c0_i32, %c0_i32_0 : i32, i32
  }
  func.func @transform_6(%arg0: i32, %arg1: i32) -> (i32, i32, i32) {
    %c0_i32 = arith.constant 0 : i32
    %c0_i32_0 = arith.constant 0 : i32
    return %arg1, %arg0, %c0_i32 : i32, i32, i32
  }
  func.func @transform_7(%arg0: i32, %arg1: i32) -> (i32, i32) {
    %c0_i32 = arith.constant 0 : i32
    %c0_i32_0 = arith.constant 0 : i32
    return %arg0, %c0_i32 : i32, i32
  }
  func.func @transform_8(%arg0: i32, %arg1: i32) -> (i32, i32) {
    %c0_i32 = arith.constant 0 : i32
    %c0_i32_0 = arith.constant 0 : i32
    return %arg0, %c0_i32 : i32, i32
  }
}

</mosaic_0001>

<llo_original>
// kernel: tpu_custom_call.1
$region0: #{tpu_custom_call.1}
  #allocation0 [shape = 'u32[]', space=smem, size = 0x4, offset = 0x4, fixed_abs, tag = 'smem constant byte address 0x4 - core index']
  #allocation1 [shape = 'u32[144,128]{1,0:T(1,128)}', space=vmem, size = 0x12000, scoped, tag = 'internal scratch']
  #allocation2 [shape = 'f32[8,128]{1,0:T(8,128)}', space=vmem, size = 0x1000, scoped, tag = 'scratch operand']
  #allocation3 [shape = 'f32[8,128]{1,0:T(8,128)}', space=vmem, size = 0x1000, scoped, tag = 'scratch operand']
  %s0 = inlined_call_operand.hbm [shape: f32[12,8,512], index: 0, kind: input, shape index: {}]
  %s1 = inlined_call_operand.hbm [shape: f32[8,128], index: 1, kind: input, shape index: {}]
  %s2 = inlined_call_operand.hbm [shape: f32[8,128], index: 2, kind: input, shape index: {}]
  %s3 = inlined_call_operand.hbm [shape: f32[128,512], index: 3, kind: input, shape index: {}]
  %s4 = inlined_call_operand.hbm [shape: f32[5,128], index: 4, kind: input, shape index: {}]
  %s5 = inlined_call_operand.vmem [shape: f32[5,128], index: 5, kind: input, shape index: {}]
  %s6 = inlined_call_operand.hbm [shape: f32[12,8,128], index: 6, kind: output, shape index: {0}]
  %s7 = inlined_call_operand.hbm [shape: f32[8,128], index: 7, kind: output, shape index: {1}]
  %s8 = inlined_call_operand.hbm [shape: f32[8,128], index: 8, kind: output, shape index: {2}]
  %9 = xla_tuple %s6, %s7, %s8
  %s10 = sld [smem:[#allocation0]]
  $region101: #{tpu_custom_call.1} parent=0
    _
  %s12 = ssub.s32 1, %s10
  %s13 = scalar_select 0, %s12, %s10
  $region1: #{tpu_custom_call.1} parent=0
    #allocation4 [shape = 'u8[196608]{0}', space=vmem, size = 0x30000, scoped, tag = 'input window, operand 0']
    #allocation5 [shape = 's32[2]{0}', space=sflag, size = 0x8, scoped, tag = 'scoped memory for tpu_custom_call.1']
    #allocation6 [shape = 's32[2]{0}', space=sflag, size = 0x8, scoped, tag = 'scoped memory for tpu_custom_call.1']
    #allocation7 [shape = 'u8[4096]{0}', space=vmem, size = 0x1000, scoped, tag = 'input window, operand 1, single buffered']
    #allocation8 [shape = 's32[1]{0}', space=sflag, size = 0x4, scoped, tag = 'scoped memory for tpu_custom_call.1']
    #allocation9 [shape = 'u8[4096]{0}', space=vmem, size = 0x1000, scoped, tag = 'input window, operand 2, single buffered']
    #allocation10 [shape = 'u8[262144]{0}', space=vmem, size = 0x40000, scoped, tag = 'input window, operand 3, single buffered']
    #allocation11 [shape = 's32[1]{0}', space=sflag, size = 0x4, scoped, tag = 'scoped memory for tpu_custom_call.1']
    #allocation12 [shape = 'u8[4096]{0}', space=vmem, size = 0x1000, scoped, tag = 'input window, operand 4, single buffered']
    #allocation13 [shape = 'u8[49152]{0}', space=vmem, size = 0xc000, scoped, tag = 'output window, operand 0']
    #allocation14 [shape = 'u8[4096]{0}', space=vmem, size = 0x1000, scoped, tag = 'output window, operand 1, single buffered']
    #allocation15 [shape = 's32[1]{0}', space=sflag, size = 0x4, scoped, tag = 'scoped memory for tpu_custom_call.1']
    #allocation16 [shape = 'u8[4096]{0}', space=vmem, size = 0x1000, scoped, tag = 'output window, operand 2, single buffered']
    %14 = vsyncpa [#allocation5], 0
    %s15 = scalar_lea.sflag [#allocation5], 1
    %16 = vsyncpa %s15, 0
    %17 = vsyncpa [#allocation8], 0
    %18 = vsyncpa [#allocation11], 0
    %19 = vsyncpa [#allocation6], 0
    %s20 = scalar_lea.sflag [#allocation6], 1
    %21 = vsyncpa %s20, 0
    %22 = vsyncpa [#allocation15], 0
    loop: start=0, step=1, limit=4
    $region2: #{tpu_custom_call.1} parent=1 // loop_pre_header
      _
    $region3: #{tpu_custom_call.1} parent=1 // loop_header
      %s24 = sphi 0, %s28
      %p25 = scmp.ge.s32.totalorder %s24, 4
      %s31 = sphi 0, %s43
      %s32 = sphi 0, %s39
      %s33 = sphi 0, %s31
      %s34 = sphi 0, %s32
      %s35 = sphi 0, %s33
      %s36 = sphi 0, %s34
      %s48 = sphi 0, %s50
      %s51 = sphi 0, %s48
      %s52 = sphi 0, %s51
      %s68 = sphi 0, %s52
      %s74 = sphi 0, %s76
      %s77 = sphi 0, %s74
      %s78 = sphi 0, %s77
      %s94 = sphi 0, %s78
      %s100 = sphi 0, %s102
      %s103 = sphi 0, %s100
      %s104 = sphi 0, %s103
      %s120 = sphi 0, %s104
      %s124 = sphi 0, %s124
      %s126 = sphi 0, %s124
      %s127 = sphi 0, %s126
      %s141 = sphi 0, %s127
      %s145 = sphi 0, %s145
      %s147 = sphi 0, %s145
      %s148 = sphi 0, %s147
      %s162 = sphi 0, %s148
      %s166 = sphi 0, %s166
      %s168 = sphi 0, %s166
      %s169 = sphi 0, %s168
      %s183 = sphi 0, %s169
      %s191 = sphi 0, %s193
      %s194 = sphi 0, %s191
      %s195 = sphi 0, %s194
      %s211 = sphi 0, %s195
      %s217 = sphi 0, %s219
      %s220 = sphi 0, %s217
      %s221 = sphi 0, %s220
      %s237 = sphi 0, %s221
      %s243 = sphi 0, %s245
      %s246 = sphi 0, %s243
      %s247 = sphi 0, %s246
      %s263 = sphi 0, %s247
    $region4: #{tpu_custom_call.1} parent=1 // loop_header_branch
      %27 = sbr.rel (%p25) target = $region8
    $region5: #{tpu_custom_call.1} parent=1 // loop_body
      %s29 = ssub.s32 %s24, 1
      %s30 = ssub.s32 %s24, 2
      %s37 = sadd.s32 1, %s32
      %p38 = scmp.ge.s32.totalorder %s37, 2
      %s39 = scalar_select %p38, 0, %s37
      %s40 = sadd.s32 1, %s31
      %s41 = scalar_select %p38, %s40, %s31
      %p42 = scmp.ge.s32.totalorder %s41, 1
      %s43 = scalar_select %p42, 0, %s41
      %s44 = ssub.s32 %s32, %s39
      %s45 = ssub.s32 %s31, %s43
      %s46 = sor.u32 %s44, %s45
      %p47 = scmp.eq.s32.totalorder %s46, 0
      %s49 = sadd.s32 %s48, 1
      %s50 = scalar_select %p47, %s48, %s49
      %p53 = pneg %p47
      %p54 = scmp.eq.s32.totalorder %s24, 1
      %p55 = por %p53, %p54
      %p56 = scmp.ne.s32.totalorder %s48, %s51
      %p57 = scmp.eq.s32.totalorder %s24, 0
      %p58 = por %p56, %p57
      %p59 = scmp.ne.s32.totalorder %s48, %s51
      %p60 = scmp.eq.s32.totalorder %s29, 1
      %p61 = por %p59, %p60
      %p62 = scmp.ne.s32.totalorder %s51, %s52
      %p63 = scmp.eq.s32.totalorder %s29, 0
      %p64 = por %p62, %p63
      %p65 = scmp.ne.s32.totalorder %s51, %s52
      %p66 = scmp.eq.s32.totalorder %s30, 1
      %p67 = por %p65, %p66
      %p69 = scmp.ne.s32.totalorder %s52, %s68
      %p70 = scmp.eq.s32.totalorder %s30, 0
      %p71 = por %p69, %p70
      %s72 = ssub.s32 %s31, %s43
      %p73 = scmp.eq.s32.totalorder %s72, 0
      %s75 = sadd.s32 %s74, 1
      %s76 = scalar_select %p73, %s74, %s75
      %p79 = pneg %p73
      %p80 = scmp.eq.s32.totalorder %s24, 1
      %p81 = por %p79, %p80
      %p82 = scmp.ne.s32.totalorder %s74, %s77
      %p83 = scmp.eq.s32.totalorder %s24, 0
      %p84 = por %p82, %p83
      %p85 = scmp.ne.s32.totalorder %s74, %s77
      %p86 = scmp.eq.s32.totalorder %s29, 1
      %p87 = por %p85, %p86
      %p88 = scmp.ne.s32.totalorder %s77, %s78
      %p89 = scmp.eq.s32.totalorder %s29, 0
      %p90 = por %p88, %p89
      %p91 = scmp.ne.s32.totalorder %s77, %s78
      %p92 = scmp.eq.s32.totalorder %s30, 1
      %p93 = por %p91, %p92
      %p95 = scmp.ne.s32.totalorder %s78, %s94
      %p96 = scmp.eq.s32.totalorder %s30, 0
      %p97 = por %p95, %p96
      %s98 = ssub.s32 %s31, %s43
      %p99 = scmp.eq.s32.totalorder %s98, 0
      %s101 = sadd.s32 %s100, 1
      %s102 = scalar_select %p99, %s100, %s101
      %p105 = pneg %p99
      %p106 = scmp.eq.s32.totalorder %s24, 1
      %p107 = por %p105, %p106
      %p108 = scmp.ne.s32.totalorder %s100, %s103
      %p109 = scmp.eq.s32.totalorder %s24, 0
      %p110 = por %p108, %p109
      %p111 = scmp.ne.s32.totalorder %s100, %s103
      %p112 = scmp.eq.s32.totalorder %s29, 1
      %p113 = por %p111, %p112
      %p114 = scmp.ne.s32.totalorder %s103, %s104
      %p115 = scmp.eq.s32.totalorder %s29, 0
      %p116 = por %p114, %p115
      %p117 = scmp.ne.s32.totalorder %s103, %s104
      %p118 = scmp.eq.s32.totalorder %s30, 1
      %p119 = por %p117, %p118
      %p121 = scmp.ne.s32.totalorder %s104, %s120
      %p122 = scmp.eq.s32.totalorder %s30, 0
      %p123 = por %p121, %p122
      %s125 = sadd.s32 %s124, 1
      %p128 = scmp.eq.s32.totalorder %s24, 1
      %p129 = scmp.ne.s32.totalorder %s124, %s126
      %p130 = scmp.eq.s32.totalorder %s24, 0
      %p131 = por %p129, %p130
      %p132 = scmp.ne.s32.totalorder %s124, %s126
      %p133 = scmp.eq.s32.totalorder %s29, 1
      %p134 = por %p132, %p133
      %p135 = scmp.ne.s32.totalorder %s126, %s127
      %p136 = scmp.eq.s32.totalorder %s29, 0
      %p137 = por %p135, %p136
      %p138 = scmp.ne.s32.totalorder %s126, %s127
      %p139 = scmp.eq.s32.totalorder %s30, 1
      %p140 = por %p138, %p139
      %p142 = scmp.ne.s32.totalorder %s127, %s141
      %p143 = scmp.eq.s32.totalorder %s30, 0
      %p144 = por %p142, %p143
      %s146 = sadd.s32 %s145, 1
      %p149 = scmp.eq.s32.totalorder %s24, 1
      %p150 = scmp.ne.s32.totalorder %s145, %s147
      %p151 = scmp.eq.s32.totalorder %s24, 0
      %p152 = por %p150, %p151
      %p153 = scmp.ne.s32.totalorder %s145, %s147
      %p154 = scmp.eq.s32.totalorder %s29, 1
      %p155 = por %p153, %p154
      %p156 = scmp.ne.s32.totalorder %s147, %s148
      %p157 = scmp.eq.s32.totalorder %s29, 0
      %p158 = por %p156, %p157
      %p159 = scmp.ne.s32.totalorder %s147, %s148
      %p160 = scmp.eq.s32.totalorder %s30, 1
      %p161 = por %p159, %p160
      %p163 = scmp.ne.s32.totalorder %s148, %s162
      %p164 = scmp.eq.s32.totalorder %s30, 0
      %p165 = por %p163, %p164
      %s167 = sadd.s32 %s166, 1
      %p170 = scmp.eq.s32.totalorder %s24, 1
      %p171 = scmp.ne.s32.totalorder %s166, %s168
      %p172 = scmp.eq.s32.totalorder %s24, 0
      %p173 = por %p171, %p172
      %p174 = scmp.ne.s32.totalorder %s166, %s168
      %p175 = scmp.eq.s32.totalorder %s29, 1
      %p176 = por %p174, %p175
      %p177 = scmp.ne.s32.totalorder %s168, %s169
      %p178 = scmp.eq.s32.totalorder %s29, 0
      %p179 = por %p177, %p178
      %p180 = scmp.ne.s32.totalorder %s168, %s169
      %p181 = scmp.eq.s32.totalorder %s30, 1
      %p182 = por %p180, %p181
      %p184 = scmp.ne.s32.totalorder %s169, %s183
      %p185 = scmp.eq.s32.totalorder %s30, 0
      %p186 = por %p184, %p185
      %s187 = ssub.s32 %s32, %s39
      %s188 = ssub.s32 %s31, %s43
      %s189 = sor.u32 %s187, %s188
      %p190 = scmp.eq.s32.totalorder %s189, 0
      %s192 = sadd.s32 %s191, 1
      %s193 = scalar_select %p190, %s191, %s192
      %p196 = pneg %p190
      %p197 = scmp.eq.s32.totalorder %s24, 1
      %p198 = por %p196, %p197
      %p199 = scmp.ne.s32.totalorder %s191, %s194
      %p200 = scmp.eq.s32.totalorder %s24, 0
      %p201 = por %p199, %p200
      %p202 = scmp.ne.s32.totalorder %s191, %s194
      %p203 = scmp.eq.s32.totalorder %s29, 1
      %p204 = por %p202, %p203
      %p205 = scmp.ne.s32.totalorder %s194, %s195
      %p206 = scmp.eq.s32.totalorder %s29, 0
      %p207 = por %p205, %p206
      %p208 = scmp.ne.s32.totalorder %s194, %s195
      %p209 = scmp.eq.s32.totalorder %s30, 1
      %p210 = por %p208, %p209
      %p212 = scmp.ne.s32.totalorder %s195, %s211
      %p213 = scmp.eq.s32.totalorder %s30, 0
      %p214 = por %p212, %p213
      %s215 = ssub.s32 %s31, %s43
      %p216 = scmp.eq.s32.totalorder %s215, 0
      %s218 = sadd.s32 %s217, 1
      %s219 = scalar_select %p216, %s217, %s218
      %p222 = pneg %p216
      %p223 = scmp.eq.s32.totalorder %s24, 1
      %p224 = por %p222, %p223
      %p225 = scmp.ne.s32.totalorder %s217, %s220
      %p226 = scmp.eq.s32.totalorder %s24, 0
      %p227 = por %p225, %p226
      %p228 = scmp.ne.s32.totalorder %s217, %s220
      %p229 = scmp.eq.s32.totalorder %s29, 1
      %p230 = por %p228, %p229
      %p231 = scmp.ne.s32.totalorder %s220, %s221
      %p232 = scmp.eq.s32.totalorder %s29, 0
      %p233 = por %p231, %p232
      %p234 = scmp.ne.s32.totalorder %s220, %s221
      %p235 = scmp.eq.s32.totalorder %s30, 1
      %p236 = por %p234, %p235
      %p238 = scmp.ne.s32.totalorder %s221, %s237
      %p239 = scmp.eq.s32.totalorder %s30, 0
      %p240 = por %p238, %p239
      %s241 = ssub.s32 %s31, %s43
      %p242 = scmp.eq.s32.totalorder %s241, 0
      %s244 = sadd.s32 %s243, 1
      %s245 = scalar_select %p242, %s243, %s244
      %p248 = pneg %p242
      %p249 = scmp.eq.s32.totalorder %s24, 1
      %p250 = por %p248, %p249
      %p251 = scmp.ne.s32.totalorder %s243, %s246
      %p252 = scmp.eq.s32.totalorder %s24, 0
      %p253 = por %p251, %p252
      %p254 = scmp.ne.s32.totalorder %s243, %s246
      %p255 = scmp.eq.s32.totalorder %s29, 1
      %p256 = por %p254, %p255
      %p257 = scmp.ne.s32.totalorder %s246, %s247
      %p258 = scmp.eq.s32.totalorder %s29, 0
      %p259 = por %p257, %p258
      %p260 = scmp.ne.s32.totalorder %s246, %s247
      %p261 = scmp.eq.s32.totalorder %s30, 1
      %p262 = por %p260, %p261
      %p264 = scmp.ne.s32.totalorder %s247, %s263
      %p265 = scmp.eq.s32.totalorder %s30, 0
      %p266 = por %p264, %p265
      %p267 = scmp.le.s32.totalorder 1, %s24
      %p268 = scmp.lt.s32.totalorder %s24, 3
      %p269 = pnand %p267, %p268
      %p270 = pneg %p269
      // Predicated region
      $region9: #{tpu_custom_call.1} parent=5 // pred_check
        _
      $region10: #{tpu_custom_call.1} parent=5 // pred_check_branch
        %272 = sbr.rel (%p269) target = $region12
      $region11: #{tpu_custom_call.1} parent=5 // pred_region
        %s273 = ssub.s32 %s24, 1
        // Predicated region
        $region13: #{tpu_custom_call.1} parent=11 // pred_check
          %p274 = pneg %p90
        $region14: #{tpu_custom_call.1} parent=11 // pred_check_branch
          %276 = sbr.rel (%p274) target = $region16
        $region15: #{tpu_custom_call.1} parent=11 // pred_region
          %s278 = ssub.s32 128, 128
          %279 = vsyncadd [#allocation8], %s278
          %s280 = smul.addr %s33, 128
          %s281 = scalar_lea.hbm %s1, %s280
          %s283 = sshll.u32 [#allocation7], 4
          %s284 = int_to_ptr.vmem [resolvable:$true] %s283
          %286 = dma.hbm_to_vmem [thread:$0]  %s281, 128, %s284, [#allocation8]
        $region16: #{tpu_custom_call.1} parent=11 // pred_fallthru
          _
        // Predicated region
        $region17: #{tpu_custom_call.1} parent=11 // pred_check
          %p287 = pneg %p116
        $region18: #{tpu_custom_call.1} parent=11 // pred_check_branch
          %289 = sbr.rel (%p287) target = $region20
        $region19: #{tpu_custom_call.1} parent=11 // pred_region
          %s291 = ssub.s32 128, 128
          %292 = vsyncadd [#allocation8], %s291
          %s293 = smul.addr %s33, 128
          %s294 = scalar_lea.hbm %s2, %s293
          %s296 = sshll.u32 [#allocation9], 4
          %s297 = int_to_ptr.vmem [resolvable:$true] %s296
          %299 = dma.hbm_to_vmem [thread:$0]  %s294, 128, %s297, [#allocation8]
        $region20: #{tpu_custom_call.1} parent=11 // pred_fallthru
          _
        // Predicated region
        $region21: #{tpu_custom_call.1} parent=11 // pred_check
          %p300 = pneg %p137
        $region22: #{tpu_custom_call.1} parent=11 // pred_check_branch
          %302 = sbr.rel (%p300) target = $region24
        $region23: #{tpu_custom_call.1} parent=11 // pred_region
          %s304 = ssub.s32 8192, 8192
          %305 = vsyncadd [#allocation11], %s304
          %s306 = sshll.u32 [#allocation10], 4
          %s307 = int_to_ptr.vmem [resolvable:$true] %s306
          %312 = dma.hbm_to_vmem [thread:$0]  %s3, 8192, %s307, [#allocation11], 512, 512, 32
        $region24: #{tpu_custom_call.1} parent=11 // pred_fallthru
          _
        // Predicated region
        $region25: #{tpu_custom_call.1} parent=11 // pred_check
          %p313 = pneg %p158
        $region26: #{tpu_custom_call.1} parent=11 // pred_check_branch
          %315 = sbr.rel (%p313) target = $region28
        $region27: #{tpu_custom_call.1} parent=11 // pred_region
          %s317 = ssub.s32 128, 128
          %318 = vsyncadd [#allocation11], %s317
          %s320 = sshll.u32 [#allocation12], 4
          %s321 = int_to_ptr.vmem [resolvable:$true] %s320
          %323 = dma.hbm_to_vmem [thread:$0]  %s4, 128, %s321, [#allocation11]
        $region28: #{tpu_custom_call.1} parent=11 // pred_fallthru
          _
        // Predicated region
        $region29: #{tpu_custom_call.1} parent=11 // pred_check
          %p324 = pneg %p179
        $region30: #{tpu_custom_call.1} parent=11 // pred_check_branch
          %326 = sbr.rel (%p324) target = $region32
        $region31: #{tpu_custom_call.1} parent=11 // pred_region
          _
        $region32: #{tpu_custom_call.1} parent=11 // pred_fallthru
          _
      $region12: #{tpu_custom_call.1} parent=5 // pred_fallthru
        _
      %p327 = scmp.lt.s32.totalorder %s24, 2
      // Predicated region
      $region33: #{tpu_custom_call.1} parent=5 // pred_check
        %p328 = pneg %p327
      $region34: #{tpu_custom_call.1} parent=5 // pred_check_branch
        %330 = sbr.rel (%p328) target = $region36
      $region35: #{tpu_custom_call.1} parent=5 // pred_region
        // Predicated region
        $region37: #{tpu_custom_call.1} parent=35 // pred_check
          %p331 = pneg %p58
        $region38: #{tpu_custom_call.1} parent=35 // pred_check_branch
          %333 = sbr.rel (%p331) target = $region40
        $region39: #{tpu_custom_call.1} parent=35 // pred_region
          %s334 = sand.u32 %s48, 1
          %s335 = scalar_lea.sflag [#allocation5], %s334
          %s336 = sand.u32 %s48, 1
          %s337 = smul.addr %s336, 192
          %s338 = scalar_lea.vmem [#allocation4], %s337
          %s339 = smul.u32 6, %s32
          %s341 = ssub.s32 3072, 3072
          %342 = vsyncadd %s335, %s341
          %s343 = smul.addr %s31, 4
          %s344 = smul.addr %s339, 4
          %s345 = sadd.s32 %s343, %s344
          %s346 = smul.addr %s345, 128
          %s347 = scalar_lea.hbm %s0, %s346
          %s348 = sshll.u32 %s338, 4
          %s349 = int_to_ptr.vmem [resolvable:$true] %s348
          %354 = dma.hbm_to_vmem [thread:$0]  %s347, 3072, %s349, %s335, 512, 512, 32
        $region40: #{tpu_custom_call.1} parent=35 // pred_fallthru
          _
      $region36: #{tpu_custom_call.1} parent=5 // pred_fallthru
        _
      %p355 = scmp.le.s32.totalorder 1, %s24
      %p356 = scmp.lt.s32.totalorder %s24, 3
      %p357 = pnand %p355, %p356
      %p358 = pneg %p357
      // Predicated region
      $region41: #{tpu_custom_call.1} parent=5 // pred_check
        _
      $region42: #{tpu_custom_call.1} parent=5 // pred_check_branch
        %360 = sbr.rel (%p357) target = $region44
      $region43: #{tpu_custom_call.1} parent=5 // pred_region
        %s361 = ssub.s32 %s24, 1
        %s362 = sand.u32 %s51, 1
        %s363 = scalar_lea.sflag [#allocation5], %s362
        %s364 = sand.u32 %s51, 1
        %s365 = smul.addr %s364, 192
        %s366 = scalar_lea.vmem [#allocation4], %s365
        // Predicated region
        $region45: #{tpu_custom_call.1} parent=43 // pred_check
          %p367 = pneg %p64
        $region46: #{tpu_custom_call.1} parent=43 // pred_check_branch
          %369 = sbr.rel (%p367) target = $region48
        $region47: #{tpu_custom_call.1} parent=43 // pred_region
          %370 = dma.done %s363, 3072
        $region48: #{tpu_custom_call.1} parent=43 // pred_fallthru
          _
        // Predicated region
        $region49: #{tpu_custom_call.1} parent=43 // pred_check
          %p371 = pneg %p90
        $region50: #{tpu_custom_call.1} parent=43 // pred_check_branch
          %373 = sbr.rel (%p371) target = $region52
        $region51: #{tpu_custom_call.1} parent=43 // pred_region
          %374 = dma.done [#allocation8], 128
        $region52: #{tpu_custom_call.1} parent=43 // pred_fallthru
          _
        // Predicated region
        $region53: #{tpu_custom_call.1} parent=43 // pred_check
          %p375 = pneg %p116
        $region54: #{tpu_custom_call.1} parent=43 // pred_check_branch
          %377 = sbr.rel (%p375) target = $region56
        $region55: #{tpu_custom_call.1} parent=43 // pred_region
          %378 = dma.done [#allocation8], 128
        $region56: #{tpu_custom_call.1} parent=43 // pred_fallthru
          _
        // Predicated region
        $region57: #{tpu_custom_call.1} parent=43 // pred_check
          %p379 = pneg %p137
        $region58: #{tpu_custom_call.1} parent=43 // pred_check_branch
          %381 = sbr.rel (%p379) target = $region60
        $region59: #{tpu_custom_call.1} parent=43 // pred_region
          %382 = dma.done [#allocation11], 8192
        $region60: #{tpu_custom_call.1} parent=43 // pred_fallthru
          _
        // Predicated region
        $region61: #{tpu_custom_call.1} parent=43 // pred_check
          %p383 = pneg %p158
        $region62: #{tpu_custom_call.1} parent=43 // pred_check_branch
          %385 = sbr.rel (%p383) target = $region64
        $region63: #{tpu_custom_call.1} parent=43 // pred_region
          %386 = dma.done [#allocation11], 128
        $region64: #{tpu_custom_call.1} parent=43 // pred_fallthru
          _
        %s387 = sand.u32 %s51, 1
        %s388 = scalar_lea.sflag [#allocation5], %s387
        %s389 = sand.u32 %s51, 1
        %s390 = smul.addr %s389, 192
        %s391 = scalar_lea.vmem [#allocation4], %s390
        %p392 = pneg %p64
        %p393 = pneg %p61
        %p394 = pneg %p90
        %p395 = pneg %p87
        %p396 = pneg %p116
        %p397 = pneg %p113
        %p398 = pneg %p137
        %p399 = pneg %p134
        %p400 = pneg %p158
        %p401 = pneg %p155
        %p402 = pneg %p179
        %p403 = pneg %p176
        %p404 = pneg %p207
        %p405 = pneg %p204
        %s406 = sand.u32 %s194, 1
        %s407 = scalar_lea.sflag [#allocation6], %s406
        %s408 = sand.u32 %s194, 1
        %s409 = smul.addr %s408, 48
        %s410 = scalar_lea.vmem [#allocation13], %s409
        %p411 = pneg %p233
        %p412 = pneg %p230
        %p413 = pneg %p259
        %p414 = pneg %p256
        %s415 = smul.u32 6, %s34
        %s416 = smul.u32 6, %s34
        %p417 = scmp.eq.s32.totalorder %s34, 0
        // Predicated region
        $region65: #{tpu_custom_call.1} parent=43 // pred_check
          %p418 = pneg %p417
        $region66: #{tpu_custom_call.1} parent=43 // pred_check_branch
          %420 = sbr.rel (%p418) target = $region68
        $region67: #{tpu_custom_call.1} parent=43 // pred_region
          %v421 = vld [vmem:[#allocation7] sm:$0xff]
          %422 = vst [vmem:[#allocation2] sm:$0xff] %v421
          %v423 = vld [vmem:[#allocation9] sm:$0xff]
          %424 = vst [vmem:[#allocation3] sm:$0xff] %v423
        $region68: #{tpu_custom_call.1} parent=43 // pred_fallthru
          _
        %v425 = vld [vmem:[#allocation10] sm:$0xff]
        %v426 = vld [vmem:[#allocation10 + $0x8] sm:$0xff]
        %v427 = vld [vmem:[#allocation10 + $0x10] sm:$0xff]
        %v428 = vld [vmem:[#allocation10 + $0x18] sm:$0xff]
        %v429 = vld [vmem:[#allocation10 + $0x20] sm:$0xff]
        %v430 = vld [vmem:[#allocation10 + $0x28] sm:$0xff]
        %v431 = vld [vmem:[#allocation10 + $0x30] sm:$0xff]
        %v432 = vld [vmem:[#allocation10 + $0x38] sm:$0xff]
        %v433 = vld [vmem:[#allocation10 + $0x40] sm:$0xff]
        %v434 = vld [vmem:[#allocation10 + $0x48] sm:$0xff]
        %v435 = vld [vmem:[#allocation10 + $0x50] sm:$0xff]
        %v436 = vld [vmem:[#allocation10 + $0x58] sm:$0xff]
        %v437 = vld [vmem:[#allocation10 + $0x60] sm:$0xff]
        %v438 = vld [vmem:[#allocation10 + $0x68] sm:$0xff]
        %v439 = vld [vmem:[#allocation10 + $0x70] sm:$0xff]
        %v440 = vld [vmem:[#allocation10 + $0x78] sm:$0xff]
        %v441 = vld [vmem:[#allocation10 + $0x80] sm:$0xff]
        %v442 = vld [vmem:[#allocation10 + $0x88] sm:$0xff]
        %v443 = vld [vmem:[#allocation10 + $0x90] sm:$0xff]
        %v444 = vld [vmem:[#allocation10 + $0x98] sm:$0xff]
        %v445 = vld [vmem:[#allocation10 + $0xa0] sm:$0xff]
        %v446 = vld [vmem:[#allocation10 + $0xa8] sm:$0xff]
        %v447 = vld [vmem:[#allocation10 + $0xb0] sm:$0xff]
        %v448 = vld [vmem:[#allocation10 + $0xb8] sm:$0xff]
        %v449 = vld [vmem:[#allocation10 + $0xc0] sm:$0xff]
        %v450 = vld [vmem:[#allocation10 + $0xc8] sm:$0xff]
        %v451 = vld [vmem:[#allocation10 + $0xd0] sm:$0xff]
        %v452 = vld [vmem:[#allocation10 + $0xd8] sm:$0xff]
        %v453 = vld [vmem:[#allocation10 + $0xe0] sm:$0xff]
        %v454 = vld [vmem:[#allocation10 + $0xe8] sm:$0xff]
        %v455 = vld [vmem:[#allocation10 + $0xf0] sm:$0xff]
        %v456 = vld [vmem:[#allocation10 + $0xf8] sm:$0xff]
        %v457 = vld [vmem:[#allocation10 + $0x100] sm:$0xff]
        %v458 = vld [vmem:[#allocation10 + $0x108] sm:$0xff]
        %v459 = vld [vmem:[#allocation10 + $0x110] sm:$0xff]
        %v460 = vld [vmem:[#allocation10 + $0x118] sm:$0xff]
        %v461 = vld [vmem:[#allocation10 + $0x120] sm:$0xff]
        %v462 = vld [vmem:[#allocation10 + $0x128] sm:$0xff]
        %v463 = vld [vmem:[#allocation10 + $0x130] sm:$0xff]
        %v464 = vld [vmem:[#allocation10 + $0x138] sm:$0xff]
        %v465 = vld [vmem:[#allocation10 + $0x140] sm:$0xff]
        %v466 = vld [vmem:[#allocation10 + $0x148] sm:$0xff]
        %v467 = vld [vmem:[#allocation10 + $0x150] sm:$0xff]
        %v468 = vld [vmem:[#allocation10 + $0x158] sm:$0xff]
        %v469 = vld [vmem:[#allocation10 + $0x160] sm:$0xff]
        %v470 = vld [vmem:[#allocation10 + $0x168] sm:$0xff]
        %v471 = vld [vmem:[#allocation10 + $0x170] sm:$0xff]
        %v472 = vld [vmem:[#allocation10 + $0x178] sm:$0xff]
        %v473 = vld [vmem:[#allocation10 + $0x180] sm:$0xff]
        %v474 = vld [vmem:[#allocation10 + $0x188] sm:$0xff]
        %v475 = vld [vmem:[#allocation10 + $0x190] sm:$0xff]
        %v476 = vld [vmem:[#allocation10 + $0x198] sm:$0xff]
        %v477 = vld [vmem:[#allocation10 + $0x1a0] sm:$0xff]
        %v478 = vld [vmem:[#allocation10 + $0x1a8] sm:$0xff]
        %v479 = vld [vmem:[#allocation10 + $0x1b0] sm:$0xff]
        %v480 = vld [vmem:[#allocation10 + $0x1b8] sm:$0xff]
        %v481 = vld [vmem:[#allocation10 + $0x1c0] sm:$0xff]
        %v482 = vld [vmem:[#allocation10 + $0x1c8] sm:$0xff]
        %v483 = vld [vmem:[#allocation10 + $0x1d0] sm:$0xff]
        %v484 = vld [vmem:[#allocation10 + $0x1d8] sm:$0xff]
        %v485 = vld [vmem:[#allocation10 + $0x1e0] sm:$0xff]
        %v486 = vld [vmem:[#allocation10 + $0x1e8] sm:$0xff]
        %v487 = vld [vmem:[#allocation10 + $0x1f0] sm:$0xff]
        %v488 = vld [vmem:[#allocation10 + $0x1f8] sm:$0xff]
        %v489 = vld [vmem:[#allocation12] sm:$0x1f]
        %v490 = vld [vmem:[%s5] sm:$0x1f]
        %v491 = vld [vmem:[#allocation2] sm:$0xff]
        %v492 = vld [vmem:[#allocation3] sm:$0xff]
        %v493 = vld [vmem:[%s366] sm:$0xff]
        %v494 = vld [vmem:[%s366 + $0x8] sm:$0xff]
        %v495 = vld [vmem:[%s366 + $0x10] sm:$0xff]
        %v496 = vld [vmem:[%s366 + $0x18] sm:$0xff]
        %497 = vmatprep.subr.mxu0 %v486
        %498 = vmatpush1.msra.mxu0 %v485
        %499 = vmatprep.subr.mxu0 %v482
        %500 = vmatpush1.msra.mxu0 %v481
        %501 = vmatprep.subr.mxu0 %v478
        %502 = vmatpush1.msra.mxu0 %v477
        %503 = vmatprep.subr.mxu0 %v474
        %504 = vmatpush1.msra.mxu0 %v473
        %505 = vmatprep.subr.mxu0 %v470
        %506 = vmatpush1.msra.mxu0 %v469
        %507 = vmatprep.subr.mxu0 %v466
        %508 = vmatpush1.msra.mxu0 %v465
        %509 = vmatprep.subr.mxu0 %v462
        %510 = vmatpush1.msra.mxu0 %v461
        %511 = vmatprep.subr.mxu0 %v458
        %512 = vmatpush1.msra.mxu0 %v457
        %513 = vmatprep.subr.mxu0 %v454
        %514 = vmatpush1.msra.mxu0 %v453
        %515 = vmatprep.subr.mxu0 %v450
        %516 = vmatpush1.msra.mxu0 %v449
        %517 = vmatprep.subr.mxu0 %v446
        %518 = vmatpush1.msra.mxu0 %v445
        %519 = vmatprep.subr.mxu0 %v442
        %520 = vmatpush1.msra.mxu0 %v441
        %521 = vmatprep.subr.mxu0 %v438
        %522 = vmatpush1.msra.mxu0 %v437
        %523 = vmatprep.subr.mxu0 %v434
        %524 = vmatpush1.msra.mxu0 %v433
        %525 = vmatprep.subr.mxu0 %v430
        %526 = vmatpush1.msra.mxu0 %v429
        %527 = vmatprep.subr.mxu0 %v426
        %528 = vmatpush1.msra.mxu0 %v425
        %529 = vmatprep.subr.mxu0 0.0
        %530 = vmatpush2.msra.mxu0 0.0
        %531 = vmatprep.subr.mxu0 0.0
        %532 = vmatpush2.msra.mxu0 0.0
        %533 = vmatprep.subr.mxu0 0.0
        %534 = vmatpush2.msra.mxu0 0.0
        %535 = vmatprep.subr.mxu0 0.0
        %536 = vmatpush2.msra.mxu0 0.0
        %537 = vmatprep.subr.mxu0 0.0
        %538 = vmatpush2.msra.mxu0 0.0
        %539 = vmatprep.subr.mxu0 0.0
        %540 = vmatpush2.msra.mxu0 0.0
        %541 = vmatprep.subr.mxu0 0.0
        %542 = vmatpush2.msra.mxu0 0.0
        %543 = vmatprep.subr.mxu0 0.0
        %544 = vmatpush2.msra.mxu0 0.0
        %545 = vmatprep.subr.mxu0 0.0
        %546 = vmatpush2.msra.mxu0 0.0
        %547 = vmatprep.subr.mxu0 0.0
        %548 = vmatpush2.msra.mxu0 0.0
        %549 = vmatprep.subr.mxu0 0.0
        %550 = vmatpush2.msra.mxu0 0.0
        %551 = vmatprep.subr.mxu0 0.0
        %552 = vmatpush2.msra.mxu0 0.0
        %553 = vmatprep.subr.mxu0 0.0
        %554 = vmatpush2.msra.mxu0 0.0
        %555 = vmatprep.subr.mxu0 0.0
        %556 = vmatpush2.msra.mxu0 0.0
        %557 = vmatprep.subr.mxu0 0.0
        %558 = vmatpush2.msra.mxu0 0.0
        %559 = vmatprep.subr.mxu0 0.0
        %560 = vmatpush2.msra.mxu0 0.0
        %561 = vmatprep.mubr.f32.mxu0 0.0
        %562 = vmatmul.mubr.f32.gmra.mxu0 %v491
        %v563 = vpop.f32.mrf.mxu0
        %v564 = vadd.f32 0.0, %v563
        %v565 = vpop.f32.mrf.mxu0
        %v566 = vadd.f32 0.0, %v565
        %567 = vdwg.mxu0
        %568 = vmatprep.subr.mxu0 %v488
        %569 = vmatpush1.msra.mxu0 %v487
        %570 = vmatprep.subr.mxu0 %v484
        %571 = vmatpush1.msra.mxu0 %v483
        %572 = vmatprep.subr.mxu0 %v480
        %573 = vmatpush1.msra.mxu0 %v479
        %574 = vmatprep.subr.mxu0 %v476
        %575 = vmatpush1.msra.mxu0 %v475
        %576 = vmatprep.subr.mxu0 %v472
        %577 = vmatpush1.msra.mxu0 %v471
        %578 = vmatprep.subr.mxu0 %v468
        %579 = vmatpush1.msra.mxu0 %v467
        %580 = vmatprep.subr.mxu0 %v464
        %581 = vmatpush1.msra.mxu0 %v463
        %582 = vmatprep.subr.mxu0 %v460
        %583 = vmatpush1.msra.mxu0 %v459
        %584 = vmatprep.subr.mxu0 %v456
        %585 = vmatpush1.msra.mxu0 %v455
        %586 = vmatprep.subr.mxu0 %v452
        %587 = vmatpush1.msra.mxu0 %v451
        %588 = vmatprep.subr.mxu0 %v448
        %589 = vmatpush1.msra.mxu0 %v447
        %590 = vmatprep.subr.mxu0 %v444
        %591 = vmatpush1.msra.mxu0 %v443
        %592 = vmatprep.subr.mxu0 %v440
        %593 = vmatpush1.msra.mxu0 %v439
        %594 = vmatprep.subr.mxu0 %v436
        %595 = vmatpush1.msra.mxu0 %v435
        %596 = vmatprep.subr.mxu0 %v432
        %597 = vmatpush1.msra.mxu0 %v431
        %598 = vmatprep.subr.mxu0 %v428
        %599 = vmatpush1.msra.mxu0 %v427
        %600 = vmatprep.subr.mxu0 0.0
        %601 = vmatpush2.msra.mxu0 0.0
        %602 = vmatprep.subr.mxu0 0.0
        %603 = vmatpush2.msra.mxu0 0.0
        %604 = vmatprep.subr.mxu0 0.0
        %605 = vmatpush2.msra.mxu0 0.0
        %606 = vmatprep.subr.mxu0 0.0
        %607 = vmatpush2.msra.mxu0 0.0
        %608 = vmatprep.subr.mxu0 0.0
        %609 = vmatpush2.msra.mxu0 0.0
        %610 = vmatprep.subr.mxu0 0.0
        %611 = vmatpush2.msra.mxu0 0.0
        %612 = vmatprep.subr.mxu0 0.0
        %613 = vmatpush2.msra.mxu0 0.0
        %614 = vmatprep.subr.mxu0 0.0
        %615 = vmatpush2.msra.mxu0 0.0
        %616 = vmatprep.subr.mxu0 0.0
        %617 = vmatpush2.msra.mxu0 0.0
        %618 = vmatprep.subr.mxu0 0.0
        %619 = vmatpush2.msra.mxu0 0.0
        %620 = vmatprep.subr.mxu0 0.0
        %621 = vmatpush2.msra.mxu0 0.0
        %622 = vmatprep.subr.mxu0 0.0
        %623 = vmatpush2.msra.mxu0 0.0
        %624 = vmatprep.subr.mxu0 0.0
        %625 = vmatpush2.msra.mxu0 0.0
        %626 = vmatprep.subr.mxu0 0.0
        %627 = vmatpush2.msra.mxu0 0.0
        %628 = vmatprep.subr.mxu0 0.0
        %629 = vmatpush2.msra.mxu0 0.0
        %630 = vmatprep.subr.mxu0 0.0
        %631 = vmatpush2.msra.mxu0 0.0
        %632 = vmatprep.mubr.f32.mxu0 0.0
        %633 = vmatmul.mubr.f32.gmra.mxu0 %v491
        %v634 = vpop.f32.mrf.mxu0
        %v635 = vadd.f32 0.0, %v634
        %v636 = vpop.f32.mrf.mxu0
        %v637 = vadd.f32 0.0, %v636
        %638 = vdwg.mxu0
        %v639 = vadd.f32 %v493, %v564
        %v640 = vadd.f32 %v494, %v566
        %v641 = vadd.f32 %v495, %v635
        %v642 = vadd.f32 %v496, %v637
        %643 = vadd.xlane.f32.xlu0 %v639
        %v644 = vpop.xlane.xlu0 %643
        %v645 = vrcp.pop 128.0
        %v646 = vmul.f32 %v644, %v645
        %v647 = vsub.f32 %v639, %v646
        %v648 = vmul.f32 %v647, %v647
        %649 = vadd.xlane.f32.xlu0 %v648
        %v650 = vpop.xlane.xlu0 %649
        %v651 = vmul.f32 %v650, %v645
        %v652 = vadd.f32 %v651, 1e-05
        %v653 = vrsqrt.pop %v652
        %v654 = vmul.f32 %v647, %v653
        %v655 = vlaneseq
        %v656 = vshrl.u32 %v655, 7
        %v657 = vsub.s32 0, %v656
        %v658 = vrot.slane %v489, %v657
        %v659 = vmul.f32 %v654, %v658
        %v660 = vlaneseq
        %v661 = vshrl.u32 %v660, 7
        %v662 = vsub.s32 0, %v661
        %v663 = vrot.slane %v490, %v662
        %v664 = vadd.f32 %v659, %v663
        %v665 = vxor.u32 %v664, 2147483648
        %v666 = vmul.f32 %v665, 1.442695
        %v667 = vpow.pop %v666
        %v668 = vadd.f32 %v667, 1.0
        %v669 = vrcp.pop %v668
        %v670 = vmul.f32 1.0, %v669
        %671 = vadd.xlane.f32.xlu0 %v640
        %v672 = vpop.xlane.xlu0 %671
        %v673 = vmul.f32 %v672, %v645
        %v674 = vsub.f32 %v640, %v673
        %v675 = vmul.f32 %v674, %v674
        %676 = vadd.xlane.f32.xlu0 %v675
        %v677 = vpop.xlane.xlu0 %676
        %v678 = vmul.f32 %v677, %v645
        %v679 = vadd.f32 %v678, 1e-05
        %v680 = vrsqrt.pop %v679
        %v681 = vmul.f32 %v674, %v680
        %v682 = vlaneseq
        %v683 = vshrl.u32 %v682, 7
        %v684 = vsub.s32 1, %v683
        %v685 = vrot.slane %v489, %v684
        %v686 = vmul.f32 %v681, %v685
        %v687 = vlaneseq
        %v688 = vshrl.u32 %v687, 7
        %v689 = vsub.s32 1, %v688
        %v690 = vrot.slane %v490, %v689
        %v691 = vadd.f32 %v686, %v690
        %v692 = vxor.u32 %v691, 2147483648
        %v693 = vmul.f32 %v692, 1.442695
        %v694 = vpow.pop %v693
        %v695 = vadd.f32 %v694, 1.0
        %v696 = vrcp.pop %v695
        %v697 = vmul.f32 1.0, %v696
        %698 = vadd.xlane.f32.xlu0 %v641
        %v699 = vpop.xlane.xlu0 %698
        %v700 = vmul.f32 %v699, %v645
        %v701 = vsub.f32 %v641, %v700
        %v702 = vmul.f32 %v701, %v701
        %703 = vadd.xlane.f32.xlu0 %v702
        %v704 = vpop.xlane.xlu0 %703
        %v705 = vmul.f32 %v704, %v645
        %v706 = vadd.f32 %v705, 1e-05
        %v707 = vrsqrt.pop %v706
        %v708 = vmul.f32 %v701, %v707
        %v709 = vlaneseq
        %v710 = vshrl.u32 %v709, 7
        %v711 = vsub.s32 2, %v710
        %v712 = vrot.slane %v489, %v711
        %v713 = vmul.f32 %v708, %v712
        %v714 = vlaneseq
        %v715 = vshrl.u32 %v714, 7
        %v716 = vsub.s32 2, %v715
        %v717 = vrot.slane %v490, %v716
        %v718 = vadd.f32 %v713, %v717
        %v719 = vtanh.pop %v718
        %720 = vadd.xlane.f32.xlu0 %v642
        %v721 = vpop.xlane.xlu0 %720
        %v722 = vmul.f32 %v721, %v645
        %v723 = vsub.f32 %v642, %v722
        %v724 = vmul.f32 %v723, %v723
        %725 = vadd.xlane.f32.xlu0 %v724
        %v726 = vpop.xlane.xlu0 %725
        %v727 = vmul.f32 %v726, %v645
        %v728 = vadd.f32 %v727, 1e-05
        %v729 = vrsqrt.pop %v728
        %v730 = vmul.f32 %v723, %v729
        %v731 = vlaneseq
        %v732 = vshrl.u32 %v731, 7
        %v733 = vsub.s32 3, %v732
        %v734 = vrot.slane %v489, %v733
        %v735 = vmul.f32 %v730, %v734
        %v736 = vlaneseq
        %v737 = vshrl.u32 %v736, 7
        %v738 = vsub.s32 3, %v737
        %v739 = vrot.slane %v490, %v738
        %v740 = vadd.f32 %v735, %v739
        %v741 = vxor.u32 %v740, 2147483648
        %v742 = vmul.f32 %v741, 1.442695
        %v743 = vpow.pop %v742
        %v744 = vadd.f32 %v743, 1.0
        %v745 = vrcp.pop %v744
        %v746 = vmul.f32 1.0, %v745
        %v747 = vmul.f32 %v697, %v492
        %v748 = vmul.f32 %v670, %v719
        %v749 = vadd.f32 %v747, %v748
        %750 = vadd.xlane.f32.xlu0 %v749
        %v751 = vpop.xlane.xlu0 %750
        %v752 = vmul.f32 %v751, %v645
        %v753 = vsub.f32 %v749, %v752
        %v754 = vmul.f32 %v753, %v753
        %755 = vadd.xlane.f32.xlu0 %v754
        %v756 = vpop.xlane.xlu0 %755
        %v757 = vmul.f32 %v756, %v645
        %v758 = vadd.f32 %v757, 1e-05
        %v759 = vrsqrt.pop %v758
        %v760 = vmul.f32 %v753, %v759
        %v761 = vlaneseq
        %v762 = vshrl.u32 %v761, 7
        %v763 = vsub.s32 4, %v762
        %v764 = vrot.slane %v489, %v763
        %v765 = vmul.f32 %v760, %v764
        %v766 = vlaneseq
        %v767 = vshrl.u32 %v766, 7
        %v768 = vsub.s32 4, %v767
        %v769 = vrot.slane %v490, %v768
        %v770 = vadd.f32 %v765, %v769
        %v771 = vtanh.pop %v770
        %v772 = vmul.f32 %v746, %v771
        %773 = vst [vmem:[%s410] sm:$0xff] %v772
        %s774 = scalar_lea.vmem %s366, 32 [#allocation4]
        %v775 = vld [vmem:[%s774] sm:$0xff]
        %v776 = vld [vmem:[%s774 + $0x8] sm:$0xff]
        %v777 = vld [vmem:[%s774 + $0x10] sm:$0xff]
        %v778 = vld [vmem:[%s774 + $0x18] sm:$0xff]
        %779 = vmatprep.subr.mxu0 %v486
        %780 = vmatpush1.msra.mxu0 %v485
        %781 = vmatprep.subr.mxu0 %v482
        %782 = vmatpush1.msra.mxu0 %v481
        %783 = vmatprep.subr.mxu0 %v478
        %784 = vmatpush1.msra.mxu0 %v477
        %785 = vmatprep.subr.mxu0 %v474
        %786 = vmatpush1.msra.mxu0 %v473
        %787 = vmatprep.subr.mxu0 %v470
        %788 = vmatpush1.msra.mxu0 %v469
        %789 = vmatprep.subr.mxu0 %v466
        %790 = vmatpush1.msra.mxu0 %v465
        %791 = vmatprep.subr.mxu0 %v462
        %792 = vmatpush1.msra.mxu0 %v461
        %793 = vmatprep.subr.mxu0 %v458
        %794 = vmatpush1.msra.mxu0 %v457
        %795 = vmatprep.subr.mxu0 %v454
        %796 = vmatpush1.msra.mxu0 %v453
        %797 = vmatprep.subr.mxu0 %v450
        %798 = vmatpush1.msra.mxu0 %v449
        %799 = vmatprep.subr.mxu0 %v446
        %800 = vmatpush1.msra.mxu0 %v445
        %801 = vmatprep.subr.mxu0 %v442
        %802 = vmatpush1.msra.mxu0 %v441
        %803 = vmatprep.subr.mxu0 %v438
        %804 = vmatpush1.msra.mxu0 %v437
        %805 = vmatprep.subr.mxu0 %v434
        %806 = vmatpush1.msra.mxu0 %v433
        %807 = vmatprep.subr.mxu0 %v430
        %808 = vmatpush1.msra.mxu0 %v429
        %809 = vmatprep.subr.mxu0 %v426
        %810 = vmatpush1.msra.mxu0 %v425
        %811 = vmatprep.subr.mxu0 0.0
        %812 = vmatpush2.msra.mxu0 0.0
        %813 = vmatprep.subr.mxu0 0.0
        %814 = vmatpush2.msra.mxu0 0.0
        %815 = vmatprep.subr.mxu0 0.0
        %816 = vmatpush2.msra.mxu0 0.0
        %817 = vmatprep.subr.mxu0 0.0
        %818 = vmatpush2.msra.mxu0 0.0
        %819 = vmatprep.subr.mxu0 0.0
        %820 = vmatpush2.msra.mxu0 0.0
        %821 = vmatprep.subr.mxu0 0.0
        %822 = vmatpush2.msra.mxu0 0.0
        %823 = vmatprep.subr.mxu0 0.0
        %824 = vmatpush2.msra.mxu0 0.0
        %825 = vmatprep.subr.mxu0 0.0
        %826 = vmatpush2.msra.mxu0 0.0
        %827 = vmatprep.subr.mxu0 0.0
        %828 = vmatpush2.msra.mxu0 0.0
        %829 = vmatprep.subr.mxu0 0.0
        %830 = vmatpush2.msra.mxu0 0.0
        %831 = vmatprep.subr.mxu0 0.0
        %832 = vmatpush2.msra.mxu0 0.0
        %833 = vmatprep.subr.mxu0 0.0
        %834 = vmatpush2.msra.mxu0 0.0
        %835 = vmatprep.subr.mxu0 0.0
        %836 = vmatpush2.msra.mxu0 0.0
        %837 = vmatprep.subr.mxu0 0.0
        %838 = vmatpush2.msra.mxu0 0.0
        %839 = vmatprep.subr.mxu0 0.0
        %840 = vmatpush2.msra.mxu0 0.0
        %841 = vmatprep.subr.mxu0 0.0
        %842 = vmatpush2.msra.mxu0 0.0
        %843 = vmatprep.mubr.f32.mxu0 0.0
        %844 = vmatmul.mubr.f32.gmra.mxu0 %v772
        %v845 = vpop.f32.mrf.mxu0
        %v846 = vadd.f32 0.0, %v845
        %v847 = vpop.f32.mrf.mxu0
        %v848 = vadd.f32 0.0, %v847
        %849 = vdwg.mxu0
        %850 = vmatprep.subr.mxu0 %v488
        %851 = vmatpush1.msra.mxu0 %v487
        %852 = vmatprep.subr.mxu0 %v484
        %853 = vmatpush1.msra.mxu0 %v483
        %854 = vmatprep.subr.mxu0 %v480
        %855 = vmatpush1.msra.mxu0 %v479
        %856 = vmatprep.subr.mxu0 %v476
        %857 = vmatpush1.msra.mxu0 %v475
        %858 = vmatprep.subr.mxu0 %v472
        %859 = vmatpush1.msra.mxu0 %v471
        %860 = vmatprep.subr.mxu0 %v468
        %861 = vmatpush1.msra.mxu0 %v467
        %862 = vmatprep.subr.mxu0 %v464
        %863 = vmatpush1.msra.mxu0 %v463
        %864 = vmatprep.subr.mxu0 %v460
        %865 = vmatpush1.msra.mxu0 %v459
        %866 = vmatprep.subr.mxu0 %v456
        %867 = vmatpush1.msra.mxu0 %v455
        %868 = vmatprep.subr.mxu0 %v452
        %869 = vmatpush1.msra.mxu0 %v451
        %870 = vmatprep.subr.mxu0 %v448
        %871 = vmatpush1.msra.mxu0 %v447
        %872 = vmatprep.subr.mxu0 %v444
        %873 = vmatpush1.msra.mxu0 %v443
        %874 = vmatprep.subr.mxu0 %v440
        %875 = vmatpush1.msra.mxu0 %v439
        %876 = vmatprep.subr.mxu0 %v436
        %877 = vmatpush1.msra.mxu0 %v435
        %878 = vmatprep.subr.mxu0 %v432
        %879 = vmatpush1.msra.mxu0 %v431
        %880 = vmatprep.subr.mxu0 %v428
        %881 = vmatpush1.msra.mxu0 %v427
        %882 = vmatprep.subr.mxu0 0.0
        %883 = vmatpush2.msra.mxu0 0.0
        %884 = vmatprep.subr.mxu0 0.0
        %885 = vmatpush2.msra.mxu0 0.0
        %886 = vmatprep.subr.mxu0 0.0
        %887 = vmatpush2.msra.mxu0 0.0
        %888 = vmatprep.subr.mxu0 0.0
        %889 = vmatpush2.msra.mxu0 0.0
        %890 = vmatprep.subr.mxu0 0.0
        %891 = vmatpush2.msra.mxu0 0.0
        %892 = vmatprep.subr.mxu0 0.0
        %893 = vmatpush2.msra.mxu0 0.0
        %894 = vmatprep.subr.mxu0 0.0
        %895 = vmatpush2.msra.mxu0 0.0
        %896 = vmatprep.subr.mxu0 0.0
        %897 = vmatpush2.msra.mxu0 0.0
        %898 = vmatprep.subr.mxu0 0.0
        %899 = vmatpush2.msra.mxu0 0.0
        %900 = vmatprep.subr.mxu0 0.0
        %901 = vmatpush2.msra.mxu0 0.0
        %902 = vmatprep.subr.mxu0 0.0
        %903 = vmatpush2.msra.mxu0 0.0
        %904 = vmatprep.subr.mxu0 0.0
        %905 = vmatpush2.msra.mxu0 0.0
        %906 = vmatprep.subr.mxu0 0.0
        %907 = vmatpush2.msra.mxu0 0.0
        %908 = vmatprep.subr.mxu0 0.0
        %909 = vmatpush2.msra.mxu0 0.0
        %910 = vmatprep.subr.mxu0 0.0
        %911 = vmatpush2.msra.mxu0 0.0
        %912 = vmatprep.subr.mxu0 0.0
        %913 = vmatpush2.msra.mxu0 0.0
        %914 = vmatprep.mubr.f32.mxu0 0.0
        %915 = vmatmul.mubr.f32.gmra.mxu0 %v772
        %v916 = vpop.f32.mrf.mxu0
        %v917 = vadd.f32 0.0, %v916
        %v918 = vpop.f32.mrf.mxu0
        %v919 = vadd.f32 0.0, %v918
        %920 = vdwg.mxu0
        %v921 = vadd.f32 %v775, %v846
        %v922 = vadd.f32 %v776, %v848
        %v923 = vadd.f32 %v777, %v917
        %v924 = vadd.f32 %v778, %v919
        %925 = vadd.xlane.f32.xlu0 %v921
        %v926 = vpop.xlane.xlu0 %925
        %v927 = vmul.f32 %v926, %v645
        %v928 = vsub.f32 %v921, %v927
        %v929 = vmul.f32 %v928, %v928
        %930 = vadd.xlane.f32.xlu0 %v929
        %v931 = vpop.xlane.xlu0 %930
        %v932 = vmul.f32 %v931, %v645
        %v933 = vadd.f32 %v932, 1e-05
        %v934 = vrsqrt.pop %v933
        %v935 = vmul.f32 %v928, %v934
        %v936 = vmul.f32 %v935, %v658
        %v937 = vadd.f32 %v936, %v663
        %v938 = vxor.u32 %v937, 2147483648
        %v939 = vmul.f32 %v938, 1.442695
        %v940 = vpow.pop %v939
        %v941 = vadd.f32 %v940, 1.0
        %v942 = vrcp.pop %v941
        %v943 = vmul.f32 1.0, %v942
        %944 = vadd.xlane.f32.xlu0 %v922
        %v945 = vpop.xlane.xlu0 %944
        %v946 = vmul.f32 %v945, %v645
        %v947 = vsub.f32 %v922, %v946
        %v948 = vmul.f32 %v947, %v947
        %949 = vadd.xlane.f32.xlu0 %v948
        %v950 = vpop.xlane.xlu0 %949
        %v951 = vmul.f32 %v950, %v645
        %v952 = vadd.f32 %v951, 1e-05
        %v953 = vrsqrt.pop %v952
        %v954 = vmul.f32 %v947, %v953
        %v955 = vmul.f32 %v954, %v685
        %v956 = vadd.f32 %v955, %v690
        %v957 = vxor.u32 %v956, 2147483648
        %v958 = vmul.f32 %v957, 1.442695
        %v959 = vpow.pop %v958
        %v960 = vadd.f32 %v959, 1.0
        %v961 = vrcp.pop %v960
        %v962 = vmul.f32 1.0, %v961
        %963 = vadd.xlane.f32.xlu0 %v923
        %v964 = vpop.xlane.xlu0 %963
        %v965 = vmul.f32 %v964, %v645
        %v966 = vsub.f32 %v923, %v965
        %v967 = vmul.f32 %v966, %v966
        %968 = vadd.xlane.f32.xlu0 %v967
        %v969 = vpop.xlane.xlu0 %968
        %v970 = vmul.f32 %v969, %v645
        %v971 = vadd.f32 %v970, 1e-05
        %v972 = vrsqrt.pop %v971
        %v973 = vmul.f32 %v966, %v972
        %v974 = vmul.f32 %v973, %v712
        %v975 = vadd.f32 %v974, %v717
        %v976 = vtanh.pop %v975
        %977 = vadd.xlane.f32.xlu0 %v924
        %v978 = vpop.xlane.xlu0 %977
        %v979 = vmul.f32 %v978, %v645
        %v980 = vsub.f32 %v924, %v979
        %v981 = vmul.f32 %v980, %v980
        %982 = vadd.xlane.f32.xlu0 %v981
        %v983 = vpop.xlane.xlu0 %982
        %v984 = vmul.f32 %v983, %v645
        %v985 = vadd.f32 %v984, 1e-05
        %v986 = vrsqrt.pop %v985
        %v987 = vmul.f32 %v980, %v986
        %v988 = vmul.f32 %v987, %v734
        %v989 = vadd.f32 %v988, %v739
        %v990 = vxor.u32 %v989, 2147483648
        %v991 = vmul.f32 %v990, 1.442695
        %v992 = vpow.pop %v991
        %v993 = vadd.f32 %v992, 1.0
        %v994 = vrcp.pop %v993
        %v995 = vmul.f32 1.0, %v994
        %v996 = vmul.f32 %v962, %v770
        %v997 = vmul.f32 %v943, %v976
        %v998 = vadd.f32 %v996, %v997
        %999 = vadd.xlane.f32.xlu0 %v998
        %v1000 = vpop.xlane.xlu0 %999
        %v1001 = vmul.f32 %v1000, %v645
        %v1002 = vsub.f32 %v998, %v1001
        %v1003 = vmul.f32 %v1002, %v1002
        %1004 = vadd.xlane.f32.xlu0 %v1003
        %v1005 = vpop.xlane.xlu0 %1004
        %v1006 = vmul.f32 %v1005, %v645
        %v1007 = vadd.f32 %v1006, 1e-05
        %v1008 = vrsqrt.pop %v1007
        %v1009 = vmul.f32 %v1002, %v1008
        %v1010 = vmul.f32 %v1009, %v764
        %v1011 = vadd.f32 %v1010, %v769
        %v1012 = vtanh.pop %v1011
        %v1013 = vmul.f32 %v995, %v1012
        %s1014 = scalar_lea.vmem %s410, 8 [#allocation13]
        %1015 = vst [vmem:[%s1014] sm:$0xff] %v1013
        %s1016 = scalar_lea.vmem %s366, 64 [#allocation4]
        %v1017 = vld [vmem:[%s1016] sm:$0xff]
        %v1018 = vld [vmem:[%s1016 + $0x8] sm:$0xff]
        %v1019 = vld [vmem:[%s1016 + $0x10] sm:$0xff]
        %v1020 = vld [vmem:[%s1016 + $0x18] sm:$0xff]
        %1021 = vmatprep.subr.mxu0 %v486
        %1022 = vmatpush1.msra.mxu0 %v485
        %1023 = vmatprep.subr.mxu0 %v482
        %1024 = vmatpush1.msra.mxu0 %v481
        %1025 = vmatprep.subr.mxu0 %v478
        %1026 = vmatpush1.msra.mxu0 %v477
        %1027 = vmatprep.subr.mxu0 %v474
        %1028 = vmatpush1.msra.mxu0 %v473
        %1029 = vmatprep.subr.mxu0 %v470
        %1030 = vmatpush1.msra.mxu0 %v469
        %1031 = vmatprep.subr.mxu0 %v466
        %1032 = vmatpush1.msra.mxu0 %v465
        %1033 = vmatprep.subr.mxu0 %v462
        %1034 = vmatpush1.msra.mxu0 %v461
        %1035 = vmatprep.subr.mxu0 %v458
        %1036 = vmatpush1.msra.mxu0 %v457
        %1037 = vmatprep.subr.mxu0 %v454
        %1038 = vmatpush1.msra.mxu0 %v453
        %1039 = vmatprep.subr.mxu0 %v450
        %1040 = vmatpush1.msra.mxu0 %v449
        %1041 = vmatprep.subr.mxu0 %v446
        %1042 = vmatpush1.msra.mxu0 %v445
        %1043 = vmatprep.subr.mxu0 %v442
        %1044 = vmatpush1.msra.mxu0 %v441
        %1045 = vmatprep.subr.mxu0 %v438
        %1046 = vmatpush1.msra.mxu0 %v437
        %1047 = vmatprep.subr.mxu0 %v434
        %1048 = vmatpush1.msra.mxu0 %v433
        %1049 = vmatprep.subr.mxu0 %v430
        %1050 = vmatpush1.msra.mxu0 %v429
        %1051 = vmatprep.subr.mxu0 %v426
        %1052 = vmatpush1.msra.mxu0 %v425
        %1053 = vmatprep.subr.mxu0 0.0
        %1054 = vmatpush2.msra.mxu0 0.0
        %1055 = vmatprep.subr.mxu0 0.0
        %1056 = vmatpush2.msra.mxu0 0.0
        %1057 = vmatprep.subr.mxu0 0.0
        %1058 = vmatpush2.msra.mxu0 0.0
        %1059 = vmatprep.subr.mxu0 0.0
        %1060 = vmatpush2.msra.mxu0 0.0
        %1061 = vmatprep.subr.mxu0 0.0
        %1062 = vmatpush2.msra.mxu0 0.0
        %1063 = vmatprep.subr.mxu0 0.0
        %1064 = vmatpush2.msra.mxu0 0.0
        %1065 = vmatprep.subr.mxu0 0.0
        %1066 = vmatpush2.msra.mxu0 0.0
        %1067 = vmatprep.subr.mxu0 0.0
        %1068 = vmatpush2.msra.mxu0 0.0
        %1069 = vmatprep.subr.mxu0 0.0
        %1070 = vmatpush2.msra.mxu0 0.0
        %1071 = vmatprep.subr.mxu0 0.0
        %1072 = vmatpush2.msra.mxu0 0.0
        %1073 = vmatprep.subr.mxu0 0.0
        %1074 = vmatpush2.msra.mxu0 0.0
        %1075 = vmatprep.subr.mxu0 0.0
        %1076 = vmatpush2.msra.mxu0 0.0
        %1077 = vmatprep.subr.mxu0 0.0
        %1078 = vmatpush2.msra.mxu0 0.0
        %1079 = vmatprep.subr.mxu0 0.0
        %1080 = vmatpush2.msra.mxu0 0.0
        %1081 = vmatprep.subr.mxu0 0.0
        %1082 = vmatpush2.msra.mxu0 0.0
        %1083 = vmatprep.subr.mxu0 0.0
        %1084 = vmatpush2.msra.mxu0 0.0
        %1085 = vmatprep.mubr.f32.mxu0 0.0
        %1086 = vmatmul.mubr.f32.gmra.mxu0 %v1013
        %v1087 = vpop.f32.mrf.mxu0
        %v1088 = vadd.f32 0.0, %v1087
        %v1089 = vpop.f32.mrf.mxu0
        %v1090 = vadd.f32 0.0, %v1089
        %1091 = vdwg.mxu0
        %1092 = vmatprep.subr.mxu0 %v488
        %1093 = vmatpush1.msra.mxu0 %v487
        %1094 = vmatprep.subr.mxu0 %v484
        %1095 = vmatpush1.msra.mxu0 %v483
        %1096 = vmatprep.subr.mxu0 %v480
        %1097 = vmatpush1.msra.mxu0 %v479
        %1098 = vmatprep.subr.mxu0 %v476
        %1099 = vmatpush1.msra.mxu0 %v475
        %1100 = vmatprep.subr.mxu0 %v472
        %1101 = vmatpush1.msra.mxu0 %v471
        %1102 = vmatprep.subr.mxu0 %v468
        %1103 = vmatpush1.msra.mxu0 %v467
        %1104 = vmatprep.subr.mxu0 %v464
        %1105 = vmatpush1.msra.mxu0 %v463
        %1106 = vmatprep.subr.mxu0 %v460
        %1107 = vmatpush1.msra.mxu0 %v459
        %1108 = vmatprep.subr.mxu0 %v456
        %1109 = vmatpush1.msra.mxu0 %v455
        %1110 = vmatprep.subr.mxu0 %v452
        %1111 = vmatpush1.msra.mxu0 %v451
        %1112 = vmatprep.subr.mxu0 %v448
        %1113 = vmatpush1.msra.mxu0 %v447
        %1114 = vmatprep.subr.mxu0 %v444
        %1115 = vmatpush1.msra.mxu0 %v443
        %1116 = vmatprep.subr.mxu0 %v440
        %1117 = vmatpush1.msra.mxu0 %v439
        %1118 = vmatprep.subr.mxu0 %v436
        %1119 = vmatpush1.msra.mxu0 %v435
        %1120 = vmatprep.subr.mxu0 %v432
        %1121 = vmatpush1.msra.mxu0 %v431
        %1122 = vmatprep.subr.mxu0 %v428
        %1123 = vmatpush1.msra.mxu0 %v427
        %1124 = vmatprep.subr.mxu0 0.0
        %1125 = vmatpush2.msra.mxu0 0.0
        %1126 = vmatprep.subr.mxu0 0.0
        %1127 = vmatpush2.msra.mxu0 0.0
        %1128 = vmatprep.subr.mxu0 0.0
        %1129 = vmatpush2.msra.mxu0 0.0
        %1130 = vmatprep.subr.mxu0 0.0
        %1131 = vmatpush2.msra.mxu0 0.0
        %1132 = vmatprep.subr.mxu0 0.0
        %1133 = vmatpush2.msra.mxu0 0.0
        %1134 = vmatprep.subr.mxu0 0.0
        %1135 = vmatpush2.msra.mxu0 0.0
        %1136 = vmatprep.subr.mxu0 0.0
        %1137 = vmatpush2.msra.mxu0 0.0
        %1138 = vmatprep.subr.mxu0 0.0
        %1139 = vmatpush2.msra.mxu0 0.0
        %1140 = vmatprep.subr.mxu0 0.0
        %1141 = vmatpush2.msra.mxu0 0.0
        %1142 = vmatprep.subr.mxu0 0.0
        %1143 = vmatpush2.msra.mxu0 0.0
        %1144 = vmatprep.subr.mxu0 0.0
        %1145 = vmatpush2.msra.mxu0 0.0
        %1146 = vmatprep.subr.mxu0 0.0
        %1147 = vmatpush2.msra.mxu0 0.0
        %1148 = vmatprep.subr.mxu0 0.0
        %1149 = vmatpush2.msra.mxu0 0.0
        %1150 = vmatprep.subr.mxu0 0.0
        %1151 = vmatpush2.msra.mxu0 0.0
        %1152 = vmatprep.subr.mxu0 0.0
        %1153 = vmatpush2.msra.mxu0 0.0
        %1154 = vmatprep.subr.mxu0 0.0
        %1155 = vmatpush2.msra.mxu0 0.0
        %1156 = vmatprep.mubr.f32.mxu0 0.0
        %1157 = vmatmul.mubr.f32.gmra.mxu0 %v1013
        %v1158 = vpop.f32.mrf.mxu0
        %v1159 = vadd.f32 0.0, %v1158
        %v1160 = vpop.f32.mrf.mxu0
        %v1161 = vadd.f32 0.0, %v1160
        %1162 = vdwg.mxu0
        %v1163 = vadd.f32 %v1017, %v1088
        %v1164 = vadd.f32 %v1018, %v1090
        %v1165 = vadd.f32 %v1019, %v1159
        %v1166 = vadd.f32 %v1020, %v1161
        %1167 = vadd.xlane.f32.xlu0 %v1163
        %v1168 = vpop.xlane.xlu0 %1167
        %v1169 = vmul.f32 %v1168, %v645
        %v1170 = vsub.f32 %v1163, %v1169
        %v1171 = vmul.f32 %v1170, %v1170
        %1172 = vadd.xlane.f32.xlu0 %v1171
        %v1173 = vpop.xlane.xlu0 %1172
        %v1174 = vmul.f32 %v1173, %v645
        %v1175 = vadd.f32 %v1174, 1e-05
        %v1176 = vrsqrt.pop %v1175
        %v1177 = vmul.f32 %v1170, %v1176
        %v1178 = vmul.f32 %v1177, %v658
        %v1179 = vadd.f32 %v1178, %v663
        %v1180 = vxor.u32 %v1179, 2147483648
        %v1181 = vmul.f32 %v1180, 1.442695
        %v1182 = vpow.pop %v1181
        %v1183 = vadd.f32 %v1182, 1.0
        %v1184 = vrcp.pop %v1183
        %v1185 = vmul.f32 1.0, %v1184
        %1186 = vadd.xlane.f32.xlu0 %v1164
        %v1187 = vpop.xlane.xlu0 %1186
        %v1188 = vmul.f32 %v1187, %v645
        %v1189 = vsub.f32 %v1164, %v1188
        %v1190 = vmul.f32 %v1189, %v1189
        %1191 = vadd.xlane.f32.xlu0 %v1190
        %v1192 = vpop.xlane.xlu0 %1191
        %v1193 = vmul.f32 %v1192, %v645
        %v1194 = vadd.f32 %v1193, 1e-05
        %v1195 = vrsqrt.pop %v1194
        %v1196 = vmul.f32 %v1189, %v1195
        %v1197 = vmul.f32 %v1196, %v685
        %v1198 = vadd.f32 %v1197, %v690
        %v1199 = vxor.u32 %v1198, 2147483648
        %v1200 = vmul.f32 %v1199, 1.442695
        %v1201 = vpow.pop %v1200
        %v1202 = vadd.f32 %v1201, 1.0
        %v1203 = vrcp.pop %v1202
        %v1204 = vmul.f32 1.0, %v1203
        %1205 = vadd.xlane.f32.xlu0 %v1165
        %v1206 = vpop.xlane.xlu0 %1205
        %v1207 = vmul.f32 %v1206, %v645
        %v1208 = vsub.f32 %v1165, %v1207
        %v1209 = vmul.f32 %v1208, %v1208
        %1210 = vadd.xlane.f32.xlu0 %v1209
        %v1211 = vpop.xlane.xlu0 %1210
        %v1212 = vmul.f32 %v1211, %v645
        %v1213 = vadd.f32 %v1212, 1e-05
        %v1214 = vrsqrt.pop %v1213
        %v1215 = vmul.f32 %v1208, %v1214
        %v1216 = vmul.f32 %v1215, %v712
        %v1217 = vadd.f32 %v1216, %v717
        %v1218 = vtanh.pop %v1217
        %1219 = vadd.xlane.f32.xlu0 %v1166
        %v1220 = vpop.xlane.xlu0 %1219
        %v1221 = vmul.f32 %v1220, %v645
        %v1222 = vsub.f32 %v1166, %v1221
        %v1223 = vmul.f32 %v1222, %v1222
        %1224 = vadd.xlane.f32.xlu0 %v1223
        %v1225 = vpop.xlane.xlu0 %1224
        %v1226 = vmul.f32 %v1225, %v645
        %v1227 = vadd.f32 %v1226, 1e-05
        %v1228 = vrsqrt.pop %v1227
        %v1229 = vmul.f32 %v1222, %v1228
        %v1230 = vmul.f32 %v1229, %v734
        %v1231 = vadd.f32 %v1230, %v739
        %v1232 = vxor.u32 %v1231, 2147483648
        %v1233 = vmul.f32 %v1232, 1.442695
        %v1234 = vpow.pop %v1233
        %v1235 = vadd.f32 %v1234, 1.0
        %v1236 = vrcp.pop %v1235
        %v1237 = vmul.f32 1.0, %v1236
        %v1238 = vmul.f32 %v1204, %v1011
        %v1239 = vmul.f32 %v1185, %v1218
        %v1240 = vadd.f32 %v1238, %v1239
        %1241 = vadd.xlane.f32.xlu0 %v1240
        %v1242 = vpop.xlane.xlu0 %1241
        %v1243 = vmul.f32 %v1242, %v645
        %v1244 = vsub.f32 %v1240, %v1243
        %v1245 = vmul.f32 %v1244, %v1244
        %1246 = vadd.xlane.f32.xlu0 %v1245
        %v1247 = vpop.xlane.xlu0 %1246
        %v1248 = vmul.f32 %v1247, %v645
        %v1249 = vadd.f32 %v1248, 1e-05
        %v1250 = vrsqrt.pop %v1249
        %v1251 = vmul.f32 %v1244, %v1250
        %v1252 = vmul.f32 %v1251, %v764
        %v1253 = vadd.f32 %v1252, %v769
        %v1254 = vtanh.pop %v1253
        %v1255 = vmul.f32 %v1237, %v1254
        %s1256 = scalar_lea.vmem %s410, 16 [#allocation13]
        %1257 = vst [vmem:[%s1256] sm:$0xff] %v1255
        %s1258 = scalar_lea.vmem %s366, 96 [#allocation4]
        %v1259 = vld [vmem:[%s1258] sm:$0xff]
        %v1260 = vld [vmem:[%s1258 + $0x8] sm:$0xff]
        %v1261 = vld [vmem:[%s1258 + $0x10] sm:$0xff]
        %v1262 = vld [vmem:[%s1258 + $0x18] sm:$0xff]
        %1263 = vmatprep.subr.mxu0 %v486
        %1264 = vmatpush1.msra.mxu0 %v485
        %1265 = vmatprep.subr.mxu0 %v482
        %1266 = vmatpush1.msra.mxu0 %v481
        %1267 = vmatprep.subr.mxu0 %v478
        %1268 = vmatpush1.msra.mxu0 %v477
        %1269 = vmatprep.subr.mxu0 %v474
        %1270 = vmatpush1.msra.mxu0 %v473
        %1271 = vmatprep.subr.mxu0 %v470
        %1272 = vmatpush1.msra.mxu0 %v469
        %1273 = vmatprep.subr.mxu0 %v466
        %1274 = vmatpush1.msra.mxu0 %v465
        %1275 = vmatprep.subr.mxu0 %v462
        %1276 = vmatpush1.msra.mxu0 %v461
        %1277 = vmatprep.subr.mxu0 %v458
        %1278 = vmatpush1.msra.mxu0 %v457
        %1279 = vmatprep.subr.mxu0 %v454
        %1280 = vmatpush1.msra.mxu0 %v453
        %1281 = vmatprep.subr.mxu0 %v450
        %1282 = vmatpush1.msra.mxu0 %v449
        %1283 = vmatprep.subr.mxu0 %v446
        %1284 = vmatpush1.msra.mxu0 %v445
        %1285 = vmatprep.subr.mxu0 %v442
        %1286 = vmatpush1.msra.mxu0 %v441
        %1287 = vmatprep.subr.mxu0 %v438
        %1288 = vmatpush1.msra.mxu0 %v437
        %1289 = vmatprep.subr.mxu0 %v434
        %1290 = vmatpush1.msra.mxu0 %v433
        %1291 = vmatprep.subr.mxu0 %v430
        %1292 = vmatpush1.msra.mxu0 %v429
        %1293 = vmatprep.subr.mxu0 %v426
        %1294 = vmatpush1.msra.mxu0 %v425
        %1295 = vmatprep.subr.mxu0 0.0
        %1296 = vmatpush2.msra.mxu0 0.0
        %1297 = vmatprep.subr.mxu0 0.0
        %1298 = vmatpush2.msra.mxu0 0.0
        %1299 = vmatprep.subr.mxu0 0.0
        %1300 = vmatpush2.msra.mxu0 0.0
        %1301 = vmatprep.subr.mxu0 0.0
        %1302 = vmatpush2.msra.mxu0 0.0
        %1303 = vmatprep.subr.mxu0 0.0
        %1304 = vmatpush2.msra.mxu0 0.0
        %1305 = vmatprep.subr.mxu0 0.0
        %1306 = vmatpush2.msra.mxu0 0.0
        %1307 = vmatprep.subr.mxu0 0.0
        %1308 = vmatpush2.msra.mxu0 0.0
        %1309 = vmatprep.subr.mxu0 0.0
        %1310 = vmatpush2.msra.mxu0 0.0
        %1311 = vmatprep.subr.mxu0 0.0
        %1312 = vmatpush2.msra.mxu0 0.0
        %1313 = vmatprep.subr.mxu0 0.0
        %1314 = vmatpush2.msra.mxu0 0.0
        %1315 = vmatprep.subr.mxu0 0.0
        %1316 = vmatpush2.msra.mxu0 0.0
        %1317 = vmatprep.subr.mxu0 0.0
        %1318 = vmatpush2.msra.mxu0 0.0
        %1319 = vmatprep.subr.mxu0 0.0
        %1320 = vmatpush2.msra.mxu0 0.0
        %1321 = vmatprep.subr.mxu0 0.0
        %1322 = vmatpush2.msra.mxu0 0.0
        %1323 = vmatprep.subr.mxu0 0.0
        %1324 = vmatpush2.msra.mxu0 0.0
        %1325 = vmatprep.subr.mxu0 0.0
        %1326 = vmatpush2.msra.mxu0 0.0
        %1327 = vmatprep.mubr.f32.mxu0 0.0
        %1328 = vmatmul.mubr.f32.gmra.mxu0 %v1255
        %v1329 = vpop.f32.mrf.mxu0
        %v1330 = vadd.f32 0.0, %v1329
        %v1331 = vpop.f32.mrf.mxu0
        %v1332 = vadd.f32 0.0, %v1331
        %1333 = vdwg.mxu0
        %1334 = vmatprep.subr.mxu0 %v488
        %1335 = vmatpush1.msra.mxu0 %v487
        %1336 = vmatprep.subr.mxu0 %v484
        %1337 = vmatpush1.msra.mxu0 %v483
        %1338 = vmatprep.subr.mxu0 %v480
        %1339 = vmatpush1.msra.mxu0 %v479
        %1340 = vmatprep.subr.mxu0 %v476
        %1341 = vmatpush1.msra.mxu0 %v475
        %1342 = vmatprep.subr.mxu0 %v472
        %1343 = vmatpush1.msra.mxu0 %v471
        %1344 = vmatprep.subr.mxu0 %v468
        %1345 = vmatpush1.msra.mxu0 %v467
        %1346 = vmatprep.subr.mxu0 %v464
        %1347 = vmatpush1.msra.mxu0 %v463
        %1348 = vmatprep.subr.mxu0 %v460
        %1349 = vmatpush1.msra.mxu0 %v459
        %1350 = vmatprep.subr.mxu0 %v456
        %1351 = vmatpush1.msra.mxu0 %v455
        %1352 = vmatprep.subr.mxu0 %v452
        %1353 = vmatpush1.msra.mxu0 %v451
        %1354 = vmatprep.subr.mxu0 %v448
        %1355 = vmatpush1.msra.mxu0 %v447
        %1356 = vmatprep.subr.mxu0 %v444
        %1357 = vmatpush1.msra.mxu0 %v443
        %1358 = vmatprep.subr.mxu0 %v440
        %1359 = vmatpush1.msra.mxu0 %v439
        %1360 = vmatprep.subr.mxu0 %v436
        %1361 = vmatpush1.msra.mxu0 %v435
        %1362 = vmatprep.subr.mxu0 %v432
        %1363 = vmatpush1.msra.mxu0 %v431
        %1364 = vmatprep.subr.mxu0 %v428
        %1365 = vmatpush1.msra.mxu0 %v427
        %1366 = vmatprep.subr.mxu0 0.0
        %1367 = vmatpush2.msra.mxu0 0.0
        %1368 = vmatprep.subr.mxu0 0.0
        %1369 = vmatpush2.msra.mxu0 0.0
        %1370 = vmatprep.subr.mxu0 0.0
        %1371 = vmatpush2.msra.mxu0 0.0
        %1372 = vmatprep.subr.mxu0 0.0
        %1373 = vmatpush2.msra.mxu0 0.0
        %1374 = vmatprep.subr.mxu0 0.0
        %1375 = vmatpush2.msra.mxu0 0.0
        %1376 = vmatprep.subr.mxu0 0.0
        %1377 = vmatpush2.msra.mxu0 0.0
        %1378 = vmatprep.subr.mxu0 0.0
        %1379 = vmatpush2.msra.mxu0 0.0
        %1380 = vmatprep.subr.mxu0 0.0
        %1381 = vmatpush2.msra.mxu0 0.0
        %1382 = vmatprep.subr.mxu0 0.0
        %1383 = vmatpush2.msra.mxu0 0.0
        %1384 = vmatprep.subr.mxu0 0.0
        %1385 = vmatpush2.msra.mxu0 0.0
        %1386 = vmatprep.subr.mxu0 0.0
        %1387 = vmatpush2.msra.mxu0 0.0
        %1388 = vmatprep.subr.mxu0 0.0
        %1389 = vmatpush2.msra.mxu0 0.0
        %1390 = vmatprep.subr.mxu0 0.0
        %1391 = vmatpush2.msra.mxu0 0.0
        %1392 = vmatprep.subr.mxu0 0.0
        %1393 = vmatpush2.msra.mxu0 0.0
        %1394 = vmatprep.subr.mxu0 0.0
        %1395 = vmatpush2.msra.mxu0 0.0
        %1396 = vmatprep.subr.mxu0 0.0
        %1397 = vmatpush2.msra.mxu0 0.0
        %1398 = vmatprep.mubr.f32.mxu0 0.0
        %1399 = vmatmul.mubr.f32.gmra.mxu0 %v1255
        %v1400 = vpop.f32.mrf.mxu0
        %v1401 = vadd.f32 0.0, %v1400
        %v1402 = vpop.f32.mrf.mxu0
        %v1403 = vadd.f32 0.0, %v1402
        %1404 = vdwg.mxu0
        %v1405 = vadd.f32 %v1259, %v1330
        %v1406 = vadd.f32 %v1260, %v1332
        %v1407 = vadd.f32 %v1261, %v1401
        %v1408 = vadd.f32 %v1262, %v1403
        %1409 = vadd.xlane.f32.xlu0 %v1405
        %v1410 = vpop.xlane.xlu0 %1409
        %v1411 = vmul.f32 %v1410, %v645
        %v1412 = vsub.f32 %v1405, %v1411
        %v1413 = vmul.f32 %v1412, %v1412
        %1414 = vadd.xlane.f32.xlu0 %v1413
        %v1415 = vpop.xlane.xlu0 %1414
        %v1416 = vmul.f32 %v1415, %v645
        %v1417 = vadd.f32 %v1416, 1e-05
        %v1418 = vrsqrt.pop %v1417
        %v1419 = vmul.f32 %v1412, %v1418
        %v1420 = vmul.f32 %v1419, %v658
        %v1421 = vadd.f32 %v1420, %v663
        %v1422 = vxor.u32 %v1421, 2147483648
        %v1423 = vmul.f32 %v1422, 1.442695
        %v1424 = vpow.pop %v1423
        %v1425 = vadd.f32 %v1424, 1.0
        %v1426 = vrcp.pop %v1425
        %v1427 = vmul.f32 1.0, %v1426
        %1428 = vadd.xlane.f32.xlu0 %v1406
        %v1429 = vpop.xlane.xlu0 %1428
        %v1430 = vmul.f32 %v1429, %v645
        %v1431 = vsub.f32 %v1406, %v1430
        %v1432 = vmul.f32 %v1431, %v1431
        %1433 = vadd.xlane.f32.xlu0 %v1432
        %v1434 = vpop.xlane.xlu0 %1433
        %v1435 = vmul.f32 %v1434, %v645
        %v1436 = vadd.f32 %v1435, 1e-05
        %v1437 = vrsqrt.pop %v1436
        %v1438 = vmul.f32 %v1431, %v1437
        %v1439 = vmul.f32 %v1438, %v685
        %v1440 = vadd.f32 %v1439, %v690
        %v1441 = vxor.u32 %v1440, 2147483648
        %v1442 = vmul.f32 %v1441, 1.442695
        %v1443 = vpow.pop %v1442
        %v1444 = vadd.f32 %v1443, 1.0
        %v1445 = vrcp.pop %v1444
        %v1446 = vmul.f32 1.0, %v1445
        %1447 = vadd.xlane.f32.xlu0 %v1407
        %v1448 = vpop.xlane.xlu0 %1447
        %v1449 = vmul.f32 %v1448, %v645
        %v1450 = vsub.f32 %v1407, %v1449
        %v1451 = vmul.f32 %v1450, %v1450
        %1452 = vadd.xlane.f32.xlu0 %v1451
        %v1453 = vpop.xlane.xlu0 %1452
        %v1454 = vmul.f32 %v1453, %v645
        %v1455 = vadd.f32 %v1454, 1e-05
        %v1456 = vrsqrt.pop %v1455
        %v1457 = vmul.f32 %v1450, %v1456
        %v1458 = vmul.f32 %v1457, %v712
        %v1459 = vadd.f32 %v1458, %v717
        %v1460 = vtanh.pop %v1459
        %1461 = vadd.xlane.f32.xlu0 %v1408
        %v1462 = vpop.xlane.xlu0 %1461
        %v1463 = vmul.f32 %v1462, %v645
        %v1464 = vsub.f32 %v1408, %v1463
        %v1465 = vmul.f32 %v1464, %v1464
        %1466 = vadd.xlane.f32.xlu0 %v1465
        %v1467 = vpop.xlane.xlu0 %1466
        %v1468 = vmul.f32 %v1467, %v645
        %v1469 = vadd.f32 %v1468, 1e-05
        %v1470 = vrsqrt.pop %v1469
        %v1471 = vmul.f32 %v1464, %v1470
        %v1472 = vmul.f32 %v1471, %v734
        %v1473 = vadd.f32 %v1472, %v739
        %v1474 = vxor.u32 %v1473, 2147483648
        %v1475 = vmul.f32 %v1474, 1.442695
        %v1476 = vpow.pop %v1475
        %v1477 = vadd.f32 %v1476, 1.0
        %v1478 = vrcp.pop %v1477
        %v1479 = vmul.f32 1.0, %v1478
        %v1480 = vmul.f32 %v1446, %v1253
        %v1481 = vmul.f32 %v1427, %v1460
        %v1482 = vadd.f32 %v1480, %v1481
        %1483 = vadd.xlane.f32.xlu0 %v1482
        %v1484 = vpop.xlane.xlu0 %1483
        %v1485 = vmul.f32 %v1484, %v645
        %v1486 = vsub.f32 %v1482, %v1485
        %v1487 = vmul.f32 %v1486, %v1486
        %1488 = vadd.xlane.f32.xlu0 %v1487
        %v1489 = vpop.xlane.xlu0 %1488
        %v1490 = vmul.f32 %v1489, %v645
        %v1491 = vadd.f32 %v1490, 1e-05
        %v1492 = vrsqrt.pop %v1491
        %v1493 = vmul.f32 %v1486, %v1492
        %v1494 = vmul.f32 %v1493, %v764
        %v1495 = vadd.f32 %v1494, %v769
        %v1496 = vtanh.pop %v1495
        %v1497 = vmul.f32 %v1479, %v1496
        %s1498 = scalar_lea.vmem %s410, 24 [#allocation13]
        %1499 = vst [vmem:[%s1498] sm:$0xff] %v1497
        %s1500 = scalar_lea.vmem %s366, 128 [#allocation4]
        %v1501 = vld [vmem:[%s1500] sm:$0xff]
        %v1502 = vld [vmem:[%s1500 + $0x8] sm:$0xff]
        %v1503 = vld [vmem:[%s1500 + $0x10] sm:$0xff]
        %v1504 = vld [vmem:[%s1500 + $0x18] sm:$0xff]
        %1505 = vmatprep.subr.mxu0 %v486
        %1506 = vmatpush1.msra.mxu0 %v485
        %1507 = vmatprep.subr.mxu0 %v482
        %1508 = vmatpush1.msra.mxu0 %v481
        %1509 = vmatprep.subr.mxu0 %v478
        %1510 = vmatpush1.msra.mxu0 %v477
        %1511 = vmatprep.subr.mxu0 %v474
        %1512 = vmatpush1.msra.mxu0 %v473
        %1513 = vmatprep.subr.mxu0 %v470
        %1514 = vmatpush1.msra.mxu0 %v469
        %1515 = vmatprep.subr.mxu0 %v466
        %1516 = vmatpush1.msra.mxu0 %v465
        %1517 = vmatprep.subr.mxu0 %v462
        %1518 = vmatpush1.msra.mxu0 %v461
        %1519 = vmatprep.subr.mxu0 %v458
        %1520 = vmatpush1.msra.mxu0 %v457
        %1521 = vmatprep.subr.mxu0 %v454
        %1522 = vmatpush1.msra.mxu0 %v453
        %1523 = vmatprep.subr.mxu0 %v450
        %1524 = vmatpush1.msra.mxu0 %v449
        %1525 = vmatprep.subr.mxu0 %v446
        %1526 = vmatpush1.msra.mxu0 %v445
        %1527 = vmatprep.subr.mxu0 %v442
        %1528 = vmatpush1.msra.mxu0 %v441
        %1529 = vmatprep.subr.mxu0 %v438
        %1530 = vmatpush1.msra.mxu0 %v437
        %1531 = vmatprep.subr.mxu0 %v434
        %1532 = vmatpush1.msra.mxu0 %v433
        %1533 = vmatprep.subr.mxu0 %v430
        %1534 = vmatpush1.msra.mxu0 %v429
        %1535 = vmatprep.subr.mxu0 %v426
        %1536 = vmatpush1.msra.mxu0 %v425
        %1537 = vmatprep.subr.mxu0 0.0
        %1538 = vmatpush2.msra.mxu0 0.0
        %1539 = vmatprep.subr.mxu0 0.0
        %1540 = vmatpush2.msra.mxu0 0.0
        %1541 = vmatprep.subr.mxu0 0.0
        %1542 = vmatpush2.msra.mxu0 0.0
        %1543 = vmatprep.subr.mxu0 0.0
        %1544 = vmatpush2.msra.mxu0 0.0
        %1545 = vmatprep.subr.mxu0 0.0
        %1546 = vmatpush2.msra.mxu0 0.0
        %1547 = vmatprep.subr.mxu0 0.0
        %1548 = vmatpush2.msra.mxu0 0.0
        %1549 = vmatprep.subr.mxu0 0.0
        %1550 = vmatpush2.msra.mxu0 0.0
        %1551 = vmatprep.subr.mxu0 0.0
        %1552 = vmatpush2.msra.mxu0 0.0
        %1553 = vmatprep.subr.mxu0 0.0
        %1554 = vmatpush2.msra.mxu0 0.0
        %1555 = vmatprep.subr.mxu0 0.0
        %1556 = vmatpush2.msra.mxu0 0.0
        %1557 = vmatprep.subr.mxu0 0.0
        %1558 = vmatpush2.msra.mxu0 0.0
        %1559 = vmatprep.subr.mxu0 0.0
        %1560 = vmatpush2.msra.mxu0 0.0
        %1561 = vmatprep.subr.mxu0 0.0
        %1562 = vmatpush2.msra.mxu0 0.0
        %1563 = vmatprep.subr.mxu0 0.0
        %1564 = vmatpush2.msra.mxu0 0.0
        %1565 = vmatprep.subr.mxu0 0.0
        %1566 = vmatpush2.msra.mxu0 0.0
        %1567 = vmatprep.subr.mxu0 0.0
        %1568 = vmatpush2.msra.mxu0 0.0
        %1569 = vmatprep.mubr.f32.mxu0 0.0
        %1570 = vmatmul.mubr.f32.gmra.mxu0 %v1497
        %v1571 = vpop.f32.mrf.mxu0
        %v1572 = vadd.f32 0.0, %v1571
        %v1573 = vpop.f32.mrf.mxu0
        %v1574 = vadd.f32 0.0, %v1573
        %1575 = vdwg.mxu0
        %1576 = vmatprep.subr.mxu0 %v488
        %1577 = vmatpush1.msra.mxu0 %v487
        %1578 = vmatprep.subr.mxu0 %v484
        %1579 = vmatpush1.msra.mxu0 %v483
        %1580 = vmatprep.subr.mxu0 %v480
        %1581 = vmatpush1.msra.mxu0 %v479
        %1582 = vmatprep.subr.mxu0 %v476
        %1583 = vmatpush1.msra.mxu0 %v475
        %1584 = vmatprep.subr.mxu0 %v472
        %1585 = vmatpush1.msra.mxu0 %v471
        %1586 = vmatprep.subr.mxu0 %v468
        %1587 = vmatpush1.msra.mxu0 %v467
        %1588 = vmatprep.subr.mxu0 %v464
        %1589 = vmatpush1.msra.mxu0 %v463
        %1590 = vmatprep.subr.mxu0 %v460
        %1591 = vmatpush1.msra.mxu0 %v459
        %1592 = vmatprep.subr.mxu0 %v456
        %1593 = vmatpush1.msra.mxu0 %v455
        %1594 = vmatprep.subr.mxu0 %v452
        %1595 = vmatpush1.msra.mxu0 %v451
        %1596 = vmatprep.subr.mxu0 %v448
        %1597 = vmatpush1.msra.mxu0 %v447
        %1598 = vmatprep.subr.mxu0 %v444
        %1599 = vmatpush1.msra.mxu0 %v443
        %1600 = vmatprep.subr.mxu0 %v440
        %1601 = vmatpush1.msra.mxu0 %v439
        %1602 = vmatprep.subr.mxu0 %v436
        %1603 = vmatpush1.msra.mxu0 %v435
        %1604 = vmatprep.subr.mxu0 %v432
        %1605 = vmatpush1.msra.mxu0 %v431
        %1606 = vmatprep.subr.mxu0 %v428
        %1607 = vmatpush1.msra.mxu0 %v427
        %1608 = vmatprep.subr.mxu0 0.0
        %1609 = vmatpush2.msra.mxu0 0.0
        %1610 = vmatprep.subr.mxu0 0.0
        %1611 = vmatpush2.msra.mxu0 0.0
        %1612 = vmatprep.subr.mxu0 0.0
        %1613 = vmatpush2.msra.mxu0 0.0
        %1614 = vmatprep.subr.mxu0 0.0
        %1615 = vmatpush2.msra.mxu0 0.0
        %1616 = vmatprep.subr.mxu0 0.0
        %1617 = vmatpush2.msra.mxu0 0.0
        %1618 = vmatprep.subr.mxu0 0.0
        %1619 = vmatpush2.msra.mxu0 0.0
        %1620 = vmatprep.subr.mxu0 0.0
        %1621 = vmatpush2.msra.mxu0 0.0
        %1622 = vmatprep.subr.mxu0 0.0
        %1623 = vmatpush2.msra.mxu0 0.0
        %1624 = vmatprep.subr.mxu0 0.0
        %1625 = vmatpush2.msra.mxu0 0.0
        %1626 = vmatprep.subr.mxu0 0.0
        %1627 = vmatpush2.msra.mxu0 0.0
        %1628 = vmatprep.subr.mxu0 0.0
        %1629 = vmatpush2.msra.mxu0 0.0
        %1630 = vmatprep.subr.mxu0 0.0
        %1631 = vmatpush2.msra.mxu0 0.0
        %1632 = vmatprep.subr.mxu0 0.0
        %1633 = vmatpush2.msra.mxu0 0.0
        %1634 = vmatprep.subr.mxu0 0.0
        %1635 = vmatpush2.msra.mxu0 0.0
        %1636 = vmatprep.subr.mxu0 0.0
        %1637 = vmatpush2.msra.mxu0 0.0
        %1638 = vmatprep.subr.mxu0 0.0
        %1639 = vmatpush2.msra.mxu0 0.0
        %1640 = vmatprep.mubr.f32.mxu0 0.0
        %1641 = vmatmul.mubr.f32.gmra.mxu0 %v1497
        %v1642 = vpop.f32.mrf.mxu0
        %v1643 = vadd.f32 0.0, %v1642
        %v1644 = vpop.f32.mrf.mxu0
        %v1645 = vadd.f32 0.0, %v1644
        %1646 = vdwg.mxu0
        %v1647 = vadd.f32 %v1501, %v1572
        %v1648 = vadd.f32 %v1502, %v1574
        %v1649 = vadd.f32 %v1503, %v1643
        %v1650 = vadd.f32 %v1504, %v1645
        %1651 = vadd.xlane.f32.xlu0 %v1647
        %v1652 = vpop.xlane.xlu0 %1651
        %v1653 = vmul.f32 %v1652, %v645
        %v1654 = vsub.f32 %v1647, %v1653
        %v1655 = vmul.f32 %v1654, %v1654
        %1656 = vadd.xlane.f32.xlu0 %v1655
        %v1657 = vpop.xlane.xlu0 %1656
        %v1658 = vmul.f32 %v1657, %v645
        %v1659 = vadd.f32 %v1658, 1e-05
        %v1660 = vrsqrt.pop %v1659
        %v1661 = vmul.f32 %v1654, %v1660
        %v1662 = vmul.f32 %v1661, %v658
        %v1663 = vadd.f32 %v1662, %v663
        %v1664 = vxor.u32 %v1663, 2147483648
        %v1665 = vmul.f32 %v1664, 1.442695
        %v1666 = vpow.pop %v1665
        %v1667 = vadd.f32 %v1666, 1.0
        %v1668 = vrcp.pop %v1667
        %v1669 = vmul.f32 1.0, %v1668
        %1670 = vadd.xlane.f32.xlu0 %v1648
        %v1671 = vpop.xlane.xlu0 %1670
        %v1672 = vmul.f32 %v1671, %v645
        %v1673 = vsub.f32 %v1648, %v1672
        %v1674 = vmul.f32 %v1673, %v1673
        %1675 = vadd.xlane.f32.xlu0 %v1674
        %v1676 = vpop.xlane.xlu0 %1675
        %v1677 = vmul.f32 %v1676, %v645
        %v1678 = vadd.f32 %v1677, 1e-05
        %v1679 = vrsqrt.pop %v1678
        %v1680 = vmul.f32 %v1673, %v1679
        %v1681 = vmul.f32 %v1680, %v685
        %v1682 = vadd.f32 %v1681, %v690
        %v1683 = vxor.u32 %v1682, 2147483648
        %v1684 = vmul.f32 %v1683, 1.442695
        %v1685 = vpow.pop %v1684
        %v1686 = vadd.f32 %v1685, 1.0
        %v1687 = vrcp.pop %v1686
        %v1688 = vmul.f32 1.0, %v1687
        %1689 = vadd.xlane.f32.xlu0 %v1649
        %v1690 = vpop.xlane.xlu0 %1689
        %v1691 = vmul.f32 %v1690, %v645
        %v1692 = vsub.f32 %v1649, %v1691
        %v1693 = vmul.f32 %v1692, %v1692
        %1694 = vadd.xlane.f32.xlu0 %v1693
        %v1695 = vpop.xlane.xlu0 %1694
        %v1696 = vmul.f32 %v1695, %v645
        %v1697 = vadd.f32 %v1696, 1e-05
        %v1698 = vrsqrt.pop %v1697
        %v1699 = vmul.f32 %v1692, %v1698
        %v1700 = vmul.f32 %v1699, %v712
        %v1701 = vadd.f32 %v1700, %v717
        %v1702 = vtanh.pop %v1701
        %1703 = vadd.xlane.f32.xlu0 %v1650
        %v1704 = vpop.xlane.xlu0 %1703
        %v1705 = vmul.f32 %v1704, %v645
        %v1706 = vsub.f32 %v1650, %v1705
        %v1707 = vmul.f32 %v1706, %v1706
        %1708 = vadd.xlane.f32.xlu0 %v1707
        %v1709 = vpop.xlane.xlu0 %1708
        %v1710 = vmul.f32 %v1709, %v645
        %v1711 = vadd.f32 %v1710, 1e-05
        %v1712 = vrsqrt.pop %v1711
        %v1713 = vmul.f32 %v1706, %v1712
        %v1714 = vmul.f32 %v1713, %v734
        %v1715 = vadd.f32 %v1714, %v739
        %v1716 = vxor.u32 %v1715, 2147483648
        %v1717 = vmul.f32 %v1716, 1.442695
        %v1718 = vpow.pop %v1717
        %v1719 = vadd.f32 %v1718, 1.0
        %v1720 = vrcp.pop %v1719
        %v1721 = vmul.f32 1.0, %v1720
        %v1722 = vmul.f32 %v1688, %v1495
        %v1723 = vmul.f32 %v1669, %v1702
        %v1724 = vadd.f32 %v1722, %v1723
        %1725 = vadd.xlane.f32.xlu0 %v1724
        %v1726 = vpop.xlane.xlu0 %1725
        %v1727 = vmul.f32 %v1726, %v645
        %v1728 = vsub.f32 %v1724, %v1727
        %v1729 = vmul.f32 %v1728, %v1728
        %1730 = vadd.xlane.f32.xlu0 %v1729
        %v1731 = vpop.xlane.xlu0 %1730
        %v1732 = vmul.f32 %v1731, %v645
        %v1733 = vadd.f32 %v1732, 1e-05
        %v1734 = vrsqrt.pop %v1733
        %v1735 = vmul.f32 %v1728, %v1734
        %v1736 = vmul.f32 %v1735, %v764
        %v1737 = vadd.f32 %v1736, %v769
        %v1738 = vtanh.pop %v1737
        %v1739 = vmul.f32 %v1721, %v1738
        %s1740 = scalar_lea.vmem %s410, 32 [#allocation13]
        %1741 = vst [vmem:[%s1740] sm:$0xff] %v1739
        %s1742 = scalar_lea.vmem %s366, 160 [#allocation4]
        %v1743 = vld [vmem:[%s1742] sm:$0xff]
        %v1744 = vld [vmem:[%s1742 + $0x8] sm:$0xff]
        %v1745 = vld [vmem:[%s1742 + $0x10] sm:$0xff]
        %v1746 = vld [vmem:[%s1742 + $0x18] sm:$0xff]
        %1747 = vmatprep.subr.mxu0 %v486
        %1748 = vmatpush1.msra.mxu0 %v485
        %1749 = vmatprep.subr.mxu0 %v482
        %1750 = vmatpush1.msra.mxu0 %v481
        %1751 = vmatprep.subr.mxu0 %v478
        %1752 = vmatpush1.msra.mxu0 %v477
        %1753 = vmatprep.subr.mxu0 %v474
        %1754 = vmatpush1.msra.mxu0 %v473
        %1755 = vmatprep.subr.mxu0 %v470
        %1756 = vmatpush1.msra.mxu0 %v469
        %1757 = vmatprep.subr.mxu0 %v466
        %1758 = vmatpush1.msra.mxu0 %v465
        %1759 = vmatprep.subr.mxu0 %v462
        %1760 = vmatpush1.msra.mxu0 %v461
        %1761 = vmatprep.subr.mxu0 %v458
        %1762 = vmatpush1.msra.mxu0 %v457
        %1763 = vmatprep.subr.mxu0 %v454
        %1764 = vmatpush1.msra.mxu0 %v453
        %1765 = vmatprep.subr.mxu0 %v450
        %1766 = vmatpush1.msra.mxu0 %v449
        %1767 = vmatprep.subr.mxu0 %v446
        %1768 = vmatpush1.msra.mxu0 %v445
        %1769 = vmatprep.subr.mxu0 %v442
        %1770 = vmatpush1.msra.mxu0 %v441
        %1771 = vmatprep.subr.mxu0 %v438
        %1772 = vmatpush1.msra.mxu0 %v437
        %1773 = vmatprep.subr.mxu0 %v434
        %1774 = vmatpush1.msra.mxu0 %v433
        %1775 = vmatprep.subr.mxu0 %v430
        %1776 = vmatpush1.msra.mxu0 %v429
        %1777 = vmatprep.subr.mxu0 %v426
        %1778 = vmatpush1.msra.mxu0 %v425
        %1779 = vmatprep.subr.mxu0 0.0
        %1780 = vmatpush2.msra.mxu0 0.0
        %1781 = vmatprep.subr.mxu0 0.0
        %1782 = vmatpush2.msra.mxu0 0.0
        %1783 = vmatprep.subr.mxu0 0.0
        %1784 = vmatpush2.msra.mxu0 0.0
        %1785 = vmatprep.subr.mxu0 0.0
        %1786 = vmatpush2.msra.mxu0 0.0
        %1787 = vmatprep.subr.mxu0 0.0
        %1788 = vmatpush2.msra.mxu0 0.0
        %1789 = vmatprep.subr.mxu0 0.0
        %1790 = vmatpush2.msra.mxu0 0.0
        %1791 = vmatprep.subr.mxu0 0.0
        %1792 = vmatpush2.msra.mxu0 0.0
        %1793 = vmatprep.subr.mxu0 0.0
        %1794 = vmatpush2.msra.mxu0 0.0
        %1795 = vmatprep.subr.mxu0 0.0
        %1796 = vmatpush2.msra.mxu0 0.0
        %1797 = vmatprep.subr.mxu0 0.0
        %1798 = vmatpush2.msra.mxu0 0.0
        %1799 = vmatprep.subr.mxu0 0.0
        %1800 = vmatpush2.msra.mxu0 0.0
        %1801 = vmatprep.subr.mxu0 0.0
        %1802 = vmatpush2.msra.mxu0 0.0
        %1803 = vmatprep.subr.mxu0 0.0
        %1804 = vmatpush2.msra.mxu0 0.0
        %1805 = vmatprep.subr.mxu0 0.0
        %1806 = vmatpush2.msra.mxu0 0.0
        %1807 = vmatprep.subr.mxu0 0.0
        %1808 = vmatpush2.msra.mxu0 0.0
        %1809 = vmatprep.subr.mxu0 0.0
        %1810 = vmatpush2.msra.mxu0 0.0
        %1811 = vmatprep.mubr.f32.mxu0 0.0
        %1812 = vmatmul.mubr.f32.gmra.mxu0 %v1739
        %v1813 = vpop.f32.mrf.mxu0
        %v1814 = vadd.f32 0.0, %v1813
        %v1815 = vpop.f32.mrf.mxu0
        %v1816 = vadd.f32 0.0, %v1815
        %1817 = vdwg.mxu0
        %1818 = vmatprep.subr.mxu0 %v488
        %1819 = vmatpush1.msra.mxu0 %v487
        %1820 = vmatprep.subr.mxu0 %v484
        %1821 = vmatpush1.msra.mxu0 %v483
        %1822 = vmatprep.subr.mxu0 %v480
        %1823 = vmatpush1.msra.mxu0 %v479
        %1824 = vmatprep.subr.mxu0 %v476
        %1825 = vmatpush1.msra.mxu0 %v475
        %1826 = vmatprep.subr.mxu0 %v472
        %1827 = vmatpush1.msra.mxu0 %v471
        %1828 = vmatprep.subr.mxu0 %v468
        %1829 = vmatpush1.msra.mxu0 %v467
        %1830 = vmatprep.subr.mxu0 %v464
        %1831 = vmatpush1.msra.mxu0 %v463
        %1832 = vmatprep.subr.mxu0 %v460
        %1833 = vmatpush1.msra.mxu0 %v459
        %1834 = vmatprep.subr.mxu0 %v456
        %1835 = vmatpush1.msra.mxu0 %v455
        %1836 = vmatprep.subr.mxu0 %v452
        %1837 = vmatpush1.msra.mxu0 %v451
        %1838 = vmatprep.subr.mxu0 %v448
        %1839 = vmatpush1.msra.mxu0 %v447
        %1840 = vmatprep.subr.mxu0 %v444
        %1841 = vmatpush1.msra.mxu0 %v443
        %1842 = vmatprep.subr.mxu0 %v440
        %1843 = vmatpush1.msra.mxu0 %v439
        %1844 = vmatprep.subr.mxu0 %v436
        %1845 = vmatpush1.msra.mxu0 %v435
        %1846 = vmatprep.subr.mxu0 %v432
        %1847 = vmatpush1.msra.mxu0 %v431
        %1848 = vmatprep.subr.mxu0 %v428
        %1849 = vmatpush1.msra.mxu0 %v427
        %1850 = vmatprep.subr.mxu0 0.0
        %1851 = vmatpush2.msra.mxu0 0.0
        %1852 = vmatprep.subr.mxu0 0.0
        %1853 = vmatpush2.msra.mxu0 0.0
        %1854 = vmatprep.subr.mxu0 0.0
        %1855 = vmatpush2.msra.mxu0 0.0
        %1856 = vmatprep.subr.mxu0 0.0
        %1857 = vmatpush2.msra.mxu0 0.0
        %1858 = vmatprep.subr.mxu0 0.0
        %1859 = vmatpush2.msra.mxu0 0.0
        %1860 = vmatprep.subr.mxu0 0.0
        %1861 = vmatpush2.msra.mxu0 0.0
        %1862 = vmatprep.subr.mxu0 0.0
        %1863 = vmatpush2.msra.mxu0 0.0
        %1864 = vmatprep.subr.mxu0 0.0
        %1865 = vmatpush2.msra.mxu0 0.0
        %1866 = vmatprep.subr.mxu0 0.0
        %1867 = vmatpush2.msra.mxu0 0.0
        %1868 = vmatprep.subr.mxu0 0.0
        %1869 = vmatpush2.msra.mxu0 0.0
        %1870 = vmatprep.subr.mxu0 0.0
        %1871 = vmatpush2.msra.mxu0 0.0
        %1872 = vmatprep.subr.mxu0 0.0
        %1873 = vmatpush2.msra.mxu0 0.0
        %1874 = vmatprep.subr.mxu0 0.0
        %1875 = vmatpush2.msra.mxu0 0.0
        %1876 = vmatprep.subr.mxu0 0.0
        %1877 = vmatpush2.msra.mxu0 0.0
        %1878 = vmatprep.subr.mxu0 0.0
        %1879 = vmatpush2.msra.mxu0 0.0
        %1880 = vmatprep.subr.mxu0 0.0
        %1881 = vmatpush2.msra.mxu0 0.0
        %1882 = vmatprep.mubr.f32.mxu0 0.0
        %1883 = vmatmul.mubr.f32.gmra.mxu0 %v1739
        %v1884 = vpop.f32.mrf.mxu0
        %v1885 = vadd.f32 0.0, %v1884
        %v1886 = vpop.f32.mrf.mxu0
        %v1887 = vadd.f32 0.0, %v1886
        %1888 = vdwg.mxu0
        %v1889 = vadd.f32 %v1743, %v1814
        %v1890 = vadd.f32 %v1744, %v1816
        %v1891 = vadd.f32 %v1745, %v1885
        %v1892 = vadd.f32 %v1746, %v1887
        %1893 = vadd.xlane.f32.xlu0 %v1889
        %v1894 = vpop.xlane.xlu0 %1893
        %v1895 = vmul.f32 %v1894, %v645
        %v1896 = vsub.f32 %v1889, %v1895
        %v1897 = vmul.f32 %v1896, %v1896
        %1898 = vadd.xlane.f32.xlu0 %v1897
        %v1899 = vpop.xlane.xlu0 %1898
        %v1900 = vmul.f32 %v1899, %v645
        %v1901 = vadd.f32 %v1900, 1e-05
        %v1902 = vrsqrt.pop %v1901
        %v1903 = vmul.f32 %v1896, %v1902
        %v1904 = vmul.f32 %v1903, %v658
        %v1905 = vadd.f32 %v1904, %v663
        %v1906 = vxor.u32 %v1905, 2147483648
        %v1907 = vmul.f32 %v1906, 1.442695
        %v1908 = vpow.pop %v1907
        %v1909 = vadd.f32 %v1908, 1.0
        %v1910 = vrcp.pop %v1909
        %v1911 = vmul.f32 1.0, %v1910
        %1912 = vadd.xlane.f32.xlu0 %v1890
        %v1913 = vpop.xlane.xlu0 %1912
        %v1914 = vmul.f32 %v1913, %v645
        %v1915 = vsub.f32 %v1890, %v1914
        %v1916 = vmul.f32 %v1915, %v1915
        %1917 = vadd.xlane.f32.xlu0 %v1916
        %v1918 = vpop.xlane.xlu0 %1917
        %v1919 = vmul.f32 %v1918, %v645
        %v1920 = vadd.f32 %v1919, 1e-05
        %v1921 = vrsqrt.pop %v1920
        %v1922 = vmul.f32 %v1915, %v1921
        %v1923 = vmul.f32 %v1922, %v685
        %v1924 = vadd.f32 %v1923, %v690
        %v1925 = vxor.u32 %v1924, 2147483648
        %v1926 = vmul.f32 %v1925, 1.442695
        %v1927 = vpow.pop %v1926
        %v1928 = vadd.f32 %v1927, 1.0
        %v1929 = vrcp.pop %v1928
        %v1930 = vmul.f32 1.0, %v1929
        %1931 = vadd.xlane.f32.xlu0 %v1891
        %v1932 = vpop.xlane.xlu0 %1931
        %v1933 = vmul.f32 %v1932, %v645
        %v1934 = vsub.f32 %v1891, %v1933
        %v1935 = vmul.f32 %v1934, %v1934
        %1936 = vadd.xlane.f32.xlu0 %v1935
        %v1937 = vpop.xlane.xlu0 %1936
        %v1938 = vmul.f32 %v1937, %v645
        %v1939 = vadd.f32 %v1938, 1e-05
        %v1940 = vrsqrt.pop %v1939
        %v1941 = vmul.f32 %v1934, %v1940
        %v1942 = vmul.f32 %v1941, %v712
        %v1943 = vadd.f32 %v1942, %v717
        %v1944 = vtanh.pop %v1943
        %1945 = vadd.xlane.f32.xlu0 %v1892
        %v1946 = vpop.xlane.xlu0 %1945
        %v1947 = vmul.f32 %v1946, %v645
        %v1948 = vsub.f32 %v1892, %v1947
        %v1949 = vmul.f32 %v1948, %v1948
        %1950 = vadd.xlane.f32.xlu0 %v1949
        %v1951 = vpop.xlane.xlu0 %1950
        %v1952 = vmul.f32 %v1951, %v645
        %v1953 = vadd.f32 %v1952, 1e-05
        %v1954 = vrsqrt.pop %v1953
        %v1955 = vmul.f32 %v1948, %v1954
        %v1956 = vmul.f32 %v1955, %v734
        %v1957 = vadd.f32 %v1956, %v739
        %v1958 = vxor.u32 %v1957, 2147483648
        %v1959 = vmul.f32 %v1958, 1.442695
        %v1960 = vpow.pop %v1959
        %v1961 = vadd.f32 %v1960, 1.0
        %v1962 = vrcp.pop %v1961
        %v1963 = vmul.f32 1.0, %v1962
        %v1964 = vmul.f32 %v1930, %v1737
        %v1965 = vmul.f32 %v1911, %v1944
        %v1966 = vadd.f32 %v1964, %v1965
        %1967 = vadd.xlane.f32.xlu0 %v1966
        %v1968 = vpop.xlane.xlu0 %1967
        %v1969 = vmul.f32 %v1968, %v645
        %v1970 = vsub.f32 %v1966, %v1969
        %v1971 = vmul.f32 %v1970, %v1970
        %1972 = vadd.xlane.f32.xlu0 %v1971
        %v1973 = vpop.xlane.xlu0 %1972
        %v1974 = vmul.f32 %v1973, %v645
        %v1975 = vadd.f32 %v1974, 1e-05
        %v1976 = vrsqrt.pop %v1975
        %v1977 = vmul.f32 %v1970, %v1976
        %v1978 = vmul.f32 %v1977, %v764
        %v1979 = vadd.f32 %v1978, %v769
        %v1980 = vtanh.pop %v1979
        %v1981 = vmul.f32 %v1963, %v1980
        %s1982 = scalar_lea.vmem %s410, 40 [#allocation13]
        %1983 = vst [vmem:[%s1982] sm:$0xff] %v1981
        %1984 = vst [vmem:[#allocation2] sm:$0xff] %v1981
        %1985 = vst [vmem:[#allocation3] sm:$0xff] %v1979
        %p1986 = scmp.eq.s32.totalorder %s34, 1
        // Predicated region
        $region69: #{tpu_custom_call.1} parent=43 // pred_check
          %p1987 = pneg %p1986
        $region70: #{tpu_custom_call.1} parent=43 // pred_check_branch
          %1989 = sbr.rel (%p1987) target = $region72
        $region71: #{tpu_custom_call.1} parent=43 // pred_region
          %1990 = vst [vmem:[#allocation14] sm:$0xff] %v1981
          %1991 = vst [vmem:[#allocation16] sm:$0xff] %v1979
        $region72: #{tpu_custom_call.1} parent=43 // pred_fallthru
          _
        %s1992 = sand.u32 %s194, 1
        %s1993 = scalar_lea.sflag [#allocation6], %s1992
        %s1994 = sand.u32 %s194, 1
        %s1995 = smul.addr %s1994, 48
        %s1996 = scalar_lea.vmem [#allocation13], %s1995
        // Predicated region
        $region73: #{tpu_custom_call.1} parent=43 // pred_check
          %p1997 = pneg %p204
        $region74: #{tpu_custom_call.1} parent=43 // pred_check_branch
          %1999 = sbr.rel (%p1997) target = $region76
        $region75: #{tpu_custom_call.1} parent=43 // pred_region
          %s2000 = smul.u32 6, %s34
          %s2002 = ssub.s32 768, 768
          %2003 = vsyncadd %s1993, %s2002
          %s2004 = sadd.s32 %s33, %s2000
          %s2005 = smul.addr %s2004, 128
          %s2006 = scalar_lea.hbm %s6, %s2005
          %s2007 = sshll.u32 %s1996, 4
          %s2008 = int_to_ptr.vmem [resolvable:$true] %s2007
          %2013 = dma.vmem_to_hbm [thread:$0]  %s2008, 768, %s2006, %s1993, 128, 128, 8
        $region76: #{tpu_custom_call.1} parent=43 // pred_fallthru
          _
        // Predicated region
        $region77: #{tpu_custom_call.1} parent=43 // pred_check
          %p2014 = pneg %p230
        $region78: #{tpu_custom_call.1} parent=43 // pred_check_branch
          %2016 = sbr.rel (%p2014) target = $region80
        $region79: #{tpu_custom_call.1} parent=43 // pred_region
          %s2018 = ssub.s32 128, 128
          %2019 = vsyncadd [#allocation15], %s2018
          %s2020 = smul.addr %s33, 128
          %s2021 = scalar_lea.hbm %s7, %s2020
          %s2023 = sshll.u32 [#allocation14], 4
          %s2024 = int_to_ptr.vmem [resolvable:$true] %s2023
          %2026 = dma.vmem_to_hbm [thread:$0]  %s2024, 128, %s2021, [#allocation15]
        $region80: #{tpu_custom_call.1} parent=43 // pred_fallthru
          _
        // Predicated region
        $region81: #{tpu_custom_call.1} parent=43 // pred_check
          %p2027 = pneg %p256
        $region82: #{tpu_custom_call.1} parent=43 // pred_check_branch
          %2029 = sbr.rel (%p2027) target = $region84
        $region83: #{tpu_custom_call.1} parent=43 // pred_region
          %s2031 = ssub.s32 128, 128
          %2032 = vsyncadd [#allocation15], %s2031
          %s2033 = smul.addr %s33, 128
          %s2034 = scalar_lea.hbm %s8, %s2033
          %s2036 = sshll.u32 [#allocation16], 4
          %s2037 = int_to_ptr.vmem [resolvable:$true] %s2036
          %2039 = dma.vmem_to_hbm [thread:$0]  %s2037, 128, %s2034, [#allocation15]
        $region84: #{tpu_custom_call.1} parent=43 // pred_fallthru
          _
        // Predicated region
        $region85: #{tpu_custom_call.1} parent=43 // pred_check
          %p2040 = pneg %p230
        $region86: #{tpu_custom_call.1} parent=43 // pred_check_branch
          %2042 = sbr.rel (%p2040) target = $region88
        $region87: #{tpu_custom_call.1} parent=43 // pred_region
          %2043 = dma.done [#allocation15], 128
        $region88: #{tpu_custom_call.1} parent=43 // pred_fallthru
          _
        // Predicated region
        $region89: #{tpu_custom_call.1} parent=43 // pred_check
          %p2044 = pneg %p256
        $region90: #{tpu_custom_call.1} parent=43 // pred_check_branch
          %2046 = sbr.rel (%p2044) target = $region92
        $region91: #{tpu_custom_call.1} parent=43 // pred_region
          %2047 = dma.done [#allocation15], 128
        $region92: #{tpu_custom_call.1} parent=43 // pred_fallthru
          _
      $region44: #{tpu_custom_call.1} parent=5 // pred_fallthru
        _
      %p2048 = scmp.le.s32.totalorder 2, %s24
      // Predicated region
      $region93: #{tpu_custom_call.1} parent=5 // pred_check
        %p2049 = pneg %p2048
      $region94: #{tpu_custom_call.1} parent=5 // pred_check_branch
        %2051 = sbr.rel (%p2049) target = $region96
      $region95: #{tpu_custom_call.1} parent=5 // pred_region
        %s2052 = ssub.s32 %s24, 2
        // Predicated region
        $region97: #{tpu_custom_call.1} parent=95 // pred_check
          %p2053 = pneg %p210
        $region98: #{tpu_custom_call.1} parent=95 // pred_check_branch
          %2055 = sbr.rel (%p2053) target = $region100
        $region99: #{tpu_custom_call.1} parent=95 // pred_region
          %s2056 = sand.u32 %s195, 1
          %s2057 = scalar_lea.sflag [#allocation6], %s2056
          %s2058 = sand.u32 %s195, 1
          %s2059 = smul.addr %s2058, 48
          %s2060 = scalar_lea.vmem [#allocation13], %s2059
          %2061 = dma.done %s2057, 768
        $region100: #{tpu_custom_call.1} parent=95 // pred_fallthru
          _
      $region96: #{tpu_custom_call.1} parent=5 // pred_fallthru
        _
    $region6: #{tpu_custom_call.1} parent=1 // loop_footer
      %s28 = sadd.s32 1, %s24
    $region7: #{tpu_custom_call.1} parent=1 // loop_footer_branch
      %23 = sbr.rel target = $region3
    $region8: #{tpu_custom_call.1} parent=1 // loop_exit
      _
    %2062 = vsyncpa [#allocation5], 1
    %s2063 = scalar_lea.sflag [#allocation5], 1
    %2064 = vsyncpa %s2063, 1
    %2065 = vsyncpa [#allocation8], 1
    %2066 = vsyncpa [#allocation11], 1
    %2067 = vsyncpa [#allocation6], 1
    %s2068 = scalar_lea.sflag [#allocation6], 1
    %2069 = vsyncpa %s2068, 1
    %2070 = vsyncpa [#allocation15], 1

</llo_original>
